<compile_context>
chip_gen: v5e
topology: v5e:2x2
jax: 0.10.0
libtpu: 0.0.40
codegen_flags: <defaults>
</compile_context>

<pallas_src>
import jax
import jax.numpy as jnp
from jax.experimental import pallas as pl
from jax.experimental.pallas import tpu as pltpu

OUT_LANES = 128  # lane-padded logit slab width (real output is lane 0)


def cnn_forward_kernel(x_ref,
                       w1_ref, s1_ref, b1_ref,
                       w2_ref, s2_ref, b2_ref,
                       w3_ref, s3_ref, b3_ref,
                       w4_ref, s4_ref, b4_ref,
                       fw1_ref, fb1_ref,
                       fw2_ref, fb2_ref,
                       fw3_ref, fb3_ref,
                       out_ref):
    x = x_ref[...]                                   # (L, Bt, 1) f32, length-major
    L, Bt, _ = x.shape

    # ---- conv1: Conv1d(1, 32, k=3, pad=1) + BN1 + ReLU (Cin == 1 -> VPU) ----
    zc = jnp.zeros((1, Bt, 1), jnp.float32)
    xp = jnp.concatenate([zc, x, zc], axis=0)        # (L+2, Bt, 1): outer-axis zero pad
    w1 = w1_ref[...]                                 # (3, 1, 32) f32
    h = (xp[0:L] * w1[0][None]
         + xp[1:L + 1] * w1[1][None]
         + xp[2:L + 2] * w1[2][None])                # (L, Bt, 32)
    h = h * s1_ref[...][None] + b1_ref[...][None]    # folded BN (+ conv bias)
    h = jnp.maximum(h, 0.0)

    # ---- MaxPool1d(2): pairwise max of leading-axis slabs (floors odd L) ----
    Lp = L // 2
    C1 = h.shape[2]
    h2 = h[0:2 * Lp].reshape(Lp, 2, Bt, C1)          # leading-dim split: free
    h = jnp.maximum(h2[:, 0], h2[:, 1])              # (Lp, Bt, 32)

    # ---- conv blocks 2..4: three K=Cin MXU matmuls per block, folded BN epilogue ----
    def conv_bn_relu(h, w_ref, s_ref, b_ref):
        Ll, Bb, Cin = h.shape
        Cout = w_ref.shape[2]
        hb = h.astype(jnp.bfloat16)
        z = jnp.zeros((1, Bb, Cin), jnp.bfloat16)
        hp = jnp.concatenate([z, hb, z], axis=0)     # (Ll+2, Bb, Cin): outer-axis pad only
        # (Ll, Bb, Cin) -> (Ll*Bb, Cin) is a free view because Bb % 8 == 0.
        y = jnp.dot(hp[0:Ll].reshape(Ll * Bb, Cin), w_ref[0],
                    preferred_element_type=jnp.float32)
        y = y + jnp.dot(hp[1:Ll + 1].reshape(Ll * Bb, Cin), w_ref[1],
                        preferred_element_type=jnp.float32)
        y = y + jnp.dot(hp[2:Ll + 2].reshape(Ll * Bb, Cin), w_ref[2],
                        preferred_element_type=jnp.float32)
        y = y.reshape(Ll, Bb, Cout)
        y = y * s_ref[...][None] + b_ref[...][None]  # folded BN epilogue
        return jnp.maximum(y, 0.0)

    h = conv_bn_relu(h, w2_ref, s2_ref, b2_ref)      # (Lp, Bt, 64)
    h = conv_bn_relu(h, w3_ref, s3_ref, b3_ref)      # (Lp, Bt, 128)
    h = conv_bn_relu(h, w4_ref, s4_ref, b4_ref)      # (Lp, Bt, 256)

    # ---- flatten + fc1: sum over Lp of K=256 matmuls (h[l] is a free slab) ----
    hb = h.astype(jnp.bfloat16)                      # (Lp, Bt, 256)
    f = jnp.zeros((Bt, fw1_ref.shape[2]), jnp.float32)
    for l in range(Lp):                              # static unroll; Lp is small here
        f = f + jnp.dot(hb[l], fw1_ref[l], preferred_element_type=jnp.float32)
    f = jnp.maximum(f + fb1_ref[...], 0.0)
    # Dropout(0.5): inference mode -> identity.

    # ---- fc2 + ReLU ----
    f = jnp.dot(f.astype(jnp.bfloat16), fw2_ref[...],
                preferred_element_type=jnp.float32) + fb2_ref[...]
    f = jnp.maximum(f, 0.0)

    # ---- fc3 (lane-padded to 128 outputs; real logit in lane 0) + sigmoid ----
    logits = jnp.dot(f.astype(jnp.bfloat16), fw3_ref[...],
                     preferred_element_type=jnp.float32) + fb3_ref[...]
    out_ref[...] = jax.nn.sigmoid(logits)            # lane-dense (Bt, 128) store


def init_params(input_length, key):
    """Deterministic synthetic parameters: PyTorch-layout `raw` + kernel-ready tuple."""
    Lp = input_length // 2
    keys = jax.random.split(key, 11)

    def conv_init(k, cout, cin):
        kw, kb = jax.random.split(k)
        return (0.1 * jax.random.normal(kw, (cout, cin, 3), jnp.float32),
                0.1 * jax.random.normal(kb, (cout,), jnp.float32))

    def bn_init(k, c):
        k1, k2, k3, k4 = jax.random.split(k, 4)
        gamma = 1.0 + 0.1 * jax.random.normal(k1, (c,), jnp.float32)
        beta = 0.1 * jax.random.normal(k2, (c,), jnp.float32)
        mean = 0.1 * jax.random.normal(k3, (c,), jnp.float32)
        var = 0.9 + 0.2 * jax.nn.softplus(jax.random.normal(k4, (c,), jnp.float32))
        return gamma, beta, mean, var

    def lin_init(k, nout, nin):
        kw, kb = jax.random.split(k)
        return (0.05 * jax.random.normal(kw, (nout, nin), jnp.float32),
                0.05 * jax.random.normal(kb, (nout,), jnp.float32))

    raw = {}
    raw["w1"], raw["b1"] = conv_init(keys[0], 32, 1);    raw["bn1"] = bn_init(keys[1], 32)
    raw["w2"], raw["b2"] = conv_init(keys[2], 64, 32);   raw["bn2"] = bn_init(keys[3], 64)
    raw["w3"], raw["b3"] = conv_init(keys[4], 128, 64);  raw["bn3"] = bn_init(keys[5], 128)
    raw["w4"], raw["b4"] = conv_init(keys[6], 256, 128); raw["bn4"] = bn_init(keys[7], 256)
    conv_out = 256 * Lp
    raw["fc1_w"], raw["fc1_b"] = lin_init(keys[8], 256, conv_out)
    raw["fc2_w"], raw["fc2_b"] = lin_init(keys[9], 128, 256)
    raw["fc3_w"], raw["fc3_b"] = lin_init(keys[10], 1, 128)

    eps = 1e-5

    def fold_bn(b, bn):                 # fold conv bias + BN into per-channel scale/shift
        gamma, beta, mean, var = bn
        scale = gamma / jnp.sqrt(var + eps)
        shift = (b - mean) * scale + beta
        return scale.reshape(1, -1), shift.reshape(1, -1)

    def split_conv_w(w):                # (Cout, Cin, 3) -> (3, Cin, Cout) bf16: one slab/tap
        return jnp.transpose(w, (2, 1, 0)).astype(jnp.bfloat16)

    w1k = jnp.transpose(raw["w1"], (2, 1, 0))        # (3, 1, 32) f32 (conv1 stays on VPU)
    s1, sh1 = fold_bn(raw["b1"], raw["bn1"])
    w2k = split_conv_w(raw["w2"]); s2, sh2 = fold_bn(raw["b2"], raw["bn2"])
    w3k = split_conv_w(raw["w3"]); s3, sh3 = fold_bn(raw["b3"], raw["bn3"])
    w4k = split_conv_w(raw["w4"]); s4, sh4 = fold_bn(raw["b4"], raw["bn4"])

    # torch.flatten of (B, C=256, L'=Lp) is C-major: column = c*Lp + l.  The kernel
    # contracts per-position slabs h[l] (Bt, 256) against fw1[l] (256, 256), so
    # permute fc1_w into (Lp, 256_in, 256_out) with fw1[l, c, o] = fc1_w[o, c*Lp + l].
    fw1 = (raw["fc1_w"].reshape(256, 256, Lp).transpose(2, 1, 0).astype(jnp.bfloat16))
    fb1 = raw["fc1_b"].reshape(1, -1)
    fw2 = raw["fc2_w"].T.astype(jnp.bfloat16)
    fb2 = raw["fc2_b"].reshape(1, -1)
    # fc3 has a single output; lane-pad to OUT_LANES so the final store is lane-dense.
    fw3 = jnp.zeros((128, OUT_LANES), jnp.float32).at[:, :1].set(raw["fc3_w"].T)
    fw3 = fw3.astype(jnp.bfloat16)
    fb3 = jnp.zeros((1, OUT_LANES), jnp.float32).at[:, :1].set(raw["fc3_b"].reshape(1, 1))

    kernel_params = (w1k, s1, sh1, w2k, s2, sh2, w3k, s3, sh3, w4k, s4, sh4,
                     fw1, fb1, fw2, fb2, fw3, fb3)
    return kernel_params, raw


def _round_up(v, m):
    return ((v + m - 1) // m) * m


def _vmem_capacity_bytes():
    """Physical per-core VMEM (64 MiB v7x, 128 MiB v5e/v6e); conservative fallback."""
    try:
        cap = getattr(pltpu.get_tpu_info(), "vmem_capacity_bytes", None)
        if cap:
            return int(cap)
    except Exception:
        pass
    return 64 * 2 ** 20


def _weight_spec(p, single_buffer):
    idx = lambda b, _n=p.ndim: (0,) * _n             # constant index -> resident in VMEM
    if single_buffer:
        return pl.BlockSpec(p.shape, idx, pipeline_mode=pl.Buffered(1))
    return pl.BlockSpec(p.shape, idx)


def forward(x, kernel_params, block_b=None):
    """x: (B, L) float32 -> (B, 1) float32 sigmoid probabilities."""
    x = x.astype(jnp.float32)
    B, L = x.shape
    if block_b is None:
        # Fill the 256-wide MXU when B allows, but keep >=2 grid tiles so both
        # v7x TensorCores get work for mid-sized batches.
        block_b = max(8, min(256, _round_up(pl.cdiv(B, 2), 8)))
    block_b = _round_up(block_b, 8)
    B_pad = _round_up(B, block_b)
    if B_pad != B:                                   # pad batch so every tile is full
        x = jnp.concatenate([x, jnp.zeros((B_pad - B, L), x.dtype)], axis=0)

    # Length-major, channels-last layout for the kernel (wrapper-side layout plumbing
    # only): (L, B_pad, 1).  The kernel then never transposes/relayouts.
    xr = jnp.transpose(x, (1, 0))[:, :, None]

    grid = (B_pad // block_b,)
    Lp = max(L // 2, 1)

    weight_bytes = sum(int(p.size) * p.dtype.itemsize for p in kernel_params)
    io_bytes = block_b * (L + OUT_LANES) * 4
    act_bytes = 8 * block_b * Lp * 256 * 4           # rough in-kernel activation footprint
    cap = int(_vmem_capacity_bytes() * 0.82)         # headroom: ~52 MiB v7x, ~105 MiB v5e/v6e
    vmem_limit = int(min(cap, max(24 * 2 ** 20,
                                  2 * weight_bytes + 2 * io_bytes + act_bytes + 4 * 2 ** 20)))

    def _call(single_buffer_weights):
        in_specs = ([pl.BlockSpec((L, block_b, 1), lambda b: (0, b, 0))]
                    + [_weight_spec(p, single_buffer_weights) for p in kernel_params])
        return pl.pallas_call(
            cnn_forward_kernel,
            out_shape=jax.ShapeDtypeStruct((B_pad, OUT_LANES), jnp.float32),
            grid=grid,
            in_specs=in_specs,
            out_specs=pl.BlockSpec((block_b, OUT_LANES), lambda b: (b, 0)),
            compiler_params=pltpu.CompilerParams(
                dimension_semantics=("parallel",),   # batch tiles shard across v7x's 2 TCs
                vmem_limit_bytes=vmem_limit),
        )(xr, *kernel_params)

    try:
        out = _call(True)                            # single-buffered resident weights
    except Exception:                                # fallback if Buffered(1) unsupported
        out = _call(False)
    return out[:B, :1]                               # real logit lives in lane 0


def reference_forward(x, raw):
    """Pure-JAX mirror of the PyTorch forward (NCW layout), inference mode, f32."""
    eps = 1e-5
    h = x[:, None, :]                                # (B, 1, L)

    def conv_bn_relu(h, w, b, bn):
        gamma, beta, mean, var = bn
        y = jax.lax.conv_general_dilated(
            h, w, window_strides=(1,), padding=((1, 1),),
            dimension_numbers=("NCH", "OIH", "NCH"))
        y = y + b[None, :, None]
        y = (y - mean[None, :, None]) / jnp.sqrt(var[None, :, None] + eps)
        y = y * gamma[None, :, None] + beta[None, :, None]
        return jnp.maximum(y, 0.0)

    h = conv_bn_relu(h, raw["w1"], raw["b1"], raw["bn1"])
    B, C, L = h.shape
    h = jnp.max(h[:, :, :2 * (L // 2)].reshape(B, C, L // 2, 2), axis=3)  # MaxPool1d(2)
    h = conv_bn_relu(h, raw["w2"], raw["b2"], raw["bn2"])
    h = conv_bn_relu(h, raw["w3"], raw["b3"], raw["bn3"])
    h = conv_bn_relu(h, raw["w4"], raw["b4"], raw["bn4"])
    f = h.reshape(B, -1)                             # torch.flatten(x, 1): C-major
    f = jnp.maximum(f @ raw["fc1_w"].T + raw["fc1_b"], 0.0)
    f = jnp.maximum(f @ raw["fc2_w"].T + raw["fc2_b"], 0.0)
    return jax.nn.sigmoid(f @ raw["fc3_w"].T + raw["fc3_b"])


if __name__ == "__main__":
    B, L = 2, 8                                      # batch=2, input_length=8 features
    key = jax.random.PRNGKey(0)
    kx, kp = jax.random.split(key)
    x = jax.random.normal(kx, (B, L), jnp.float32)

    kernel_params, raw = init_params(L, kp)

    out = jax.block_until_ready(forward(x, kernel_params))
    assert out.shape == (B, 1)

    ref = jax.block_until_ready(reference_forward(x, raw))
    # Matmul operands are bf16 (f32 accumulation), so tolerance is looser than pure f32.
    assert jnp.allclose(out, ref, atol=1e-2, rtol=1e-2), (out, ref)

    print("KERNEL_OK")
</pallas_src>

<mosaic_0001>
module attributes {stable_mosaic.version = 11 : i64} {
  func.func @cnn_forward_kernel(%arg0: i32, %arg1: memref<8x8x1xf32, #tpu.memory_space<vmem>>, %arg2: memref<3x1x32xf32, #tpu.memory_space<vmem>>, %arg3: memref<1x32xf32, #tpu.memory_space<vmem>>, %arg4: memref<1x32xf32, #tpu.memory_space<vmem>>, %arg5: memref<3x32x64xbf16, #tpu.memory_space<vmem>>, %arg6: memref<1x64xf32, #tpu.memory_space<vmem>>, %arg7: memref<1x64xf32, #tpu.memory_space<vmem>>, %arg8: memref<3x64x128xbf16, #tpu.memory_space<vmem>>, %arg9: memref<1x128xf32, #tpu.memory_space<vmem>>, %arg10: memref<1x128xf32, #tpu.memory_space<vmem>>, %arg11: memref<3x128x256xbf16, #tpu.memory_space<vmem>>, %arg12: memref<1x256xf32, #tpu.memory_space<vmem>>, %arg13: memref<1x256xf32, #tpu.memory_space<vmem>>, %arg14: memref<4x256x256xbf16, #tpu.memory_space<vmem>>, %arg15: memref<1x256xf32, #tpu.memory_space<vmem>>, %arg16: memref<256x128xbf16, #tpu.memory_space<vmem>>, %arg17: memref<1x128xf32, #tpu.memory_space<vmem>>, %arg18: memref<128x128xbf16, #tpu.memory_space<vmem>>, %arg19: memref<1x128xf32, #tpu.memory_space<vmem>>, %arg20: memref<8x128xf32, #tpu.memory_space<vmem>>) attributes {dimension_semantics = [#tpu.dimension_semantics<parallel>], iteration_bounds = array<i64: 1>, scalar_prefetch = 0 : i64, scratch_operands = 0 : i64, tpu.core_type = #tpu.core_type<tc>, window_params = [{transform_indices = @transform_0, window_bounds = array<i64: 8, 8, 1>}, {pipeline_mode = #tpu.pipeline_mode<synchronous>, transform_indices = @transform_1, window_bounds = array<i64: 3, 1, 32>}, {pipeline_mode = #tpu.pipeline_mode<synchronous>, transform_indices = @transform_2, window_bounds = array<i64: 1, 32>}, {pipeline_mode = #tpu.pipeline_mode<synchronous>, transform_indices = @transform_3, window_bounds = array<i64: 1, 32>}, {pipeline_mode = #tpu.pipeline_mode<synchronous>, transform_indices = @transform_4, window_bounds = array<i64: 3, 32, 64>}, {pipeline_mode = #tpu.pipeline_mode<synchronous>, transform_indices = @transform_5, window_bounds = array<i64: 1, 64>}, {pipeline_mode = #tpu.pipeline_mode<synchronous>, transform_indices = @transform_6, window_bounds = array<i64: 1, 64>}, {pipeline_mode = #tpu.pipeline_mode<synchronous>, transform_indices = @transform_7, window_bounds = array<i64: 3, 64, 128>}, {pipeline_mode = #tpu.pipeline_mode<synchronous>, transform_indices = @transform_8, window_bounds = array<i64: 1, 128>}, {pipeline_mode = #tpu.pipeline_mode<synchronous>, transform_indices = @transform_9, window_bounds = array<i64: 1, 128>}, {pipeline_mode = #tpu.pipeline_mode<synchronous>, transform_indices = @transform_10, window_bounds = array<i64: 3, 128, 256>}, {pipeline_mode = #tpu.pipeline_mode<synchronous>, transform_indices = @transform_11, window_bounds = array<i64: 1, 256>}, {pipeline_mode = #tpu.pipeline_mode<synchronous>, transform_indices = @transform_12, window_bounds = array<i64: 1, 256>}, {pipeline_mode = #tpu.pipeline_mode<synchronous>, transform_indices = @transform_13, window_bounds = array<i64: 4, 256, 256>}, {pipeline_mode = #tpu.pipeline_mode<synchronous>, transform_indices = @transform_14, window_bounds = array<i64: 1, 256>}, {pipeline_mode = #tpu.pipeline_mode<synchronous>, transform_indices = @transform_15, window_bounds = array<i64: 256, 128>}, {pipeline_mode = #tpu.pipeline_mode<synchronous>, transform_indices = @transform_16, window_bounds = array<i64: 1, 128>}, {pipeline_mode = #tpu.pipeline_mode<synchronous>, transform_indices = @transform_17, window_bounds = array<i64: 128, 128>}, {pipeline_mode = #tpu.pipeline_mode<synchronous>, transform_indices = @transform_18, window_bounds = array<i64: 1, 128>}, {transform_indices = @transform_19, window_bounds = array<i64: 8, 128>}]} {
    %c0 = arith.constant 0 : index
    %c0_0 = arith.constant 0 : index
    %c0_1 = arith.constant 0 : index
    %0 = vector.load %arg1[%c0, %c0_0, %c0_1] : memref<8x8x1xf32, #tpu.memory_space<vmem>>, vector<8x8x1xf32>
    %cst = arith.constant 0.000000e+00 : f32
    %1 = vector.broadcast %cst : f32 to vector<1x8x1xf32>
    %2 = tpu.concatenate %1, %0, %1 in 0 : vector<1x8x1xf32>, vector<8x8x1xf32>, vector<1x8x1xf32> -> vector<10x8x1xf32>
    %c0_2 = arith.constant 0 : index
    %c0_3 = arith.constant 0 : index
    %c0_4 = arith.constant 0 : index
    %3 = vector.load %arg2[%c0_2, %c0_3, %c0_4] : memref<3x1x32xf32, #tpu.memory_space<vmem>>, vector<3x1x32xf32>
    %4 = vector.extract_strided_slice %2 {offsets = [0, 0, 0], sizes = [8, 8, 1], strides = [1, 1, 1]} : vector<10x8x1xf32> to vector<8x8x1xf32>
    %5 = vector.extract_strided_slice %3 {offsets = [0, 0, 0], sizes = [1, 1, 32], strides = [1, 1, 1]} : vector<3x1x32xf32> to vector<1x1x32xf32>
    %6 = vector.shape_cast %5 : vector<1x1x32xf32> to vector<1x32xf32>
    %7 = vector.shape_cast %6 : vector<1x32xf32> to vector<1x1x32xf32>
    %8 = vector.broadcast %4 : vector<8x8x1xf32> to vector<8x8x32xf32>
    %9 = vector.broadcast %7 : vector<1x1x32xf32> to vector<8x8x32xf32>
    %10 = arith.mulf %8, %9 : vector<8x8x32xf32>
    %11 = vector.extract_strided_slice %2 {offsets = [1, 0, 0], sizes = [8, 8, 1], strides = [1, 1, 1]} : vector<10x8x1xf32> to vector<8x8x1xf32>
    %12 = vector.extract_strided_slice %3 {offsets = [1, 0, 0], sizes = [1, 1, 32], strides = [1, 1, 1]} : vector<3x1x32xf32> to vector<1x1x32xf32>
    %13 = vector.shape_cast %12 : vector<1x1x32xf32> to vector<1x32xf32>
    %14 = vector.shape_cast %13 : vector<1x32xf32> to vector<1x1x32xf32>
    %15 = vector.broadcast %11 : vector<8x8x1xf32> to vector<8x8x32xf32>
    %16 = vector.broadcast %14 : vector<1x1x32xf32> to vector<8x8x32xf32>
    %17 = arith.mulf %15, %16 : vector<8x8x32xf32>
    %18 = arith.addf %10, %17 : vector<8x8x32xf32>
    %19 = vector.extract_strided_slice %2 {offsets = [2, 0, 0], sizes = [8, 8, 1], strides = [1, 1, 1]} : vector<10x8x1xf32> to vector<8x8x1xf32>
    %20 = vector.extract_strided_slice %3 {offsets = [2, 0, 0], sizes = [1, 1, 32], strides = [1, 1, 1]} : vector<3x1x32xf32> to vector<1x1x32xf32>
    %21 = vector.shape_cast %20 : vector<1x1x32xf32> to vector<1x32xf32>
    %22 = vector.shape_cast %21 : vector<1x32xf32> to vector<1x1x32xf32>
    %23 = vector.broadcast %19 : vector<8x8x1xf32> to vector<8x8x32xf32>
    %24 = vector.broadcast %22 : vector<1x1x32xf32> to vector<8x8x32xf32>
    %25 = arith.mulf %23, %24 : vector<8x8x32xf32>
    %26 = arith.addf %18, %25 : vector<8x8x32xf32>
    %c0_5 = arith.constant 0 : index
    %c0_6 = arith.constant 0 : index
    %27 = vector.load %arg3[%c0_5, %c0_6] : memref<1x32xf32, #tpu.memory_space<vmem>>, vector<1x32xf32>
    %28 = vector.shape_cast %27 : vector<1x32xf32> to vector<1x1x32xf32>
    %29 = vector.broadcast %28 : vector<1x1x32xf32> to vector<8x8x32xf32>
    %30 = arith.mulf %26, %29 : vector<8x8x32xf32>
    %c0_7 = arith.constant 0 : index
    %c0_8 = arith.constant 0 : index
    %31 = vector.load %arg4[%c0_7, %c0_8] : memref<1x32xf32, #tpu.memory_space<vmem>>, vector<1x32xf32>
    %32 = vector.shape_cast %31 : vector<1x32xf32> to vector<1x1x32xf32>
    %33 = vector.broadcast %32 : vector<1x1x32xf32> to vector<8x8x32xf32>
    %34 = arith.addf %30, %33 : vector<8x8x32xf32>
    %cst_9 = arith.constant 0.000000e+00 : f32
    %35 = vector.broadcast %cst_9 : f32 to vector<8x8x32xf32>
    %36 = arith.maximumf %34, %35 : vector<8x8x32xf32>
    %37 = vector.shape_cast %36 : vector<8x8x32xf32> to vector<4x2x8x32xf32>
    %38 = vector.extract_strided_slice %37 {offsets = [0, 0, 0, 0], sizes = [4, 1, 8, 32], strides = [1, 1, 1, 1]} : vector<4x2x8x32xf32> to vector<4x1x8x32xf32>
    %39 = vector.shape_cast %38 : vector<4x1x8x32xf32> to vector<4x8x32xf32>
    %40 = vector.extract_strided_slice %37 {offsets = [0, 1, 0, 0], sizes = [4, 1, 8, 32], strides = [1, 1, 1, 1]} : vector<4x2x8x32xf32> to vector<4x1x8x32xf32>
    %41 = vector.shape_cast %40 : vector<4x1x8x32xf32> to vector<4x8x32xf32>
    %42 = arith.maximumf %39, %41 : vector<4x8x32xf32>
    %43 = arith.truncf %42 : vector<4x8x32xf32> to vector<4x8x32xbf16>
    %cst_10 = arith.constant 0.000000e+00 : bf16
    %44 = vector.broadcast %cst_10 : bf16 to vector<1x8x32xbf16>
    %45 = tpu.concatenate %44, %43, %44 in 0 : vector<1x8x32xbf16>, vector<4x8x32xbf16>, vector<1x8x32xbf16> -> vector<6x8x32xbf16>
    %46 = vector.extract_strided_slice %45 {offsets = [0, 0, 0], sizes = [4, 8, 32], strides = [1, 1, 1]} : vector<6x8x32xbf16> to vector<4x8x32xbf16>
    %47 = vector.shape_cast %46 : vector<4x8x32xbf16> to vector<32x32xbf16>
    %c0_11 = arith.constant 0 : index
    %c0_12 = arith.constant 0 : index
    %c0_13 = arith.constant 0 : index
    %48 = vector.load %arg5[%c0_11, %c0_12, %c0_13] : memref<3x32x64xbf16, #tpu.memory_space<vmem>>, vector<1x32x64xbf16>
    %49 = vector.shape_cast %48 : vector<1x32x64xbf16> to vector<32x64xbf16>
    %cst_14 = arith.constant dense<0.000000e+00> : vector<32x64xf32>
    %50 = tpu.matmul %47, %49, %cst_14 {dimension_numbers = #tpu.dot_dimension_numbers<[1], [0], [0], [1], [0, 0, 1, 1], [], []>} : vector<32x32xbf16>, vector<32x64xbf16>, vector<32x64xf32> -> vector<32x64xf32>
    %51 = vector.extract_strided_slice %45 {offsets = [1, 0, 0], sizes = [4, 8, 32], strides = [1, 1, 1]} : vector<6x8x32xbf16> to vector<4x8x32xbf16>
    %52 = vector.shape_cast %51 : vector<4x8x32xbf16> to vector<32x32xbf16>
    %c1 = arith.constant 1 : index
    %c0_15 = arith.constant 0 : index
    %c0_16 = arith.constant 0 : index
    %53 = vector.load %arg5[%c1, %c0_15, %c0_16] : memref<3x32x64xbf16, #tpu.memory_space<vmem>>, vector<1x32x64xbf16>
    %54 = vector.shape_cast %53 : vector<1x32x64xbf16> to vector<32x64xbf16>
    %cst_17 = arith.constant dense<0.000000e+00> : vector<32x64xf32>
    %55 = tpu.matmul %52, %54, %cst_17 {dimension_numbers = #tpu.dot_dimension_numbers<[1], [0], [0], [1], [0, 0, 1, 1], [], []>} : vector<32x32xbf16>, vector<32x64xbf16>, vector<32x64xf32> -> vector<32x64xf32>
    %56 = arith.addf %50, %55 : vector<32x64xf32>
    %57 = vector.extract_strided_slice %45 {offsets = [2, 0, 0], sizes = [4, 8, 32], strides = [1, 1, 1]} : vector<6x8x32xbf16> to vector<4x8x32xbf16>
    %58 = vector.shape_cast %57 : vector<4x8x32xbf16> to vector<32x32xbf16>
    %c2 = arith.constant 2 : index
    %c0_18 = arith.constant 0 : index
    %c0_19 = arith.constant 0 : index
    %59 = vector.load %arg5[%c2, %c0_18, %c0_19] : memref<3x32x64xbf16, #tpu.memory_space<vmem>>, vector<1x32x64xbf16>
    %60 = vector.shape_cast %59 : vector<1x32x64xbf16> to vector<32x64xbf16>
    %cst_20 = arith.constant dense<0.000000e+00> : vector<32x64xf32>
    %61 = tpu.matmul %58, %60, %cst_20 {dimension_numbers = #tpu.dot_dimension_numbers<[1], [0], [0], [1], [0, 0, 1, 1], [], []>} : vector<32x32xbf16>, vector<32x64xbf16>, vector<32x64xf32> -> vector<32x64xf32>
    %62 = arith.addf %56, %61 : vector<32x64xf32>
    %63 = vector.shape_cast %62 : vector<32x64xf32> to vector<4x8x64xf32>
    %c0_21 = arith.constant 0 : index
    %c0_22 = arith.constant 0 : index
    %64 = vector.load %arg6[%c0_21, %c0_22] : memref<1x64xf32, #tpu.memory_space<vmem>>, vector<1x64xf32>
    %65 = vector.shape_cast %64 : vector<1x64xf32> to vector<1x1x64xf32>
    %66 = vector.broadcast %65 : vector<1x1x64xf32> to vector<4x8x64xf32>
    %67 = arith.mulf %63, %66 : vector<4x8x64xf32>
    %c0_23 = arith.constant 0 : index
    %c0_24 = arith.constant 0 : index
    %68 = vector.load %arg7[%c0_23, %c0_24] : memref<1x64xf32, #tpu.memory_space<vmem>>, vector<1x64xf32>
    %69 = vector.shape_cast %68 : vector<1x64xf32> to vector<1x1x64xf32>
    %70 = vector.broadcast %69 : vector<1x1x64xf32> to vector<4x8x64xf32>
    %71 = arith.addf %67, %70 : vector<4x8x64xf32>
    %cst_25 = arith.constant 0.000000e+00 : f32
    %72 = vector.broadcast %cst_25 : f32 to vector<4x8x64xf32>
    %73 = arith.maximumf %71, %72 : vector<4x8x64xf32>
    %74 = arith.truncf %73 : vector<4x8x64xf32> to vector<4x8x64xbf16>
    %cst_26 = arith.constant 0.000000e+00 : bf16
    %75 = vector.broadcast %cst_26 : bf16 to vector<1x8x64xbf16>
    %76 = tpu.concatenate %75, %74, %75 in 0 : vector<1x8x64xbf16>, vector<4x8x64xbf16>, vector<1x8x64xbf16> -> vector<6x8x64xbf16>
    %77 = vector.extract_strided_slice %76 {offsets = [0, 0, 0], sizes = [4, 8, 64], strides = [1, 1, 1]} : vector<6x8x64xbf16> to vector<4x8x64xbf16>
    %78 = vector.shape_cast %77 : vector<4x8x64xbf16> to vector<32x64xbf16>
    %c0_27 = arith.constant 0 : index
    %c0_28 = arith.constant 0 : index
    %c0_29 = arith.constant 0 : index
    %79 = vector.load %arg8[%c0_27, %c0_28, %c0_29] : memref<3x64x128xbf16, #tpu.memory_space<vmem>>, vector<1x64x128xbf16>
    %80 = vector.shape_cast %79 : vector<1x64x128xbf16> to vector<64x128xbf16>
    %cst_30 = arith.constant dense<0.000000e+00> : vector<32x128xf32>
    %81 = tpu.matmul %78, %80, %cst_30 {dimension_numbers = #tpu.dot_dimension_numbers<[1], [0], [0], [1], [0, 0, 1, 1], [], []>} : vector<32x64xbf16>, vector<64x128xbf16>, vector<32x128xf32> -> vector<32x128xf32>
    %82 = vector.extract_strided_slice %76 {offsets = [1, 0, 0], sizes = [4, 8, 64], strides = [1, 1, 1]} : vector<6x8x64xbf16> to vector<4x8x64xbf16>
    %83 = vector.shape_cast %82 : vector<4x8x64xbf16> to vector<32x64xbf16>
    %c1_31 = arith.constant 1 : index
    %c0_32 = arith.constant 0 : index
    %c0_33 = arith.constant 0 : index
    %84 = vector.load %arg8[%c1_31, %c0_32, %c0_33] : memref<3x64x128xbf16, #tpu.memory_space<vmem>>, vector<1x64x128xbf16>
    %85 = vector.shape_cast %84 : vector<1x64x128xbf16> to vector<64x128xbf16>
    %cst_34 = arith.constant dense<0.000000e+00> : vector<32x128xf32>
    %86 = tpu.matmul %83, %85, %cst_34 {dimension_numbers = #tpu.dot_dimension_numbers<[1], [0], [0], [1], [0, 0, 1, 1], [], []>} : vector<32x64xbf16>, vector<64x128xbf16>, vector<32x128xf32> -> vector<32x128xf32>
    %87 = arith.addf %81, %86 : vector<32x128xf32>
    %88 = vector.extract_strided_slice %76 {offsets = [2, 0, 0], sizes = [4, 8, 64], strides = [1, 1, 1]} : vector<6x8x64xbf16> to vector<4x8x64xbf16>
    %89 = vector.shape_cast %88 : vector<4x8x64xbf16> to vector<32x64xbf16>
    %c2_35 = arith.constant 2 : index
    %c0_36 = arith.constant 0 : index
    %c0_37 = arith.constant 0 : index
    %90 = vector.load %arg8[%c2_35, %c0_36, %c0_37] : memref<3x64x128xbf16, #tpu.memory_space<vmem>>, vector<1x64x128xbf16>
    %91 = vector.shape_cast %90 : vector<1x64x128xbf16> to vector<64x128xbf16>
    %cst_38 = arith.constant dense<0.000000e+00> : vector<32x128xf32>
    %92 = tpu.matmul %89, %91, %cst_38 {dimension_numbers = #tpu.dot_dimension_numbers<[1], [0], [0], [1], [0, 0, 1, 1], [], []>} : vector<32x64xbf16>, vector<64x128xbf16>, vector<32x128xf32> -> vector<32x128xf32>
    %93 = arith.addf %87, %92 : vector<32x128xf32>
    %94 = vector.shape_cast %93 : vector<32x128xf32> to vector<4x8x128xf32>
    %c0_39 = arith.constant 0 : index
    %c0_40 = arith.constant 0 : index
    %95 = vector.load %arg9[%c0_39, %c0_40] : memref<1x128xf32, #tpu.memory_space<vmem>>, vector<1x128xf32>
    %96 = vector.shape_cast %95 : vector<1x128xf32> to vector<1x1x128xf32>
    %97 = vector.broadcast %96 : vector<1x1x128xf32> to vector<4x8x128xf32>
    %98 = arith.mulf %94, %97 : vector<4x8x128xf32>
    %c0_41 = arith.constant 0 : index
    %c0_42 = arith.constant 0 : index
    %99 = vector.load %arg10[%c0_41, %c0_42] : memref<1x128xf32, #tpu.memory_space<vmem>>, vector<1x128xf32>
    %100 = vector.shape_cast %99 : vector<1x128xf32> to vector<1x1x128xf32>
    %101 = vector.broadcast %100 : vector<1x1x128xf32> to vector<4x8x128xf32>
    %102 = arith.addf %98, %101 : vector<4x8x128xf32>
    %cst_43 = arith.constant 0.000000e+00 : f32
    %103 = vector.broadcast %cst_43 : f32 to vector<4x8x128xf32>
    %104 = arith.maximumf %102, %103 : vector<4x8x128xf32>
    %105 = arith.truncf %104 : vector<4x8x128xf32> to vector<4x8x128xbf16>
    %cst_44 = arith.constant 0.000000e+00 : bf16
    %106 = vector.broadcast %cst_44 : bf16 to vector<1x8x128xbf16>
    %107 = tpu.concatenate %106, %105, %106 in 0 : vector<1x8x128xbf16>, vector<4x8x128xbf16>, vector<1x8x128xbf16> -> vector<6x8x128xbf16>
    %108 = vector.extract_strided_slice %107 {offsets = [0, 0, 0], sizes = [4, 8, 128], strides = [1, 1, 1]} : vector<6x8x128xbf16> to vector<4x8x128xbf16>
    %109 = vector.shape_cast %108 : vector<4x8x128xbf16> to vector<32x128xbf16>
    %c0_45 = arith.constant 0 : index
    %c0_46 = arith.constant 0 : index
    %c0_47 = arith.constant 0 : index
    %110 = vector.load %arg11[%c0_45, %c0_46, %c0_47] : memref<3x128x256xbf16, #tpu.memory_space<vmem>>, vector<1x128x256xbf16>
    %111 = vector.shape_cast %110 : vector<1x128x256xbf16> to vector<128x256xbf16>
    %cst_48 = arith.constant dense<0.000000e+00> : vector<32x256xf32>
    %112 = tpu.matmul %109, %111, %cst_48 {dimension_numbers = #tpu.dot_dimension_numbers<[1], [0], [0], [1], [0, 0, 1, 1], [], []>} : vector<32x128xbf16>, vector<128x256xbf16>, vector<32x256xf32> -> vector<32x256xf32>
    %113 = vector.extract_strided_slice %107 {offsets = [1, 0, 0], sizes = [4, 8, 128], strides = [1, 1, 1]} : vector<6x8x128xbf16> to vector<4x8x128xbf16>
    %114 = vector.shape_cast %113 : vector<4x8x128xbf16> to vector<32x128xbf16>
    %c1_49 = arith.constant 1 : index
    %c0_50 = arith.constant 0 : index
    %c0_51 = arith.constant 0 : index
    %115 = vector.load %arg11[%c1_49, %c0_50, %c0_51] : memref<3x128x256xbf16, #tpu.memory_space<vmem>>, vector<1x128x256xbf16>
    %116 = vector.shape_cast %115 : vector<1x128x256xbf16> to vector<128x256xbf16>
    %cst_52 = arith.constant dense<0.000000e+00> : vector<32x256xf32>
    %117 = tpu.matmul %114, %116, %cst_52 {dimension_numbers = #tpu.dot_dimension_numbers<[1], [0], [0], [1], [0, 0, 1, 1], [], []>} : vector<32x128xbf16>, vector<128x256xbf16>, vector<32x256xf32> -> vector<32x256xf32>
    %118 = arith.addf %112, %117 : vector<32x256xf32>
    %119 = vector.extract_strided_slice %107 {offsets = [2, 0, 0], sizes = [4, 8, 128], strides = [1, 1, 1]} : vector<6x8x128xbf16> to vector<4x8x128xbf16>
    %120 = vector.shape_cast %119 : vector<4x8x128xbf16> to vector<32x128xbf16>
    %c2_53 = arith.constant 2 : index
    %c0_54 = arith.constant 0 : index
    %c0_55 = arith.constant 0 : index
    %121 = vector.load %arg11[%c2_53, %c0_54, %c0_55] : memref<3x128x256xbf16, #tpu.memory_space<vmem>>, vector<1x128x256xbf16>
    %122 = vector.shape_cast %121 : vector<1x128x256xbf16> to vector<128x256xbf16>
    %cst_56 = arith.constant dense<0.000000e+00> : vector<32x256xf32>
    %123 = tpu.matmul %120, %122, %cst_56 {dimension_numbers = #tpu.dot_dimension_numbers<[1], [0], [0], [1], [0, 0, 1, 1], [], []>} : vector<32x128xbf16>, vector<128x256xbf16>, vector<32x256xf32> -> vector<32x256xf32>
    %124 = arith.addf %118, %123 : vector<32x256xf32>
    %125 = vector.shape_cast %124 : vector<32x256xf32> to vector<4x8x256xf32>
    %c0_57 = arith.constant 0 : index
    %c0_58 = arith.constant 0 : index
    %126 = vector.load %arg12[%c0_57, %c0_58] : memref<1x256xf32, #tpu.memory_space<vmem>>, vector<1x256xf32>
    %127 = vector.shape_cast %126 : vector<1x256xf32> to vector<1x1x256xf32>
    %128 = vector.broadcast %127 : vector<1x1x256xf32> to vector<4x8x256xf32>
    %129 = arith.mulf %125, %128 : vector<4x8x256xf32>
    %c0_59 = arith.constant 0 : index
    %c0_60 = arith.constant 0 : index
    %130 = vector.load %arg13[%c0_59, %c0_60] : memref<1x256xf32, #tpu.memory_space<vmem>>, vector<1x256xf32>
    %131 = vector.shape_cast %130 : vector<1x256xf32> to vector<1x1x256xf32>
    %132 = vector.broadcast %131 : vector<1x1x256xf32> to vector<4x8x256xf32>
    %133 = arith.addf %129, %132 : vector<4x8x256xf32>
    %cst_61 = arith.constant 0.000000e+00 : f32
    %134 = vector.broadcast %cst_61 : f32 to vector<4x8x256xf32>
    %135 = arith.maximumf %133, %134 : vector<4x8x256xf32>
    %136 = arith.truncf %135 : vector<4x8x256xf32> to vector<4x8x256xbf16>
    %cst_62 = arith.constant 0.000000e+00 : f32
    %137 = vector.broadcast %cst_62 : f32 to vector<8x256xf32>
    %138 = vector.extract_strided_slice %136 {offsets = [0, 0, 0], sizes = [1, 8, 256], strides = [1, 1, 1]} : vector<4x8x256xbf16> to vector<1x8x256xbf16>
    %139 = vector.shape_cast %138 : vector<1x8x256xbf16> to vector<8x256xbf16>
    %c0_63 = arith.constant 0 : index
    %c0_64 = arith.constant 0 : index
    %c0_65 = arith.constant 0 : index
    %140 = vector.load %arg14[%c0_63, %c0_64, %c0_65] : memref<4x256x256xbf16, #tpu.memory_space<vmem>>, vector<1x256x256xbf16>
    %141 = vector.shape_cast %140 : vector<1x256x256xbf16> to vector<256x256xbf16>
    %cst_66 = arith.constant dense<0.000000e+00> : vector<8x256xf32>
    %142 = tpu.matmul %139, %141, %cst_66 {dimension_numbers = #tpu.dot_dimension_numbers<[1], [0], [0], [1], [0, 0, 1, 1], [], []>} : vector<8x256xbf16>, vector<256x256xbf16>, vector<8x256xf32> -> vector<8x256xf32>
    %143 = arith.addf %137, %142 : vector<8x256xf32>
    %144 = vector.extract_strided_slice %136 {offsets = [1, 0, 0], sizes = [1, 8, 256], strides = [1, 1, 1]} : vector<4x8x256xbf16> to vector<1x8x256xbf16>
    %145 = vector.shape_cast %144 : vector<1x8x256xbf16> to vector<8x256xbf16>
    %c1_67 = arith.constant 1 : index
    %c0_68 = arith.constant 0 : index
    %c0_69 = arith.constant 0 : index
    %146 = vector.load %arg14[%c1_67, %c0_68, %c0_69] : memref<4x256x256xbf16, #tpu.memory_space<vmem>>, vector<1x256x256xbf16>
    %147 = vector.shape_cast %146 : vector<1x256x256xbf16> to vector<256x256xbf16>
    %cst_70 = arith.constant dense<0.000000e+00> : vector<8x256xf32>
    %148 = tpu.matmul %145, %147, %cst_70 {dimension_numbers = #tpu.dot_dimension_numbers<[1], [0], [0], [1], [0, 0, 1, 1], [], []>} : vector<8x256xbf16>, vector<256x256xbf16>, vector<8x256xf32> -> vector<8x256xf32>
    %149 = arith.addf %143, %148 : vector<8x256xf32>
    %150 = vector.extract_strided_slice %136 {offsets = [2, 0, 0], sizes = [1, 8, 256], strides = [1, 1, 1]} : vector<4x8x256xbf16> to vector<1x8x256xbf16>
    %151 = vector.shape_cast %150 : vector<1x8x256xbf16> to vector<8x256xbf16>
    %c2_71 = arith.constant 2 : index
    %c0_72 = arith.constant 0 : index
    %c0_73 = arith.constant 0 : index
    %152 = vector.load %arg14[%c2_71, %c0_72, %c0_73] : memref<4x256x256xbf16, #tpu.memory_space<vmem>>, vector<1x256x256xbf16>
    %153 = vector.shape_cast %152 : vector<1x256x256xbf16> to vector<256x256xbf16>
    %cst_74 = arith.constant dense<0.000000e+00> : vector<8x256xf32>
    %154 = tpu.matmul %151, %153, %cst_74 {dimension_numbers = #tpu.dot_dimension_numbers<[1], [0], [0], [1], [0, 0, 1, 1], [], []>} : vector<8x256xbf16>, vector<256x256xbf16>, vector<8x256xf32> -> vector<8x256xf32>
    %155 = arith.addf %149, %154 : vector<8x256xf32>
    %156 = vector.extract_strided_slice %136 {offsets = [3, 0, 0], sizes = [1, 8, 256], strides = [1, 1, 1]} : vector<4x8x256xbf16> to vector<1x8x256xbf16>
    %157 = vector.shape_cast %156 : vector<1x8x256xbf16> to vector<8x256xbf16>
    %c3 = arith.constant 3 : index
    %c0_75 = arith.constant 0 : index
    %c0_76 = arith.constant 0 : index
    %158 = vector.load %arg14[%c3, %c0_75, %c0_76] : memref<4x256x256xbf16, #tpu.memory_space<vmem>>, vector<1x256x256xbf16>
    %159 = vector.shape_cast %158 : vector<1x256x256xbf16> to vector<256x256xbf16>
    %cst_77 = arith.constant dense<0.000000e+00> : vector<8x256xf32>
    %160 = tpu.matmul %157, %159, %cst_77 {dimension_numbers = #tpu.dot_dimension_numbers<[1], [0], [0], [1], [0, 0, 1, 1], [], []>} : vector<8x256xbf16>, vector<256x256xbf16>, vector<8x256xf32> -> vector<8x256xf32>
    %161 = arith.addf %155, %160 : vector<8x256xf32>
    %c0_78 = arith.constant 0 : index
    %c0_79 = arith.constant 0 : index
    %162 = vector.load %arg15[%c0_78, %c0_79] : memref<1x256xf32, #tpu.memory_space<vmem>>, vector<1x256xf32>
    %163 = vector.broadcast %162 : vector<1x256xf32> to vector<8x256xf32>
    %164 = arith.addf %161, %163 : vector<8x256xf32>
    %cst_80 = arith.constant 0.000000e+00 : f32
    %165 = vector.broadcast %cst_80 : f32 to vector<8x256xf32>
    %166 = arith.maximumf %164, %165 : vector<8x256xf32>
    %167 = arith.truncf %166 : vector<8x256xf32> to vector<8x256xbf16>
    %c0_81 = arith.constant 0 : index
    %c0_82 = arith.constant 0 : index
    %168 = vector.load %arg16[%c0_81, %c0_82] : memref<256x128xbf16, #tpu.memory_space<vmem>>, vector<256x128xbf16>
    %cst_83 = arith.constant dense<0.000000e+00> : vector<8x128xf32>
    %169 = tpu.matmul %167, %168, %cst_83 {dimension_numbers = #tpu.dot_dimension_numbers<[1], [0], [0], [1], [0, 0, 1, 1], [], []>} : vector<8x256xbf16>, vector<256x128xbf16>, vector<8x128xf32> -> vector<8x128xf32>
    %c0_84 = arith.constant 0 : index
    %c0_85 = arith.constant 0 : index
    %170 = vector.load %arg17[%c0_84, %c0_85] : memref<1x128xf32, #tpu.memory_space<vmem>>, vector<1x128xf32>
    %171 = vector.broadcast %170 : vector<1x128xf32> to vector<8x128xf32>
    %172 = arith.addf %169, %171 : vector<8x128xf32>
    %cst_86 = arith.constant 0.000000e+00 : f32
    %173 = vector.broadcast %cst_86 : f32 to vector<8x128xf32>
    %174 = arith.maximumf %172, %173 : vector<8x128xf32>
    %175 = arith.truncf %174 : vector<8x128xf32> to vector<8x128xbf16>
    %c0_87 = arith.constant 0 : index
    %c0_88 = arith.constant 0 : index
    %176 = vector.load %arg18[%c0_87, %c0_88] : memref<128x128xbf16, #tpu.memory_space<vmem>>, vector<128x128xbf16>
    %cst_89 = arith.constant dense<0.000000e+00> : vector<8x128xf32>
    %177 = tpu.matmul %175, %176, %cst_89 {dimension_numbers = #tpu.dot_dimension_numbers<[1], [0], [0], [1], [0, 0, 1, 1], [], []>} : vector<8x128xbf16>, vector<128x128xbf16>, vector<8x128xf32> -> vector<8x128xf32>
    %c0_90 = arith.constant 0 : index
    %c0_91 = arith.constant 0 : index
    %178 = vector.load %arg19[%c0_90, %c0_91] : memref<1x128xf32, #tpu.memory_space<vmem>>, vector<1x128xf32>
    %179 = vector.broadcast %178 : vector<1x128xf32> to vector<8x128xf32>
    %180 = arith.addf %177, %179 : vector<8x128xf32>
    %181 = arith.negf %180 : vector<8x128xf32>
    %182 = math.exp %181 : vector<8x128xf32>
    %cst_92 = arith.constant 1.000000e+00 : f32
    %183 = vector.broadcast %cst_92 : f32 to vector<8x128xf32>
    %184 = arith.addf %183, %182 : vector<8x128xf32>
    %185 = arith.divf %183, %184 : vector<8x128xf32>
    %c0_93 = arith.constant 0 : index
    %c0_94 = arith.constant 0 : index
    %186 = vector.load %arg20[%c0_93, %c0_94] : memref<8x128xf32, #tpu.memory_space<vmem>>, vector<8x128xf32>
    tpu.vector_store %arg20[%c0_93, %c0_94], %185 {strides = array<i32>} : memref<8x128xf32, #tpu.memory_space<vmem>>, vector<8x128xf32>,
    return
  }
  func.func @transform_0(%arg0: i32) -> (i32, i32, i32) {
    %c0_i32 = arith.constant 0 : i32
    %c0_i32_0 = arith.constant 0 : i32
    %c0_i32_1 = arith.constant 0 : i32
    return %c0_i32, %arg0, %c0_i32_0 : i32, i32, i32
  }
  func.func @transform_1(%arg0: i32) -> (i32, i32, i32) {
    %c0_i32 = arith.constant 0 : i32
    %c0_i32_0 = arith.constant 0 : i32
    %c0_i32_1 = arith.constant 0 : i32
    %c0_i32_2 = arith.constant 0 : i32
    return %c0_i32, %c0_i32_0, %c0_i32_1 : i32, i32, i32
  }
  func.func @transform_2(%arg0: i32) -> (i32, i32) {
    %c0_i32 = arith.constant 0 : i32
    %c0_i32_0 = arith.constant 0 : i32
    %c0_i32_1 = arith.constant 0 : i32
    return %c0_i32, %c0_i32_0 : i32, i32
  }
  func.func @transform_3(%arg0: i32) -> (i32, i32) {
    %c0_i32 = arith.constant 0 : i32
    %c0_i32_0 = arith.constant 0 : i32
    %c0_i32_1 = arith.constant 0 : i32
    return %c0_i32, %c0_i32_0 : i32, i32
  }
  func.func @transform_4(%arg0: i32) -> (i32, i32, i32) {
    %c0_i32 = arith.constant 0 : i32
    %c0_i32_0 = arith.constant 0 : i32
    %c0_i32_1 = arith.constant 0 : i32
    %c0_i32_2 = arith.constant 0 : i32
    return %c0_i32, %c0_i32_0, %c0_i32_1 : i32, i32, i32
  }
  func.func @transform_5(%arg0: i32) -> (i32, i32) {
    %c0_i32 = arith.constant 0 : i32
    %c0_i32_0 = arith.constant 0 : i32
    %c0_i32_1 = arith.constant 0 : i32
    return %c0_i32, %c0_i32_0 : i32, i32
  }
  func.func @transform_6(%arg0: i32) -> (i32, i32) {
    %c0_i32 = arith.constant 0 : i32
    %c0_i32_0 = arith.constant 0 : i32
    %c0_i32_1 = arith.constant 0 : i32
    return %c0_i32, %c0_i32_0 : i32, i32
  }
  func.func @transform_7(%arg0: i32) -> (i32, i32, i32) {
    %c0_i32 = arith.constant 0 : i32
    %c0_i32_0 = arith.constant 0 : i32
    %c0_i32_1 = arith.constant 0 : i32
    %c0_i32_2 = arith.constant 0 : i32
    return %c0_i32, %c0_i32_0, %c0_i32_1 : i32, i32, i32
  }
  func.func @transform_8(%arg0: i32) -> (i32, i32) {
    %c0_i32 = arith.constant 0 : i32
    %c0_i32_0 = arith.constant 0 : i32
    %c0_i32_1 = arith.constant 0 : i32
    return %c0_i32, %c0_i32_0 : i32, i32
  }
  func.func @transform_9(%arg0: i32) -> (i32, i32) {
    %c0_i32 = arith.constant 0 : i32
    %c0_i32_0 = arith.constant 0 : i32
    %c0_i32_1 = arith.constant 0 : i32
    return %c0_i32, %c0_i32_0 : i32, i32
  }
  func.func @transform_10(%arg0: i32) -> (i32, i32, i32) {
    %c0_i32 = arith.constant 0 : i32
    %c0_i32_0 = arith.constant 0 : i32
    %c0_i32_1 = arith.constant 0 : i32
    %c0_i32_2 = arith.constant 0 : i32
    return %c0_i32, %c0_i32_0, %c0_i32_1 : i32, i32, i32
  }
  func.func @transform_11(%arg0: i32) -> (i32, i32) {
    %c0_i32 = arith.constant 0 : i32
    %c0_i32_0 = arith.constant 0 : i32
    %c0_i32_1 = arith.constant 0 : i32
    return %c0_i32, %c0_i32_0 : i32, i32
  }
  func.func @transform_12(%arg0: i32) -> (i32, i32) {
    %c0_i32 = arith.constant 0 : i32
    %c0_i32_0 = arith.constant 0 : i32
    %c0_i32_1 = arith.constant 0 : i32
    return %c0_i32, %c0_i32_0 : i32, i32
  }
  func.func @transform_13(%arg0: i32) -> (i32, i32, i32) {
    %c0_i32 = arith.constant 0 : i32
    %c0_i32_0 = arith.constant 0 : i32
    %c0_i32_1 = arith.constant 0 : i32
    %c0_i32_2 = arith.constant 0 : i32
    return %c0_i32, %c0_i32_0, %c0_i32_1 : i32, i32, i32
  }
  func.func @transform_14(%arg0: i32) -> (i32, i32) {
    %c0_i32 = arith.constant 0 : i32
    %c0_i32_0 = arith.constant 0 : i32
    %c0_i32_1 = arith.constant 0 : i32
    return %c0_i32, %c0_i32_0 : i32, i32
  }
  func.func @transform_15(%arg0: i32) -> (i32, i32) {
    %c0_i32 = arith.constant 0 : i32
    %c0_i32_0 = arith.constant 0 : i32
    %c0_i32_1 = arith.constant 0 : i32
    return %c0_i32, %c0_i32_0 : i32, i32
  }
  func.func @transform_16(%arg0: i32) -> (i32, i32) {
    %c0_i32 = arith.constant 0 : i32
    %c0_i32_0 = arith.constant 0 : i32
    %c0_i32_1 = arith.constant 0 : i32
    return %c0_i32, %c0_i32_0 : i32, i32
  }
  func.func @transform_17(%arg0: i32) -> (i32, i32) {
    %c0_i32 = arith.constant 0 : i32
    %c0_i32_0 = arith.constant 0 : i32
    %c0_i32_1 = arith.constant 0 : i32
    return %c0_i32, %c0_i32_0 : i32, i32
  }
  func.func @transform_18(%arg0: i32) -> (i32, i32) {
    %c0_i32 = arith.constant 0 : i32
    %c0_i32_0 = arith.constant 0 : i32
    %c0_i32_1 = arith.constant 0 : i32
    return %c0_i32, %c0_i32_0 : i32, i32
  }
  func.func @transform_19(%arg0: i32) -> (i32, i32) {
    %c0_i32 = arith.constant 0 : i32
    %c0_i32_0 = arith.constant 0 : i32
    return %arg0, %c0_i32 : i32, i32
  }
}

module attributes {stable_mosaic.version = 11 : i64} {
  func.func @cnn_forward_kernel(%arg0: i32, %arg1: memref<8x8x1xf32, #tpu.memory_space<vmem>>, %arg2: memref<3x1x32xf32, #tpu.memory_space<vmem>>, %arg3: memref<1x32xf32, #tpu.memory_space<vmem>>, %arg4: memref<1x32xf32, #tpu.memory_space<vmem>>, %arg5: memref<3x32x64xbf16, #tpu.memory_space<vmem>>, %arg6: memref<1x64xf32, #tpu.memory_space<vmem>>, %arg7: memref<1x64xf32, #tpu.memory_space<vmem>>, %arg8: memref<3x64x128xbf16, #tpu.memory_space<vmem>>, %arg9: memref<1x128xf32, #tpu.memory_space<vmem>>, %arg10: memref<1x128xf32, #tpu.memory_space<vmem>>, %arg11: memref<3x128x256xbf16, #tpu.memory_space<vmem>>, %arg12: memref<1x256xf32, #tpu.memory_space<vmem>>, %arg13: memref<1x256xf32, #tpu.memory_space<vmem>>, %arg14: memref<4x256x256xbf16, #tpu.memory_space<vmem>>, %arg15: memref<1x256xf32, #tpu.memory_space<vmem>>, %arg16: memref<256x128xbf16, #tpu.memory_space<vmem>>, %arg17: memref<1x128xf32, #tpu.memory_space<vmem>>, %arg18: memref<128x128xbf16, #tpu.memory_space<vmem>>, %arg19: memref<1x128xf32, #tpu.memory_space<vmem>>, %arg20: memref<8x128xf32, #tpu.memory_space<vmem>>) attributes {dimension_semantics = [#tpu.dimension_semantics<parallel>], iteration_bounds = array<i64: 1>, scalar_prefetch = 0 : i64, scratch_operands = 0 : i64, tpu.core_type = #tpu.core_type<tc>, window_params = [{transform_indices = @transform_0, window_bounds = array<i64: 8, 8, 1>}, {pipeline_mode = #tpu.pipeline_mode<synchronous>, transform_indices = @transform_1, window_bounds = array<i64: 3, 1, 32>}, {pipeline_mode = #tpu.pipeline_mode<synchronous>, transform_indices = @transform_2, window_bounds = array<i64: 1, 32>}, {pipeline_mode = #tpu.pipeline_mode<synchronous>, transform_indices = @transform_3, window_bounds = array<i64: 1, 32>}, {pipeline_mode = #tpu.pipeline_mode<synchronous>, transform_indices = @transform_4, window_bounds = array<i64: 3, 32, 64>}, {pipeline_mode = #tpu.pipeline_mode<synchronous>, transform_indices = @transform_5, window_bounds = array<i64: 1, 64>}, {pipeline_mode = #tpu.pipeline_mode<synchronous>, transform_indices = @transform_6, window_bounds = array<i64: 1, 64>}, {pipeline_mode = #tpu.pipeline_mode<synchronous>, transform_indices = @transform_7, window_bounds = array<i64: 3, 64, 128>}, {pipeline_mode = #tpu.pipeline_mode<synchronous>, transform_indices = @transform_8, window_bounds = array<i64: 1, 128>}, {pipeline_mode = #tpu.pipeline_mode<synchronous>, transform_indices = @transform_9, window_bounds = array<i64: 1, 128>}, {pipeline_mode = #tpu.pipeline_mode<synchronous>, transform_indices = @transform_10, window_bounds = array<i64: 3, 128, 256>}, {pipeline_mode = #tpu.pipeline_mode<synchronous>, transform_indices = @transform_11, window_bounds = array<i64: 1, 256>}, {pipeline_mode = #tpu.pipeline_mode<synchronous>, transform_indices = @transform_12, window_bounds = array<i64: 1, 256>}, {pipeline_mode = #tpu.pipeline_mode<synchronous>, transform_indices = @transform_13, window_bounds = array<i64: 4, 256, 256>}, {pipeline_mode = #tpu.pipeline_mode<synchronous>, transform_indices = @transform_14, window_bounds = array<i64: 1, 256>}, {pipeline_mode = #tpu.pipeline_mode<synchronous>, transform_indices = @transform_15, window_bounds = array<i64: 256, 128>}, {pipeline_mode = #tpu.pipeline_mode<synchronous>, transform_indices = @transform_16, window_bounds = array<i64: 1, 128>}, {pipeline_mode = #tpu.pipeline_mode<synchronous>, transform_indices = @transform_17, window_bounds = array<i64: 128, 128>}, {pipeline_mode = #tpu.pipeline_mode<synchronous>, transform_indices = @transform_18, window_bounds = array<i64: 1, 128>}, {transform_indices = @transform_19, window_bounds = array<i64: 8, 128>}]} {
    %c0 = arith.constant 0 : index
    %c0_0 = arith.constant 0 : index
    %c0_1 = arith.constant 0 : index
    %0 = vector.load %arg1[%c0, %c0_0, %c0_1] : memref<8x8x1xf32, #tpu.memory_space<vmem>>, vector<8x8x1xf32>
    %cst = arith.constant 0.000000e+00 : f32
    %1 = vector.broadcast %cst : f32 to vector<1x8x1xf32>
    %2 = tpu.concatenate %1, %0, %1 in 0 : vector<1x8x1xf32>, vector<8x8x1xf32>, vector<1x8x1xf32> -> vector<10x8x1xf32>
    %c0_2 = arith.constant 0 : index
    %c0_3 = arith.constant 0 : index
    %c0_4 = arith.constant 0 : index
    %3 = vector.load %arg2[%c0_2, %c0_3, %c0_4] : memref<3x1x32xf32, #tpu.memory_space<vmem>>, vector<3x1x32xf32>
    %4 = vector.extract_strided_slice %2 {offsets = [0, 0, 0], sizes = [8, 8, 1], strides = [1, 1, 1]} : vector<10x8x1xf32> to vector<8x8x1xf32>
    %5 = vector.extract_strided_slice %3 {offsets = [0, 0, 0], sizes = [1, 1, 32], strides = [1, 1, 1]} : vector<3x1x32xf32> to vector<1x1x32xf32>
    %6 = vector.shape_cast %5 : vector<1x1x32xf32> to vector<1x32xf32>
    %7 = vector.shape_cast %6 : vector<1x32xf32> to vector<1x1x32xf32>
    %8 = vector.broadcast %4 : vector<8x8x1xf32> to vector<8x8x32xf32>
    %9 = vector.broadcast %7 : vector<1x1x32xf32> to vector<8x8x32xf32>
    %10 = arith.mulf %8, %9 : vector<8x8x32xf32>
    %11 = vector.extract_strided_slice %2 {offsets = [1, 0, 0], sizes = [8, 8, 1], strides = [1, 1, 1]} : vector<10x8x1xf32> to vector<8x8x1xf32>
    %12 = vector.extract_strided_slice %3 {offsets = [1, 0, 0], sizes = [1, 1, 32], strides = [1, 1, 1]} : vector<3x1x32xf32> to vector<1x1x32xf32>
    %13 = vector.shape_cast %12 : vector<1x1x32xf32> to vector<1x32xf32>
    %14 = vector.shape_cast %13 : vector<1x32xf32> to vector<1x1x32xf32>
    %15 = vector.broadcast %11 : vector<8x8x1xf32> to vector<8x8x32xf32>
    %16 = vector.broadcast %14 : vector<1x1x32xf32> to vector<8x8x32xf32>
    %17 = arith.mulf %15, %16 : vector<8x8x32xf32>
    %18 = arith.addf %10, %17 : vector<8x8x32xf32>
    %19 = vector.extract_strided_slice %2 {offsets = [2, 0, 0], sizes = [8, 8, 1], strides = [1, 1, 1]} : vector<10x8x1xf32> to vector<8x8x1xf32>
    %20 = vector.extract_strided_slice %3 {offsets = [2, 0, 0], sizes = [1, 1, 32], strides = [1, 1, 1]} : vector<3x1x32xf32> to vector<1x1x32xf32>
    %21 = vector.shape_cast %20 : vector<1x1x32xf32> to vector<1x32xf32>
    %22 = vector.shape_cast %21 : vector<1x32xf32> to vector<1x1x32xf32>
    %23 = vector.broadcast %19 : vector<8x8x1xf32> to vector<8x8x32xf32>
    %24 = vector.broadcast %22 : vector<1x1x32xf32> to vector<8x8x32xf32>
    %25 = arith.mulf %23, %24 : vector<8x8x32xf32>
    %26 = arith.addf %18, %25 : vector<8x8x32xf32>
    %c0_5 = arith.constant 0 : index
    %c0_6 = arith.constant 0 : index
    %27 = vector.load %arg3[%c0_5, %c0_6] : memref<1x32xf32, #tpu.memory_space<vmem>>, vector<1x32xf32>
    %28 = vector.shape_cast %27 : vector<1x32xf32> to vector<1x1x32xf32>
    %29 = vector.broadcast %28 : vector<1x1x32xf32> to vector<8x8x32xf32>
    %30 = arith.mulf %26, %29 : vector<8x8x32xf32>
    %c0_7 = arith.constant 0 : index
    %c0_8 = arith.constant 0 : index
    %31 = vector.load %arg4[%c0_7, %c0_8] : memref<1x32xf32, #tpu.memory_space<vmem>>, vector<1x32xf32>
    %32 = vector.shape_cast %31 : vector<1x32xf32> to vector<1x1x32xf32>
    %33 = vector.broadcast %32 : vector<1x1x32xf32> to vector<8x8x32xf32>
    %34 = arith.addf %30, %33 : vector<8x8x32xf32>
    %cst_9 = arith.constant 0.000000e+00 : f32
    %35 = vector.broadcast %cst_9 : f32 to vector<8x8x32xf32>
    %36 = arith.maximumf %34, %35 : vector<8x8x32xf32>
    %37 = vector.shape_cast %36 : vector<8x8x32xf32> to vector<4x2x8x32xf32>
    %38 = vector.extract_strided_slice %37 {offsets = [0, 0, 0, 0], sizes = [4, 1, 8, 32], strides = [1, 1, 1, 1]} : vector<4x2x8x32xf32> to vector<4x1x8x32xf32>
    %39 = vector.shape_cast %38 : vector<4x1x8x32xf32> to vector<4x8x32xf32>
    %40 = vector.extract_strided_slice %37 {offsets = [0, 1, 0, 0], sizes = [4, 1, 8, 32], strides = [1, 1, 1, 1]} : vector<4x2x8x32xf32> to vector<4x1x8x32xf32>
    %41 = vector.shape_cast %40 : vector<4x1x8x32xf32> to vector<4x8x32xf32>
    %42 = arith.maximumf %39, %41 : vector<4x8x32xf32>
    %43 = arith.truncf %42 : vector<4x8x32xf32> to vector<4x8x32xbf16>
    %cst_10 = arith.constant 0.000000e+00 : bf16
    %44 = vector.broadcast %cst_10 : bf16 to vector<1x8x32xbf16>
    %45 = tpu.concatenate %44, %43, %44 in 0 : vector<1x8x32xbf16>, vector<4x8x32xbf16>, vector<1x8x32xbf16> -> vector<6x8x32xbf16>
    %46 = vector.extract_strided_slice %45 {offsets = [0, 0, 0], sizes = [4, 8, 32], strides = [1, 1, 1]} : vector<6x8x32xbf16> to vector<4x8x32xbf16>
    %47 = vector.shape_cast %46 : vector<4x8x32xbf16> to vector<32x32xbf16>
    %c0_11 = arith.constant 0 : index
    %c0_12 = arith.constant 0 : index
    %c0_13 = arith.constant 0 : index
    %48 = vector.load %arg5[%c0_11, %c0_12, %c0_13] : memref<3x32x64xbf16, #tpu.memory_space<vmem>>, vector<1x32x64xbf16>
    %49 = vector.shape_cast %48 : vector<1x32x64xbf16> to vector<32x64xbf16>
    %cst_14 = arith.constant dense<0.000000e+00> : vector<32x64xf32>
    %50 = tpu.matmul %47, %49, %cst_14 {dimension_numbers = #tpu.dot_dimension_numbers<[1], [0], [0], [1], [0, 0, 1, 1], [], []>} : vector<32x32xbf16>, vector<32x64xbf16>, vector<32x64xf32> -> vector<32x64xf32>
    %51 = vector.extract_strided_slice %45 {offsets = [1, 0, 0], sizes = [4, 8, 32], strides = [1, 1, 1]} : vector<6x8x32xbf16> to vector<4x8x32xbf16>
    %52 = vector.shape_cast %51 : vector<4x8x32xbf16> to vector<32x32xbf16>
    %c1 = arith.constant 1 : index
    %c0_15 = arith.constant 0 : index
    %c0_16 = arith.constant 0 : index
    %53 = vector.load %arg5[%c1, %c0_15, %c0_16] : memref<3x32x64xbf16, #tpu.memory_space<vmem>>, vector<1x32x64xbf16>
    %54 = vector.shape_cast %53 : vector<1x32x64xbf16> to vector<32x64xbf16>
    %cst_17 = arith.constant dense<0.000000e+00> : vector<32x64xf32>
    %55 = tpu.matmul %52, %54, %cst_17 {dimension_numbers = #tpu.dot_dimension_numbers<[1], [0], [0], [1], [0, 0, 1, 1], [], []>} : vector<32x32xbf16>, vector<32x64xbf16>, vector<32x64xf32> -> vector<32x64xf32>
    %56 = arith.addf %50, %55 : vector<32x64xf32>
    %57 = vector.extract_strided_slice %45 {offsets = [2, 0, 0], sizes = [4, 8, 32], strides = [1, 1, 1]} : vector<6x8x32xbf16> to vector<4x8x32xbf16>
    %58 = vector.shape_cast %57 : vector<4x8x32xbf16> to vector<32x32xbf16>
    %c2 = arith.constant 2 : index
    %c0_18 = arith.constant 0 : index
    %c0_19 = arith.constant 0 : index
    %59 = vector.load %arg5[%c2, %c0_18, %c0_19] : memref<3x32x64xbf16, #tpu.memory_space<vmem>>, vector<1x32x64xbf16>
    %60 = vector.shape_cast %59 : vector<1x32x64xbf16> to vector<32x64xbf16>
    %cst_20 = arith.constant dense<0.000000e+00> : vector<32x64xf32>
    %61 = tpu.matmul %58, %60, %cst_20 {dimension_numbers = #tpu.dot_dimension_numbers<[1], [0], [0], [1], [0, 0, 1, 1], [], []>} : vector<32x32xbf16>, vector<32x64xbf16>, vector<32x64xf32> -> vector<32x64xf32>
    %62 = arith.addf %56, %61 : vector<32x64xf32>
    %63 = vector.shape_cast %62 : vector<32x64xf32> to vector<4x8x64xf32>
    %c0_21 = arith.constant 0 : index
    %c0_22 = arith.constant 0 : index
    %64 = vector.load %arg6[%c0_21, %c0_22] : memref<1x64xf32, #tpu.memory_space<vmem>>, vector<1x64xf32>
    %65 = vector.shape_cast %64 : vector<1x64xf32> to vector<1x1x64xf32>
    %66 = vector.broadcast %65 : vector<1x1x64xf32> to vector<4x8x64xf32>
    %67 = arith.mulf %63, %66 : vector<4x8x64xf32>
    %c0_23 = arith.constant 0 : index
    %c0_24 = arith.constant 0 : index
    %68 = vector.load %arg7[%c0_23, %c0_24] : memref<1x64xf32, #tpu.memory_space<vmem>>, vector<1x64xf32>
    %69 = vector.shape_cast %68 : vector<1x64xf32> to vector<1x1x64xf32>
    %70 = vector.broadcast %69 : vector<1x1x64xf32> to vector<4x8x64xf32>
    %71 = arith.addf %67, %70 : vector<4x8x64xf32>
    %cst_25 = arith.constant 0.000000e+00 : f32
    %72 = vector.broadcast %cst_25 : f32 to vector<4x8x64xf32>
    %73 = arith.maximumf %71, %72 : vector<4x8x64xf32>
    %74 = arith.truncf %73 : vector<4x8x64xf32> to vector<4x8x64xbf16>
    %cst_26 = arith.constant 0.000000e+00 : bf16
    %75 = vector.broadcast %cst_26 : bf16 to vector<1x8x64xbf16>
    %76 = tpu.concatenate %75, %74, %75 in 0 : vector<1x8x64xbf16>, vector<4x8x64xbf16>, vector<1x8x64xbf16> -> vector<6x8x64xbf16>
    %77 = vector.extract_strided_slice %76 {offsets = [0, 0, 0], sizes = [4, 8, 64], strides = [1, 1, 1]} : vector<6x8x64xbf16> to vector<4x8x64xbf16>
    %78 = vector.shape_cast %77 : vector<4x8x64xbf16> to vector<32x64xbf16>
    %c0_27 = arith.constant 0 : index
    %c0_28 = arith.constant 0 : index
    %c0_29 = arith.constant 0 : index
    %79 = vector.load %arg8[%c0_27, %c0_28, %c0_29] : memref<3x64x128xbf16, #tpu.memory_space<vmem>>, vector<1x64x128xbf16>
    %80 = vector.shape_cast %79 : vector<1x64x128xbf16> to vector<64x128xbf16>
    %cst_30 = arith.constant dense<0.000000e+00> : vector<32x128xf32>
    %81 = tpu.matmul %78, %80, %cst_30 {dimension_numbers = #tpu.dot_dimension_numbers<[1], [0], [0], [1], [0, 0, 1, 1], [], []>} : vector<32x64xbf16>, vector<64x128xbf16>, vector<32x128xf32> -> vector<32x128xf32>
    %82 = vector.extract_strided_slice %76 {offsets = [1, 0, 0], sizes = [4, 8, 64], strides = [1, 1, 1]} : vector<6x8x64xbf16> to vector<4x8x64xbf16>
    %83 = vector.shape_cast %82 : vector<4x8x64xbf16> to vector<32x64xbf16>
    %c1_31 = arith.constant 1 : index
    %c0_32 = arith.constant 0 : index
    %c0_33 = arith.constant 0 : index
    %84 = vector.load %arg8[%c1_31, %c0_32, %c0_33] : memref<3x64x128xbf16, #tpu.memory_space<vmem>>, vector<1x64x128xbf16>
    %85 = vector.shape_cast %84 : vector<1x64x128xbf16> to vector<64x128xbf16>
    %cst_34 = arith.constant dense<0.000000e+00> : vector<32x128xf32>
    %86 = tpu.matmul %83, %85, %cst_34 {dimension_numbers = #tpu.dot_dimension_numbers<[1], [0], [0], [1], [0, 0, 1, 1], [], []>} : vector<32x64xbf16>, vector<64x128xbf16>, vector<32x128xf32> -> vector<32x128xf32>
    %87 = arith.addf %81, %86 : vector<32x128xf32>
    %88 = vector.extract_strided_slice %76 {offsets = [2, 0, 0], sizes = [4, 8, 64], strides = [1, 1, 1]} : vector<6x8x64xbf16> to vector<4x8x64xbf16>
    %89 = vector.shape_cast %88 : vector<4x8x64xbf16> to vector<32x64xbf16>
    %c2_35 = arith.constant 2 : index
    %c0_36 = arith.constant 0 : index
    %c0_37 = arith.constant 0 : index
    %90 = vector.load %arg8[%c2_35, %c0_36, %c0_37] : memref<3x64x128xbf16, #tpu.memory_space<vmem>>, vector<1x64x128xbf16>
    %91 = vector.shape_cast %90 : vector<1x64x128xbf16> to vector<64x128xbf16>
    %cst_38 = arith.constant dense<0.000000e+00> : vector<32x128xf32>
    %92 = tpu.matmul %89, %91, %cst_38 {dimension_numbers = #tpu.dot_dimension_numbers<[1], [0], [0], [1], [0, 0, 1, 1], [], []>} : vector<32x64xbf16>, vector<64x128xbf16>, vector<32x128xf32> -> vector<32x128xf32>
    %93 = arith.addf %87, %92 : vector<32x128xf32>
    %94 = vector.shape_cast %93 : vector<32x128xf32> to vector<4x8x128xf32>
    %c0_39 = arith.constant 0 : index
    %c0_40 = arith.constant 0 : index
    %95 = vector.load %arg9[%c0_39, %c0_40] : memref<1x128xf32, #tpu.memory_space<vmem>>, vector<1x128xf32>
    %96 = vector.shape_cast %95 : vector<1x128xf32> to vector<1x1x128xf32>
    %97 = vector.broadcast %96 : vector<1x1x128xf32> to vector<4x8x128xf32>
    %98 = arith.mulf %94, %97 : vector<4x8x128xf32>
    %c0_41 = arith.constant 0 : index
    %c0_42 = arith.constant 0 : index
    %99 = vector.load %arg10[%c0_41, %c0_42] : memref<1x128xf32, #tpu.memory_space<vmem>>, vector<1x128xf32>
    %100 = vector.shape_cast %99 : vector<1x128xf32> to vector<1x1x128xf32>
    %101 = vector.broadcast %100 : vector<1x1x128xf32> to vector<4x8x128xf32>
    %102 = arith.addf %98, %101 : vector<4x8x128xf32>
    %cst_43 = arith.constant 0.000000e+00 : f32
    %103 = vector.broadcast %cst_43 : f32 to vector<4x8x128xf32>
    %104 = arith.maximumf %102, %103 : vector<4x8x128xf32>
    %105 = arith.truncf %104 : vector<4x8x128xf32> to vector<4x8x128xbf16>
    %cst_44 = arith.constant 0.000000e+00 : bf16
    %106 = vector.broadcast %cst_44 : bf16 to vector<1x8x128xbf16>
    %107 = tpu.concatenate %106, %105, %106 in 0 : vector<1x8x128xbf16>, vector<4x8x128xbf16>, vector<1x8x128xbf16> -> vector<6x8x128xbf16>
    %108 = vector.extract_strided_slice %107 {offsets = [0, 0, 0], sizes = [4, 8, 128], strides = [1, 1, 1]} : vector<6x8x128xbf16> to vector<4x8x128xbf16>
    %109 = vector.shape_cast %108 : vector<4x8x128xbf16> to vector<32x128xbf16>
    %c0_45 = arith.constant 0 : index
    %c0_46 = arith.constant 0 : index
    %c0_47 = arith.constant 0 : index
    %110 = vector.load %arg11[%c0_45, %c0_46, %c0_47] : memref<3x128x256xbf16, #tpu.memory_space<vmem>>, vector<1x128x256xbf16>
    %111 = vector.shape_cast %110 : vector<1x128x256xbf16> to vector<128x256xbf16>
    %cst_48 = arith.constant dense<0.000000e+00> : vector<32x256xf32>
    %112 = tpu.matmul %109, %111, %cst_48 {dimension_numbers = #tpu.dot_dimension_numbers<[1], [0], [0], [1], [0, 0, 1, 1], [], []>} : vector<32x128xbf16>, vector<128x256xbf16>, vector<32x256xf32> -> vector<32x256xf32>
    %113 = vector.extract_strided_slice %107 {offsets = [1, 0, 0], sizes = [4, 8, 128], strides = [1, 1, 1]} : vector<6x8x128xbf16> to vector<4x8x128xbf16>
    %114 = vector.shape_cast %113 : vector<4x8x128xbf16> to vector<32x128xbf16>
    %c1_49 = arith.constant 1 : index
    %c0_50 = arith.constant 0 : index
    %c0_51 = arith.constant 0 : index
    %115 = vector.load %arg11[%c1_49, %c0_50, %c0_51] : memref<3x128x256xbf16, #tpu.memory_space<vmem>>, vector<1x128x256xbf16>
    %116 = vector.shape_cast %115 : vector<1x128x256xbf16> to vector<128x256xbf16>
    %cst_52 = arith.constant dense<0.000000e+00> : vector<32x256xf32>
    %117 = tpu.matmul %114, %116, %cst_52 {dimension_numbers = #tpu.dot_dimension_numbers<[1], [0], [0], [1], [0, 0, 1, 1], [], []>} : vector<32x128xbf16>, vector<128x256xbf16>, vector<32x256xf32> -> vector<32x256xf32>
    %118 = arith.addf %112, %117 : vector<32x256xf32>
    %119 = vector.extract_strided_slice %107 {offsets = [2, 0, 0], sizes = [4, 8, 128], strides = [1, 1, 1]} : vector<6x8x128xbf16> to vector<4x8x128xbf16>
    %120 = vector.shape_cast %119 : vector<4x8x128xbf16> to vector<32x128xbf16>
    %c2_53 = arith.constant 2 : index
    %c0_54 = arith.constant 0 : index
    %c0_55 = arith.constant 0 : index
    %121 = vector.load %arg11[%c2_53, %c0_54, %c0_55] : memref<3x128x256xbf16, #tpu.memory_space<vmem>>, vector<1x128x256xbf16>
    %122 = vector.shape_cast %121 : vector<1x128x256xbf16> to vector<128x256xbf16>
    %cst_56 = arith.constant dense<0.000000e+00> : vector<32x256xf32>
    %123 = tpu.matmul %120, %122, %cst_56 {dimension_numbers = #tpu.dot_dimension_numbers<[1], [0], [0], [1], [0, 0, 1, 1], [], []>} : vector<32x128xbf16>, vector<128x256xbf16>, vector<32x256xf32> -> vector<32x256xf32>
    %124 = arith.addf %118, %123 : vector<32x256xf32>
    %125 = vector.shape_cast %124 : vector<32x256xf32> to vector<4x8x256xf32>
    %c0_57 = arith.constant 0 : index
    %c0_58 = arith.constant 0 : index
    %126 = vector.load %arg12[%c0_57, %c0_58] : memref<1x256xf32, #tpu.memory_space<vmem>>, vector<1x256xf32>
    %127 = vector.shape_cast %126 : vector<1x256xf32> to vector<1x1x256xf32>
    %128 = vector.broadcast %127 : vector<1x1x256xf32> to vector<4x8x256xf32>
    %129 = arith.mulf %125, %128 : vector<4x8x256xf32>
    %c0_59 = arith.constant 0 : index
    %c0_60 = arith.constant 0 : index
    %130 = vector.load %arg13[%c0_59, %c0_60] : memref<1x256xf32, #tpu.memory_space<vmem>>, vector<1x256xf32>
    %131 = vector.shape_cast %130 : vector<1x256xf32> to vector<1x1x256xf32>
    %132 = vector.broadcast %131 : vector<1x1x256xf32> to vector<4x8x256xf32>
    %133 = arith.addf %129, %132 : vector<4x8x256xf32>
    %cst_61 = arith.constant 0.000000e+00 : f32
    %134 = vector.broadcast %cst_61 : f32 to vector<4x8x256xf32>
    %135 = arith.maximumf %133, %134 : vector<4x8x256xf32>
    %136 = arith.truncf %135 : vector<4x8x256xf32> to vector<4x8x256xbf16>
    %cst_62 = arith.constant 0.000000e+00 : f32
    %137 = vector.broadcast %cst_62 : f32 to vector<8x256xf32>
    %138 = vector.extract_strided_slice %136 {offsets = [0, 0, 0], sizes = [1, 8, 256], strides = [1, 1, 1]} : vector<4x8x256xbf16> to vector<1x8x256xbf16>
    %139 = vector.shape_cast %138 : vector<1x8x256xbf16> to vector<8x256xbf16>
    %c0_63 = arith.constant 0 : index
    %c0_64 = arith.constant 0 : index
    %c0_65 = arith.constant 0 : index
    %140 = vector.load %arg14[%c0_63, %c0_64, %c0_65] : memref<4x256x256xbf16, #tpu.memory_space<vmem>>, vector<1x256x256xbf16>
    %141 = vector.shape_cast %140 : vector<1x256x256xbf16> to vector<256x256xbf16>
    %cst_66 = arith.constant dense<0.000000e+00> : vector<8x256xf32>
    %142 = tpu.matmul %139, %141, %cst_66 {dimension_numbers = #tpu.dot_dimension_numbers<[1], [0], [0], [1], [0, 0, 1, 1], [], []>} : vector<8x256xbf16>, vector<256x256xbf16>, vector<8x256xf32> -> vector<8x256xf32>
    %143 = arith.addf %137, %142 : vector<8x256xf32>
    %144 = vector.extract_strided_slice %136 {offsets = [1, 0, 0], sizes = [1, 8, 256], strides = [1, 1, 1]} : vector<4x8x256xbf16> to vector<1x8x256xbf16>
    %145 = vector.shape_cast %144 : vector<1x8x256xbf16> to vector<8x256xbf16>
    %c1_67 = arith.constant 1 : index
    %c0_68 = arith.constant 0 : index
    %c0_69 = arith.constant 0 : index
    %146 = vector.load %arg14[%c1_67, %c0_68, %c0_69] : memref<4x256x256xbf16, #tpu.memory_space<vmem>>, vector<1x256x256xbf16>
    %147 = vector.shape_cast %146 : vector<1x256x256xbf16> to vector<256x256xbf16>
    %cst_70 = arith.constant dense<0.000000e+00> : vector<8x256xf32>
    %148 = tpu.matmul %145, %147, %cst_70 {dimension_numbers = #tpu.dot_dimension_numbers<[1], [0], [0], [1], [0, 0, 1, 1], [], []>} : vector<8x256xbf16>, vector<256x256xbf16>, vector<8x256xf32> -> vector<8x256xf32>
    %149 = arith.addf %143, %148 : vector<8x256xf32>
    %150 = vector.extract_strided_slice %136 {offsets = [2, 0, 0], sizes = [1, 8, 256], strides = [1, 1, 1]} : vector<4x8x256xbf16> to vector<1x8x256xbf16>
    %151 = vector.shape_cast %150 : vector<1x8x256xbf16> to vector<8x256xbf16>
    %c2_71 = arith.constant 2 : index
    %c0_72 = arith.constant 0 : index
    %c0_73 = arith.constant 0 : index
    %152 = vector.load %arg14[%c2_71, %c0_72, %c0_73] : memref<4x256x256xbf16, #tpu.memory_space<vmem>>, vector<1x256x256xbf16>
    %153 = vector.shape_cast %152 : vector<1x256x256xbf16> to vector<256x256xbf16>
    %cst_74 = arith.constant dense<0.000000e+00> : vector<8x256xf32>
    %154 = tpu.matmul %151, %153, %cst_74 {dimension_numbers = #tpu.dot_dimension_numbers<[1], [0], [0], [1], [0, 0, 1, 1], [], []>} : vector<8x256xbf16>, vector<256x256xbf16>, vector<8x256xf32> -> vector<8x256xf32>
    %155 = arith.addf %149, %154 : vector<8x256xf32>
    %156 = vector.extract_strided_slice %136 {offsets = [3, 0, 0], sizes = [1, 8, 256], strides = [1, 1, 1]} : vector<4x8x256xbf16> to vector<1x8x256xbf16>
    %157 = vector.shape_cast %156 : vector<1x8x256xbf16> to vector<8x256xbf16>
    %c3 = arith.constant 3 : index
    %c0_75 = arith.constant 0 : index
    %c0_76 = arith.constant 0 : index
    %158 = vector.load %arg14[%c3, %c0_75, %c0_76] : memref<4x256x256xbf16, #tpu.memory_space<vmem>>, vector<1x256x256xbf16>
    %159 = vector.shape_cast %158 : vector<1x256x256xbf16> to vector<256x256xbf16>
    %cst_77 = arith.constant dense<0.000000e+00> : vector<8x256xf32>
    %160 = tpu.matmul %157, %159, %cst_77 {dimension_numbers = #tpu.dot_dimension_numbers<[1], [0], [0], [1], [0, 0, 1, 1], [], []>} : vector<8x256xbf16>, vector<256x256xbf16>, vector<8x256xf32> -> vector<8x256xf32>
    %161 = arith.addf %155, %160 : vector<8x256xf32>
    %c0_78 = arith.constant 0 : index
    %c0_79 = arith.constant 0 : index
    %162 = vector.load %arg15[%c0_78, %c0_79] : memref<1x256xf32, #tpu.memory_space<vmem>>, vector<1x256xf32>
    %163 = vector.broadcast %162 : vector<1x256xf32> to vector<8x256xf32>
    %164 = arith.addf %161, %163 : vector<8x256xf32>
    %cst_80 = arith.constant 0.000000e+00 : f32
    %165 = vector.broadcast %cst_80 : f32 to vector<8x256xf32>
    %166 = arith.maximumf %164, %165 : vector<8x256xf32>
    %167 = arith.truncf %166 : vector<8x256xf32> to vector<8x256xbf16>
    %c0_81 = arith.constant 0 : index
    %c0_82 = arith.constant 0 : index
    %168 = vector.load %arg16[%c0_81, %c0_82] : memref<256x128xbf16, #tpu.memory_space<vmem>>, vector<256x128xbf16>
    %cst_83 = arith.constant dense<0.000000e+00> : vector<8x128xf32>
    %169 = tpu.matmul %167, %168, %cst_83 {dimension_numbers = #tpu.dot_dimension_numbers<[1], [0], [0], [1], [0, 0, 1, 1], [], []>} : vector<8x256xbf16>, vector<256x128xbf16>, vector<8x128xf32> -> vector<8x128xf32>
    %c0_84 = arith.constant 0 : index
    %c0_85 = arith.constant 0 : index
    %170 = vector.load %arg17[%c0_84, %c0_85] : memref<1x128xf32, #tpu.memory_space<vmem>>, vector<1x128xf32>
    %171 = vector.broadcast %170 : vector<1x128xf32> to vector<8x128xf32>
    %172 = arith.addf %169, %171 : vector<8x128xf32>
    %cst_86 = arith.constant 0.000000e+00 : f32
    %173 = vector.broadcast %cst_86 : f32 to vector<8x128xf32>
    %174 = arith.maximumf %172, %173 : vector<8x128xf32>
    %175 = arith.truncf %174 : vector<8x128xf32> to vector<8x128xbf16>
    %c0_87 = arith.constant 0 : index
    %c0_88 = arith.constant 0 : index
    %176 = vector.load %arg18[%c0_87, %c0_88] : memref<128x128xbf16, #tpu.memory_space<vmem>>, vector<128x128xbf16>
    %cst_89 = arith.constant dense<0.000000e+00> : vector<8x128xf32>
    %177 = tpu.matmul %175, %176, %cst_89 {dimension_numbers = #tpu.dot_dimension_numbers<[1], [0], [0], [1], [0, 0, 1, 1], [], []>} : vector<8x128xbf16>, vector<128x128xbf16>, vector<8x128xf32> -> vector<8x128xf32>
    %c0_90 = arith.constant 0 : index
    %c0_91 = arith.constant 0 : index
    %178 = vector.load %arg19[%c0_90, %c0_91] : memref<1x128xf32, #tpu.memory_space<vmem>>, vector<1x128xf32>
    %179 = vector.broadcast %178 : vector<1x128xf32> to vector<8x128xf32>
    %180 = arith.addf %177, %179 : vector<8x128xf32>
    %181 = arith.negf %180 : vector<8x128xf32>
    %182 = math.exp %181 : vector<8x128xf32>
    %cst_92 = arith.constant 1.000000e+00 : f32
    %183 = vector.broadcast %cst_92 : f32 to vector<8x128xf32>
    %184 = arith.addf %183, %182 : vector<8x128xf32>
    %185 = arith.divf %183, %184 : vector<8x128xf32>
    %c0_93 = arith.constant 0 : index
    %c0_94 = arith.constant 0 : index
    %186 = vector.load %arg20[%c0_93, %c0_94] : memref<8x128xf32, #tpu.memory_space<vmem>>, vector<8x128xf32>
    tpu.vector_store %arg20[%c0_93, %c0_94], %185 {strides = array<i32>} : memref<8x128xf32, #tpu.memory_space<vmem>>, vector<8x128xf32>,
    return
  }
  func.func @transform_0(%arg0: i32) -> (i32, i32, i32) {
    %c0_i32 = arith.constant 0 : i32
    %c0_i32_0 = arith.constant 0 : i32
    %c0_i32_1 = arith.constant 0 : i32
    return %c0_i32, %arg0, %c0_i32_0 : i32, i32, i32
  }
  func.func @transform_1(%arg0: i32) -> (i32, i32, i32) {
    %c0_i32 = arith.constant 0 : i32
    %c0_i32_0 = arith.constant 0 : i32
    %c0_i32_1 = arith.constant 0 : i32
    %c0_i32_2 = arith.constant 0 : i32
    return %c0_i32, %c0_i32_0, %c0_i32_1 : i32, i32, i32
  }
  func.func @transform_2(%arg0: i32) -> (i32, i32) {
    %c0_i32 = arith.constant 0 : i32
    %c0_i32_0 = arith.constant 0 : i32
    %c0_i32_1 = arith.constant 0 : i32
    return %c0_i32, %c0_i32_0 : i32, i32
  }
  func.func @transform_3(%arg0: i32) -> (i32, i32) {
    %c0_i32 = arith.constant 0 : i32
    %c0_i32_0 = arith.constant 0 : i32
    %c0_i32_1 = arith.constant 0 : i32
    return %c0_i32, %c0_i32_0 : i32, i32
  }
  func.func @transform_4(%arg0: i32) -> (i32, i32, i32) {
    %c0_i32 = arith.constant 0 : i32
    %c0_i32_0 = arith.constant 0 : i32
    %c0_i32_1 = arith.constant 0 : i32
    %c0_i32_2 = arith.constant 0 : i32
    return %c0_i32, %c0_i32_0, %c0_i32_1 : i32, i32, i32
  }
  func.func @transform_5(%arg0: i32) -> (i32, i32) {
    %c0_i32 = arith.constant 0 : i32
    %c0_i32_0 = arith.constant 0 : i32
    %c0_i32_1 = arith.constant 0 : i32
    return %c0_i32, %c0_i32_0 : i32, i32
  }
  func.func @transform_6(%arg0: i32) -> (i32, i32) {
    %c0_i32 = arith.constant 0 : i32
    %c0_i32_0 = arith.constant 0 : i32
    %c0_i32_1 = arith.constant 0 : i32
    return %c0_i32, %c0_i32_0 : i32, i32
  }
  func.func @transform_7(%arg0: i32) -> (i32, i32, i32) {
    %c0_i32 = arith.constant 0 : i32
    %c0_i32_0 = arith.constant 0 : i32
    %c0_i32_1 = arith.constant 0 : i32
    %c0_i32_2 = arith.constant 0 : i32
    return %c0_i32, %c0_i32_0, %c0_i32_1 : i32, i32, i32
  }
  func.func @transform_8(%arg0: i32) -> (i32, i32) {
    %c0_i32 = arith.constant 0 : i32
    %c0_i32_0 = arith.constant 0 : i32
    %c0_i32_1 = arith.constant 0 : i32
    return %c0_i32, %c0_i32_0 : i32, i32
  }
  func.func @transform_9(%arg0: i32) -> (i32, i32) {
    %c0_i32 = arith.constant 0 : i32
    %c0_i32_0 = arith.constant 0 : i32
    %c0_i32_1 = arith.constant 0 : i32
    return %c0_i32, %c0_i32_0 : i32, i32
  }
  func.func @transform_10(%arg0: i32) -> (i32, i32, i32) {
    %c0_i32 = arith.constant 0 : i32
    %c0_i32_0 = arith.constant 0 : i32
    %c0_i32_1 = arith.constant 0 : i32
    %c0_i32_2 = arith.constant 0 : i32
    return %c0_i32, %c0_i32_0, %c0_i32_1 : i32, i32, i32
  }
  func.func @transform_11(%arg0: i32) -> (i32, i32) {
    %c0_i32 = arith.constant 0 : i32
    %c0_i32_0 = arith.constant 0 : i32
    %c0_i32_1 = arith.constant 0 : i32
    return %c0_i32, %c0_i32_0 : i32, i32
  }
  func.func @transform_12(%arg0: i32) -> (i32, i32) {
    %c0_i32 = arith.constant 0 : i32
    %c0_i32_0 = arith.constant 0 : i32
    %c0_i32_1 = arith.constant 0 : i32
    return %c0_i32, %c0_i32_0 : i32, i32
  }
  func.func @transform_13(%arg0: i32) -> (i32, i32, i32) {
    %c0_i32 = arith.constant 0 : i32
    %c0_i32_0 = arith.constant 0 : i32
    %c0_i32_1 = arith.constant 0 : i32
    %c0_i32_2 = arith.constant 0 : i32
    return %c0_i32, %c0_i32_0, %c0_i32_1 : i32, i32, i32
  }
  func.func @transform_14(%arg0: i32) -> (i32, i32) {
    %c0_i32 = arith.constant 0 : i32
    %c0_i32_0 = arith.constant 0 : i32
    %c0_i32_1 = arith.constant 0 : i32
    return %c0_i32, %c0_i32_0 : i32, i32
  }
  func.func @transform_15(%arg0: i32) -> (i32, i32) {
    %c0_i32 = arith.constant 0 : i32
    %c0_i32_0 = arith.constant 0 : i32
    %c0_i32_1 = arith.constant 0 : i32
    return %c0_i32, %c0_i32_0 : i32, i32
  }
  func.func @transform_16(%arg0: i32) -> (i32, i32) {
    %c0_i32 = arith.constant 0 : i32
    %c0_i32_0 = arith.constant 0 : i32
    %c0_i32_1 = arith.constant 0 : i32
    return %c0_i32, %c0_i32_0 : i32, i32
  }
  func.func @transform_17(%arg0: i32) -> (i32, i32) {
    %c0_i32 = arith.constant 0 : i32
    %c0_i32_0 = arith.constant 0 : i32
    %c0_i32_1 = arith.constant 0 : i32
    return %c0_i32, %c0_i32_0 : i32, i32
  }
  func.func @transform_18(%arg0: i32) -> (i32, i32) {
    %c0_i32 = arith.constant 0 : i32
    %c0_i32_0 = arith.constant 0 : i32
    %c0_i32_1 = arith.constant 0 : i32
    return %c0_i32, %c0_i32_0 : i32, i32
  }
  func.func @transform_19(%arg0: i32) -> (i32, i32) {
    %c0_i32 = arith.constant 0 : i32
    %c0_i32_0 = arith.constant 0 : i32
    return %arg0, %c0_i32 : i32, i32
  }
}

</mosaic_0001>

<llo_original>
// kernel: tpu_custom_call.1
$region0: #{tpu_custom_call.1}
  #allocation0 [shape = 'u32[]', space=smem, size = 0x4, offset = 0x4, fixed_abs, tag = 'smem constant byte address 0x4 - core index']
  #allocation1 [shape = 'u32[72,128]{1,0:T(1,128)}', space=vmem, size = 0x9000, scoped, tag = 'internal scratch']
  %s0 = inlined_call_operand.vmem [shape: f32[8,8,1], index: 0, kind: input, shape index: {}]
  %s1 = inlined_call_operand.vmem [shape: f32[3,1,32], index: 1, kind: input, shape index: {}]
  %s2 = inlined_call_operand.vmem [shape: f32[1,32], index: 2, kind: input, shape index: {}]
  %s3 = inlined_call_operand.vmem [shape: f32[1,32], index: 3, kind: input, shape index: {}]
  %s4 = inlined_call_operand.hbm [shape: bf16[3,32,64], index: 4, kind: input, shape index: {}]
  %s5 = inlined_call_operand.vmem [shape: f32[1,64], index: 5, kind: input, shape index: {}]
  %s6 = inlined_call_operand.vmem [shape: f32[1,64], index: 6, kind: input, shape index: {}]
  %s7 = inlined_call_operand.hbm [shape: bf16[3,64,128], index: 7, kind: input, shape index: {}]
  %s8 = inlined_call_operand.vmem [shape: f32[1,128], index: 8, kind: input, shape index: {}]
  %s9 = inlined_call_operand.vmem [shape: f32[1,128], index: 9, kind: input, shape index: {}]
  %s10 = inlined_call_operand.hbm [shape: bf16[3,128,256], index: 10, kind: input, shape index: {}]
  %s11 = inlined_call_operand.vmem [shape: f32[1,256], index: 11, kind: input, shape index: {}]
  %s12 = inlined_call_operand.vmem [shape: f32[1,256], index: 12, kind: input, shape index: {}]
  %s13 = inlined_call_operand.hbm [shape: bf16[4,256,256], index: 13, kind: input, shape index: {}]
  %s14 = inlined_call_operand.vmem [shape: f32[1,256], index: 14, kind: input, shape index: {}]
  %s15 = inlined_call_operand.hbm [shape: bf16[256,128], index: 15, kind: input, shape index: {}]
  %s16 = inlined_call_operand.vmem [shape: f32[1,128], index: 16, kind: input, shape index: {}]
  %s17 = inlined_call_operand.vmem [shape: bf16[128,128], index: 17, kind: input, shape index: {}]
  %s18 = inlined_call_operand.vmem [shape: f32[1,128], index: 18, kind: input, shape index: {}]
  %s19 = inlined_call_operand.hbm [shape: f32[8,128], index: 19, kind: output, shape index: {}]
  %s20 = sld [smem:[#allocation0]]
  $region106: #{tpu_custom_call.1} parent=0
    _
  %s22 = ssub.s32 1, %s20
  %s23 = scalar_select 0, %s22, %s20
  $region1: #{tpu_custom_call.1} parent=0
    #allocation2 [shape = 'u8[24576]{0}', space=vmem, size = 0x6000, scoped, tag = 'input window, operand 4, single buffered']
    #allocation3 [shape = 's32[1]{0}', space=sflag, size = 0x4, scoped, tag = 'scoped memory for tpu_custom_call.1']
    #allocation4 [shape = 's32[1]{0}', space=sflag, size = 0x4, scoped, tag = 'scoped memory for tpu_custom_call.1']
    #allocation5 [shape = 'u8[49152]{0}', space=vmem, size = 0xc000, scoped, tag = 'input window, operand 7, single buffered']
    #allocation6 [shape = 's32[1]{0}', space=sflag, size = 0x4, scoped, tag = 'scoped memory for tpu_custom_call.1']
    #allocation7 [shape = 'u8[196608]{0}', space=vmem, size = 0x30000, scoped, tag = 'input window, operand 10, single buffered']
    #allocation8 [shape = 'u8[524288]{0}', space=vmem, size = 0x80000, scoped, tag = 'input window, operand 13, single buffered']
    #allocation9 [shape = 's32[1]{0}', space=sflag, size = 0x4, scoped, tag = 'scoped memory for tpu_custom_call.1']
    #allocation10 [shape = 'u8[65536]{0}', space=vmem, size = 0x10000, scoped, tag = 'input window, operand 15, single buffered']
    #allocation11 [shape = 'u8[4096]{0}', space=vmem, size = 0x1000, scoped, tag = 'output window, operand 0, single buffered']
    %24 = vsyncpa [#allocation3], 0
    %25 = vsyncpa [#allocation6], 0
    %26 = vsyncpa [#allocation9], 0
    %27 = vsyncpa [#allocation4], 0
    // Predicated region
    $region2: #{tpu_custom_call.1} parent=1 // pred_check
      _
    $region3: #{tpu_custom_call.1} parent=1 // pred_check_branch
      %29 = sbr.rel (0) target = $region5
    $region4: #{tpu_custom_call.1} parent=1 // pred_region
      _
    $region5: #{tpu_custom_call.1} parent=1 // pred_fallthru
      _
    // Predicated region
    $region6: #{tpu_custom_call.1} parent=1 // pred_check
      _
    $region7: #{tpu_custom_call.1} parent=1 // pred_check_branch
      %31 = sbr.rel (0) target = $region9
    $region8: #{tpu_custom_call.1} parent=1 // pred_region
      _
    $region9: #{tpu_custom_call.1} parent=1 // pred_fallthru
      _
    // Predicated region
    $region10: #{tpu_custom_call.1} parent=1 // pred_check
      _
    $region11: #{tpu_custom_call.1} parent=1 // pred_check_branch
      %33 = sbr.rel (0) target = $region13
    $region12: #{tpu_custom_call.1} parent=1 // pred_region
      _
    $region13: #{tpu_custom_call.1} parent=1 // pred_fallthru
      _
    // Predicated region
    $region14: #{tpu_custom_call.1} parent=1 // pred_check
      _
    $region15: #{tpu_custom_call.1} parent=1 // pred_check_branch
      %35 = sbr.rel (0) target = $region17
    $region16: #{tpu_custom_call.1} parent=1 // pred_region
      _
    $region17: #{tpu_custom_call.1} parent=1 // pred_fallthru
      _
    // Predicated region
    $region18: #{tpu_custom_call.1} parent=1 // pred_check
      _
    $region19: #{tpu_custom_call.1} parent=1 // pred_check_branch
      %37 = sbr.rel (0) target = $region21
    $region20: #{tpu_custom_call.1} parent=1 // pred_region
      %39 = vsyncadd [#allocation3], 0
      %s40 = sshll.u32 %s4, 4
      %s41 = int_to_ptr.hbm [resolvable:$true] %s40
      %s42 = sshll.u32 [#allocation2], 4
      %s43 = int_to_ptr.vmem [resolvable:$true] %s42
      %48 = dma.hbm_to_vmem [thread:$0]  %s41, 768, %s43, [#allocation3], 64, 64, 4
    $region21: #{tpu_custom_call.1} parent=1 // pred_fallthru
      _
    // Predicated region
    $region22: #{tpu_custom_call.1} parent=1 // pred_check
      _
    $region23: #{tpu_custom_call.1} parent=1 // pred_check_branch
      %50 = sbr.rel (0) target = $region25
    $region24: #{tpu_custom_call.1} parent=1 // pred_region
      _
    $region25: #{tpu_custom_call.1} parent=1 // pred_fallthru
      _
    // Predicated region
    $region26: #{tpu_custom_call.1} parent=1 // pred_check
      _
    $region27: #{tpu_custom_call.1} parent=1 // pred_check_branch
      %52 = sbr.rel (0) target = $region29
    $region28: #{tpu_custom_call.1} parent=1 // pred_region
      _
    $region29: #{tpu_custom_call.1} parent=1 // pred_fallthru
      _
    // Predicated region
    $region30: #{tpu_custom_call.1} parent=1 // pred_check
      _
    $region31: #{tpu_custom_call.1} parent=1 // pred_check_branch
      %54 = sbr.rel (0) target = $region33
    $region32: #{tpu_custom_call.1} parent=1 // pred_region
      %56 = vsyncadd [#allocation6], 0
      %s57 = sshll.u32 %s7, 4
      %s58 = int_to_ptr.hbm [resolvable:$true] %s57
      %s59 = sshll.u32 [#allocation5], 4
      %s60 = int_to_ptr.vmem [resolvable:$true] %s59
      %65 = dma.hbm_to_vmem [thread:$0]  %s58, 1536, %s60, [#allocation6], 64, 64, 4
    $region33: #{tpu_custom_call.1} parent=1 // pred_fallthru
      _
    // Predicated region
    $region34: #{tpu_custom_call.1} parent=1 // pred_check
      _
    $region35: #{tpu_custom_call.1} parent=1 // pred_check_branch
      %67 = sbr.rel (0) target = $region37
    $region36: #{tpu_custom_call.1} parent=1 // pred_region
      _
    $region37: #{tpu_custom_call.1} parent=1 // pred_fallthru
      _
    // Predicated region
    $region38: #{tpu_custom_call.1} parent=1 // pred_check
      _
    $region39: #{tpu_custom_call.1} parent=1 // pred_check_branch
      %69 = sbr.rel (0) target = $region41
    $region40: #{tpu_custom_call.1} parent=1 // pred_region
      _
    $region41: #{tpu_custom_call.1} parent=1 // pred_fallthru
      _
    // Predicated region
    $region42: #{tpu_custom_call.1} parent=1 // pred_check
      _
    $region43: #{tpu_custom_call.1} parent=1 // pred_check_branch
      %71 = sbr.rel (0) target = $region45
    $region44: #{tpu_custom_call.1} parent=1 // pred_region
      %73 = vsyncadd [#allocation6], 0
      %s74 = sshll.u32 %s10, 4
      %s75 = int_to_ptr.hbm [resolvable:$true] %s74
      %s76 = sshll.u32 [#allocation7], 4
      %s77 = int_to_ptr.vmem [resolvable:$true] %s76
      %82 = dma.hbm_to_vmem [thread:$0]  %s75, 6144, %s77, [#allocation6], 128, 128, 8
    $region45: #{tpu_custom_call.1} parent=1 // pred_fallthru
      _
    // Predicated region
    $region46: #{tpu_custom_call.1} parent=1 // pred_check
      _
    $region47: #{tpu_custom_call.1} parent=1 // pred_check_branch
      %84 = sbr.rel (0) target = $region49
    $region48: #{tpu_custom_call.1} parent=1 // pred_region
      _
    $region49: #{tpu_custom_call.1} parent=1 // pred_fallthru
      _
    // Predicated region
    $region50: #{tpu_custom_call.1} parent=1 // pred_check
      _
    $region51: #{tpu_custom_call.1} parent=1 // pred_check_branch
      %86 = sbr.rel (0) target = $region53
    $region52: #{tpu_custom_call.1} parent=1 // pred_region
      _
    $region53: #{tpu_custom_call.1} parent=1 // pred_fallthru
      _
    // Predicated region
    $region54: #{tpu_custom_call.1} parent=1 // pred_check
      _
    $region55: #{tpu_custom_call.1} parent=1 // pred_check_branch
      %88 = sbr.rel (0) target = $region57
    $region56: #{tpu_custom_call.1} parent=1 // pred_region
      %90 = vsyncadd [#allocation9], 0
      %s91 = sshll.u32 %s13, 4
      %s92 = int_to_ptr.hbm [resolvable:$true] %s91
      %s93 = sshll.u32 [#allocation8], 4
      %s94 = int_to_ptr.vmem [resolvable:$true] %s93
      %99 = dma.hbm_to_vmem [thread:$0]  %s92, 16384, %s94, [#allocation9], 128, 128, 8
    $region57: #{tpu_custom_call.1} parent=1 // pred_fallthru
      _
    // Predicated region
    $region58: #{tpu_custom_call.1} parent=1 // pred_check
      _
    $region59: #{tpu_custom_call.1} parent=1 // pred_check_branch
      %101 = sbr.rel (0) target = $region61
    $region60: #{tpu_custom_call.1} parent=1 // pred_region
      _
    $region61: #{tpu_custom_call.1} parent=1 // pred_fallthru
      _
    // Predicated region
    $region62: #{tpu_custom_call.1} parent=1 // pred_check
      _
    $region63: #{tpu_custom_call.1} parent=1 // pred_check_branch
      %103 = sbr.rel (0) target = $region65
    $region64: #{tpu_custom_call.1} parent=1 // pred_region
      %105 = vsyncadd [#allocation9], 0
      %s106 = sshll.u32 %s15, 4
      %s107 = int_to_ptr.hbm [resolvable:$true] %s106
      %s108 = sshll.u32 [#allocation10], 4
      %s109 = int_to_ptr.vmem [resolvable:$true] %s108
      %114 = dma.hbm_to_vmem [thread:$0]  %s107, 2048, %s109, [#allocation9], 64, 64, 4
    $region65: #{tpu_custom_call.1} parent=1 // pred_fallthru
      _
    // Predicated region
    $region66: #{tpu_custom_call.1} parent=1 // pred_check
      _
    $region67: #{tpu_custom_call.1} parent=1 // pred_check_branch
      %116 = sbr.rel (0) target = $region69
    $region68: #{tpu_custom_call.1} parent=1 // pred_region
      _
    $region69: #{tpu_custom_call.1} parent=1 // pred_fallthru
      _
    // Predicated region
    $region70: #{tpu_custom_call.1} parent=1 // pred_check
      _
    $region71: #{tpu_custom_call.1} parent=1 // pred_check_branch
      %118 = sbr.rel (0) target = $region73
    $region72: #{tpu_custom_call.1} parent=1 // pred_region
      _
    $region73: #{tpu_custom_call.1} parent=1 // pred_fallthru
      _
    // Predicated region
    $region74: #{tpu_custom_call.1} parent=1 // pred_check
      _
    $region75: #{tpu_custom_call.1} parent=1 // pred_check_branch
      %120 = sbr.rel (0) target = $region77
    $region76: #{tpu_custom_call.1} parent=1 // pred_region
      _
    $region77: #{tpu_custom_call.1} parent=1 // pred_fallthru
      _
    // Predicated region
    $region78: #{tpu_custom_call.1} parent=1 // pred_check
      _
    $region79: #{tpu_custom_call.1} parent=1 // pred_check_branch
      %122 = sbr.rel (0) target = $region81
    $region80: #{tpu_custom_call.1} parent=1 // pred_region
      %124 = dma.done [#allocation3], 768
    $region81: #{tpu_custom_call.1} parent=1 // pred_fallthru
      _
    // Predicated region
    $region82: #{tpu_custom_call.1} parent=1 // pred_check
      _
    $region83: #{tpu_custom_call.1} parent=1 // pred_check_branch
      %126 = sbr.rel (0) target = $region85
    $region84: #{tpu_custom_call.1} parent=1 // pred_region
      %128 = dma.done [#allocation6], 1536
    $region85: #{tpu_custom_call.1} parent=1 // pred_fallthru
      _
    // Predicated region
    $region86: #{tpu_custom_call.1} parent=1 // pred_check
      _
    $region87: #{tpu_custom_call.1} parent=1 // pred_check_branch
      %130 = sbr.rel (0) target = $region89
    $region88: #{tpu_custom_call.1} parent=1 // pred_region
      %132 = dma.done [#allocation6], 6144
    $region89: #{tpu_custom_call.1} parent=1 // pred_fallthru
      _
    // Predicated region
    $region90: #{tpu_custom_call.1} parent=1 // pred_check
      _
    $region91: #{tpu_custom_call.1} parent=1 // pred_check_branch
      %134 = sbr.rel (0) target = $region93
    $region92: #{tpu_custom_call.1} parent=1 // pred_region
      %136 = dma.done [#allocation9], 16384
    $region93: #{tpu_custom_call.1} parent=1 // pred_fallthru
      _
    // Predicated region
    $region94: #{tpu_custom_call.1} parent=1 // pred_check
      _
    $region95: #{tpu_custom_call.1} parent=1 // pred_check_branch
      %138 = sbr.rel (0) target = $region97
    $region96: #{tpu_custom_call.1} parent=1 // pred_region
      %140 = dma.done [#allocation9], 2048
    $region97: #{tpu_custom_call.1} parent=1 // pred_fallthru
      _
    %v142 = vld [vmem:[%s0] sm:$0xff]
    %v143 = vld [vmem:[%s0 + $0x8] sm:$0xff]
    %v144 = vld [vmem:[%s0 + $0x10] sm:$0xff]
    %v145 = vld [vmem:[%s0 + $0x18] sm:$0xff]
    %v146 = vld [vmem:[%s0 + $0x20] sm:$0xff]
    %v147 = vld [vmem:[%s0 + $0x28] sm:$0xff]
    %v148 = vld [vmem:[%s0 + $0x30] sm:$0xff]
    %v149 = vld [vmem:[%s0 + $0x38] sm:$0xff]
    %v150 = vld [vmem:[%s1] sm:$0x1]
    %v151 = vld [vmem:[%s1 + $0x1] sm:$0x1]
    %v152 = vld [vmem:[%s1 + $0x2] sm:$0x1]
    %154 = vset.pattern.permute.xlu0 0
    %155 = vperm.xlu0 %154, 0.0
    %v156 = vpop.permute.xlu0 %155
    %159 = vset.pattern.permute.xlu0 0
    %160 = vperm.xlu0 %159, %v142
    %v161 = vpop.permute.xlu0 %160
    %164 = vset.pattern.permute.xlu0 0
    %165 = vperm.xlu0 %164, %v143
    %v166 = vpop.permute.xlu0 %165
    %169 = vset.pattern.permute.xlu0 0
    %170 = vperm.xlu0 %169, %v144
    %v171 = vpop.permute.xlu0 %170
    %174 = vset.pattern.permute.xlu0 0
    %175 = vperm.xlu0 %174, %v145
    %v176 = vpop.permute.xlu0 %175
    %179 = vset.pattern.permute.xlu0 0
    %180 = vperm.xlu0 %179, %v146
    %v181 = vpop.permute.xlu0 %180
    %184 = vset.pattern.permute.xlu0 0
    %185 = vperm.xlu0 %184, %v147
    %v186 = vpop.permute.xlu0 %185
    %189 = vset.pattern.permute.xlu0 0
    %190 = vperm.xlu0 %189, %v148
    %v191 = vpop.permute.xlu0 %190
    %v194 = vperm.slane %v150, 0
    %v196 = vmul.f32 %v156, %v194
    %v197 = vmul.f32 %v161, %v194
    %v198 = vmul.f32 %v166, %v194
    %v199 = vmul.f32 %v171, %v194
    %v200 = vmul.f32 %v176, %v194
    %v201 = vmul.f32 %v181, %v194
    %v202 = vmul.f32 %v186, %v194
    %v203 = vmul.f32 %v191, %v194
    %205 = vset.pattern.permute.xlu0 0
    %206 = vperm.xlu0 %205, %v149
    %v207 = vpop.permute.xlu0 %206
    %v210 = vperm.slane %v151, 0
    %v212 = vmul.f32 %v161, %v210
    %v213 = vmul.f32 %v166, %v210
    %v214 = vmul.f32 %v171, %v210
    %v215 = vmul.f32 %v176, %v210
    %v216 = vmul.f32 %v181, %v210
    %v217 = vmul.f32 %v186, %v210
    %v218 = vmul.f32 %v191, %v210
    %v219 = vmul.f32 %v207, %v210
    %v220 = vadd.f32 %v196, %v212
    %v221 = vadd.f32 %v197, %v213
    %v222 = vadd.f32 %v198, %v214
    %v223 = vadd.f32 %v199, %v215
    %v224 = vadd.f32 %v200, %v216
    %v225 = vadd.f32 %v201, %v217
    %v226 = vadd.f32 %v202, %v218
    %v227 = vadd.f32 %v203, %v219
    %v229 = vperm.slane %v152, 0
    %v231 = vmul.f32 %v166, %v229
    %v232 = vmul.f32 %v171, %v229
    %v233 = vmul.f32 %v176, %v229
    %v234 = vmul.f32 %v181, %v229
    %v235 = vmul.f32 %v186, %v229
    %v236 = vmul.f32 %v191, %v229
    %v237 = vmul.f32 %v207, %v229
    %v238 = vmul.f32 %v156, %v229
    %v239 = vadd.f32 %v220, %v231
    %v240 = vadd.f32 %v221, %v232
    %v241 = vadd.f32 %v222, %v233
    %v242 = vadd.f32 %v223, %v234
    %v243 = vadd.f32 %v224, %v235
    %v244 = vadd.f32 %v225, %v236
    %v245 = vadd.f32 %v226, %v237
    %v246 = vadd.f32 %v227, %v238
    %v247 = vld [vmem:[%s2] sm:$0x1]
    %v249 = vperm.slane %v247, 0
    %v251 = vmul.f32 %v239, %v249
    %v252 = vmul.f32 %v240, %v249
    %v253 = vmul.f32 %v241, %v249
    %v254 = vmul.f32 %v242, %v249
    %v255 = vmul.f32 %v243, %v249
    %v256 = vmul.f32 %v244, %v249
    %v257 = vmul.f32 %v245, %v249
    %v258 = vmul.f32 %v246, %v249
    %v259 = vld [vmem:[%s3] sm:$0x1]
    %v261 = vperm.slane %v259, 0
    %v263 = vadd.f32 %v251, %v261
    %v264 = vadd.f32 %v252, %v261
    %v265 = vadd.f32 %v253, %v261
    %v266 = vadd.f32 %v254, %v261
    %v267 = vadd.f32 %v255, %v261
    %v268 = vadd.f32 %v256, %v261
    %v269 = vadd.f32 %v257, %v261
    %v270 = vadd.f32 %v258, %v261
    %v271 = vmax.f32 %v263, 0.0
    %v272 = vmax.f32 %v264, 0.0
    %v273 = vmax.f32 %v265, 0.0
    %v274 = vmax.f32 %v266, 0.0
    %v275 = vmax.f32 %v267, 0.0
    %v276 = vmax.f32 %v268, 0.0
    %v277 = vmax.f32 %v269, 0.0
    %v278 = vmax.f32 %v270, 0.0
    %v279 = vmax.f32 %v271, %v272
    %v280 = vmax.f32 %v273, %v274
    %v281 = vmax.f32 %v275, %v276
    %v282 = vmax.f32 %v277, %v278
    %v283 = vpack.c.bf16 %v279, %v279
    %v284 = vpack.c.bf16 %v280, %v280
    %v285 = vpack.c.bf16 %v281, %v281
    %v286 = vpack.c.bf16 %v282, %v282
    %v287 = vld [vmem:[#allocation2] sm:$0xf]
    %v288 = vld [vmem:[#allocation2 + $0x4] sm:$0xf]
    %v289 = vld [vmem:[#allocation2 + $0x8] sm:$0xf]
    %v290 = vld [vmem:[#allocation2 + $0xc] sm:$0xf]
    %s291 = scalar_lea.vmem [#allocation2], 16
    %v292 = vld [vmem:[%s291] sm:$0xf]
    %v293 = vld [vmem:[%s291 + $0x4] sm:$0xf]
    %v294 = vld [vmem:[%s291 + $0x8] sm:$0xf]
    %v295 = vld [vmem:[%s291 + $0xc] sm:$0xf]
    %v300 = vunpack.c.l.b16 %v283
    %v301 = vunpack.c.l.b16 %v284
    %v302 = vunpack.c.l.b16 %v285
    %v303 = vunpack.c.l.b16 %v286
    %v304 = vpack.c.b16 %v301, %v300
    %v305 = vpack.c.b16 %v303, %v302
    %v310 = vunpack.c.l.b16 %v292
    %v311 = vunpack.c.l.b16 %v293
    %v312 = vunpack.c.l.b16 %v294
    %v313 = vunpack.c.l.b16 %v295
    %v314 = vpack.c.b16 %v311, %v310
    %v315 = vpack.c.b16 %v313, %v312
    %vm318 = vcmask 261120
    %v320 = vsel %vm318, %v304, 0
    %v323 = vsel %vm318, %v305, 0
    %325 = vmatpush.bf16.msra.mxu0 0
    %326 = vmatpush.bf16.msra.mxu0 0
    %327 = vmatpush.bf16.msra.mxu0 0
    %328 = vmatpush.bf16.msra.mxu0 0
    %329 = vmatpush.bf16.msra.mxu0 0
    %330 = vmatpush.bf16.msra.mxu0 0
    %331 = vmatpush.bf16.msra.mxu0 %v315
    %332 = vmatpush.bf16.msra.mxu0 %v314
    %333 = vmatmul.bf16.gmra.mxu0 %v320
    %v334 = vpop.f32.mrf.mxu0
    %v335 = vadd.f32 0.0, %v334
    %v336 = vpop.f32.mrf.mxu0
    %v337 = vadd.f32 0.0, %v336
    %338 = vmatmul.bf16.gmra.mxu0 %v323
    %v339 = vpop.f32.mrf.mxu0
    %v340 = vadd.f32 0.0, %v339
    %v341 = vpop.f32.mrf.mxu0
    %v342 = vadd.f32 0.0, %v341
    %343 = vdwg.mxu0
    %v345 = vunpack.c.l.b16 0
    %v346 = vpack.c.b16 %v300, %v345
    %v347 = vpack.c.b16 %v302, %v301
    %v352 = vunpack.c.l.b16 %v287
    %v353 = vunpack.c.l.b16 %v288
    %v354 = vunpack.c.l.b16 %v289
    %v355 = vunpack.c.l.b16 %v290
    %v356 = vpack.c.b16 %v353, %v352
    %v357 = vpack.c.b16 %v355, %v354
    %v361 = vsel %vm318, %v346, 0
    %v364 = vsel %vm318, %v347, 0
    %366 = vmatpush.bf16.msra.mxu0 0
    %367 = vmatpush.bf16.msra.mxu0 0
    %368 = vmatpush.bf16.msra.mxu0 0
    %369 = vmatpush.bf16.msra.mxu0 0
    %370 = vmatpush.bf16.msra.mxu0 0
    %371 = vmatpush.bf16.msra.mxu0 0
    %372 = vmatpush.bf16.msra.mxu0 %v357
    %373 = vmatpush.bf16.msra.mxu0 %v356
    %374 = vmatmul.bf16.gmra.mxu0 %v361
    %v375 = vpop.f32.mrf.mxu0
    %v376 = vadd.f32 %v335, %v375
    %v377 = vpop.f32.mrf.mxu0
    %v378 = vadd.f32 %v337, %v377
    %379 = vmatmul.bf16.gmra.mxu0 %v364
    %v380 = vpop.f32.mrf.mxu0
    %v381 = vadd.f32 %v340, %v380
    %v382 = vpop.f32.mrf.mxu0
    %v383 = vadd.f32 %v342, %v382
    %384 = vdwg.mxu0
    %s385 = scalar_lea.vmem [#allocation2], 32
    %v386 = vld [vmem:[%s385] sm:$0xf]
    %v387 = vld [vmem:[%s385 + $0x4] sm:$0xf]
    %v388 = vld [vmem:[%s385 + $0x8] sm:$0xf]
    %v389 = vld [vmem:[%s385 + $0xc] sm:$0xf]
    %v390 = vpack.c.b16 %v345, %v303
    %v395 = vunpack.c.l.b16 %v386
    %v396 = vunpack.c.l.b16 %v387
    %v397 = vunpack.c.l.b16 %v388
    %v398 = vunpack.c.l.b16 %v389
    %v399 = vpack.c.b16 %v396, %v395
    %v400 = vpack.c.b16 %v398, %v397
    %v404 = vsel %vm318, %v390, 0
    %406 = vmatpush.bf16.msra.mxu0 0
    %407 = vmatpush.bf16.msra.mxu0 0
    %408 = vmatpush.bf16.msra.mxu0 0
    %409 = vmatpush.bf16.msra.mxu0 0
    %410 = vmatpush.bf16.msra.mxu0 0
    %411 = vmatpush.bf16.msra.mxu0 0
    %412 = vmatpush.bf16.msra.mxu0 %v400
    %413 = vmatpush.bf16.msra.mxu0 %v399
    %414 = vmatmul.bf16.gmra.mxu0 %v364
    %v415 = vpop.f32.mrf.mxu0
    %v416 = vadd.f32 0.0, %v415
    %v417 = vpop.f32.mrf.mxu0
    %v418 = vadd.f32 0.0, %v417
    %419 = vmatmul.bf16.gmra.mxu0 %v404
    %v420 = vpop.f32.mrf.mxu0
    %v421 = vadd.f32 0.0, %v420
    %v422 = vpop.f32.mrf.mxu0
    %v423 = vadd.f32 0.0, %v422
    %424 = vdwg.mxu0
    %v425 = vadd.f32 %v376, %v416
    %v426 = vadd.f32 %v378, %v418
    %v427 = vadd.f32 %v381, %v421
    %v428 = vadd.f32 %v383, %v423
    %v429 = vld [vmem:[%s5] sm:$0x1]
    %v431 = vperm.slane %v429, 0
    %v433 = vmul.f32 %v425, %v431
    %v434 = vmul.f32 %v426, %v431
    %v435 = vmul.f32 %v427, %v431
    %v436 = vmul.f32 %v428, %v431
    %v437 = vld [vmem:[%s6] sm:$0x1]
    %v439 = vperm.slane %v437, 0
    %v441 = vadd.f32 %v433, %v439
    %v442 = vadd.f32 %v434, %v439
    %v443 = vadd.f32 %v435, %v439
    %v444 = vadd.f32 %v436, %v439
    %v445 = vmax.f32 %v441, 0.0
    %v446 = vmax.f32 %v442, 0.0
    %v447 = vmax.f32 %v443, 0.0
    %v448 = vmax.f32 %v444, 0.0
    %v449 = vpack.c.bf16 %v445, %v445
    %v450 = vpack.c.bf16 %v446, %v446
    %v451 = vpack.c.bf16 %v447, %v447
    %v452 = vpack.c.bf16 %v448, %v448
    %v453 = vld [vmem:[#allocation5] sm:$0xf]
    %v454 = vld [vmem:[#allocation5 + $0x4] sm:$0xf]
    %v455 = vld [vmem:[#allocation5 + $0x8] sm:$0xf]
    %v456 = vld [vmem:[#allocation5 + $0xc] sm:$0xf]
    %v457 = vld [vmem:[#allocation5 + $0x10] sm:$0xf]
    %v458 = vld [vmem:[#allocation5 + $0x14] sm:$0xf]
    %v459 = vld [vmem:[#allocation5 + $0x18] sm:$0xf]
    %v460 = vld [vmem:[#allocation5 + $0x1c] sm:$0xf]
    %s461 = scalar_lea.vmem [#allocation5], 32
    %v462 = vld [vmem:[%s461] sm:$0xf]
    %v463 = vld [vmem:[%s461 + $0x4] sm:$0xf]
    %v464 = vld [vmem:[%s461 + $0x8] sm:$0xf]
    %v465 = vld [vmem:[%s461 + $0xc] sm:$0xf]
    %v466 = vld [vmem:[%s461 + $0x10] sm:$0xf]
    %v467 = vld [vmem:[%s461 + $0x14] sm:$0xf]
    %v468 = vld [vmem:[%s461 + $0x18] sm:$0xf]
    %v469 = vld [vmem:[%s461 + $0x1c] sm:$0xf]
    %v474 = vunpack.c.l.b16 %v449
    %v475 = vunpack.c.l.b16 %v450
    %v476 = vunpack.c.l.b16 %v451
    %v477 = vunpack.c.l.b16 %v452
    %v478 = vpack.c.b16 %v475, %v474
    %v479 = vpack.c.b16 %v477, %v476
    %v488 = vunpack.c.l.b16 %v462
    %v489 = vunpack.c.l.b16 %v463
    %v490 = vunpack.c.l.b16 %v464
    %v491 = vunpack.c.l.b16 %v465
    %v492 = vunpack.c.l.b16 %v466
    %v493 = vunpack.c.l.b16 %v467
    %v494 = vunpack.c.l.b16 %v468
    %v495 = vunpack.c.l.b16 %v469
    %v496 = vpack.c.b16 %v489, %v488
    %v497 = vpack.c.b16 %v491, %v490
    %v498 = vpack.c.b16 %v493, %v492
    %v499 = vpack.c.b16 %v495, %v494
    %vm504 = vcmask 523264
    %v506 = vsel %vm504, %v478, 0
    %v509 = vsel %vm504, %v479, 0
    %511 = vmatpush.bf16.msra.mxu0 0
    %512 = vmatpush.bf16.msra.mxu0 0
    %513 = vmatpush.bf16.msra.mxu0 0
    %514 = vmatpush.bf16.msra.mxu0 0
    %515 = vmatpush.bf16.msra.mxu0 %v499
    %516 = vmatpush.bf16.msra.mxu0 %v498
    %517 = vmatpush.bf16.msra.mxu0 %v497
    %518 = vmatpush.bf16.msra.mxu0 %v496
    %519 = vmatmul.bf16.gmra.mxu0 %v506
    %v520 = vpop.f32.mrf.mxu0
    %v521 = vadd.f32 0.0, %v520
    %v522 = vpop.f32.mrf.mxu0
    %v523 = vadd.f32 0.0, %v522
    %524 = vmatmul.bf16.gmra.mxu0 %v509
    %v525 = vpop.f32.mrf.mxu0
    %v526 = vadd.f32 0.0, %v525
    %v527 = vpop.f32.mrf.mxu0
    %v528 = vadd.f32 0.0, %v527
    %529 = vdwg.mxu0
    %v530 = vpack.c.b16 %v474, %v345
    %v531 = vpack.c.b16 %v476, %v475
    %v540 = vunpack.c.l.b16 %v453
    %v541 = vunpack.c.l.b16 %v454
    %v542 = vunpack.c.l.b16 %v455
    %v543 = vunpack.c.l.b16 %v456
    %v544 = vunpack.c.l.b16 %v457
    %v545 = vunpack.c.l.b16 %v458
    %v546 = vunpack.c.l.b16 %v459
    %v547 = vunpack.c.l.b16 %v460
    %v548 = vpack.c.b16 %v541, %v540
    %v549 = vpack.c.b16 %v543, %v542
    %v550 = vpack.c.b16 %v545, %v544
    %v551 = vpack.c.b16 %v547, %v546
    %v557 = vsel %vm504, %v530, 0
    %v560 = vsel %vm504, %v531, 0
    %562 = vmatpush.bf16.msra.mxu0 0
    %563 = vmatpush.bf16.msra.mxu0 0
    %564 = vmatpush.bf16.msra.mxu0 0
    %565 = vmatpush.bf16.msra.mxu0 0
    %566 = vmatpush.bf16.msra.mxu0 %v551
    %567 = vmatpush.bf16.msra.mxu0 %v550
    %568 = vmatpush.bf16.msra.mxu0 %v549
    %569 = vmatpush.bf16.msra.mxu0 %v548
    %570 = vmatmul.bf16.gmra.mxu0 %v557
    %v571 = vpop.f32.mrf.mxu0
    %v572 = vadd.f32 %v521, %v571
    %v573 = vpop.f32.mrf.mxu0
    %v574 = vadd.f32 %v523, %v573
    %575 = vmatmul.bf16.gmra.mxu0 %v560
    %v576 = vpop.f32.mrf.mxu0
    %v577 = vadd.f32 %v526, %v576
    %v578 = vpop.f32.mrf.mxu0
    %v579 = vadd.f32 %v528, %v578
    %580 = vdwg.mxu0
    %s581 = scalar_lea.vmem [#allocation5], 64
    %v582 = vld [vmem:[%s581] sm:$0xf]
    %v583 = vld [vmem:[%s581 + $0x4] sm:$0xf]
    %v584 = vld [vmem:[%s581 + $0x8] sm:$0xf]
    %v585 = vld [vmem:[%s581 + $0xc] sm:$0xf]
    %v586 = vld [vmem:[%s581 + $0x10] sm:$0xf]
    %v587 = vld [vmem:[%s581 + $0x14] sm:$0xf]
    %v588 = vld [vmem:[%s581 + $0x18] sm:$0xf]
    %v589 = vld [vmem:[%s581 + $0x1c] sm:$0xf]
    %v590 = vpack.c.b16 %v345, %v477
    %v599 = vunpack.c.l.b16 %v582
    %v600 = vunpack.c.l.b16 %v583
    %v601 = vunpack.c.l.b16 %v584
    %v602 = vunpack.c.l.b16 %v585
    %v603 = vunpack.c.l.b16 %v586
    %v604 = vunpack.c.l.b16 %v587
    %v605 = vunpack.c.l.b16 %v588
    %v606 = vunpack.c.l.b16 %v589
    %v607 = vpack.c.b16 %v600, %v599
    %v608 = vpack.c.b16 %v602, %v601
    %v609 = vpack.c.b16 %v604, %v603
    %v610 = vpack.c.b16 %v606, %v605
    %v616 = vsel %vm504, %v590, 0
    %618 = vmatpush.bf16.msra.mxu0 0
    %619 = vmatpush.bf16.msra.mxu0 0
    %620 = vmatpush.bf16.msra.mxu0 0
    %621 = vmatpush.bf16.msra.mxu0 0
    %622 = vmatpush.bf16.msra.mxu0 %v610
    %623 = vmatpush.bf16.msra.mxu0 %v609
    %624 = vmatpush.bf16.msra.mxu0 %v608
    %625 = vmatpush.bf16.msra.mxu0 %v607
    %626 = vmatmul.bf16.gmra.mxu0 %v560
    %v627 = vpop.f32.mrf.mxu0
    %v628 = vadd.f32 0.0, %v627
    %v629 = vpop.f32.mrf.mxu0
    %v630 = vadd.f32 0.0, %v629
    %631 = vmatmul.bf16.gmra.mxu0 %v616
    %v632 = vpop.f32.mrf.mxu0
    %v633 = vadd.f32 0.0, %v632
    %v634 = vpop.f32.mrf.mxu0
    %v635 = vadd.f32 0.0, %v634
    %636 = vdwg.mxu0
    %v637 = vadd.f32 %v572, %v628
    %v638 = vadd.f32 %v574, %v630
    %v639 = vadd.f32 %v577, %v633
    %v640 = vadd.f32 %v579, %v635
    %v641 = vld [vmem:[%s8] sm:$0x1]
    %v643 = vperm.slane %v641, 0
    %v645 = vmul.f32 %v637, %v643
    %v646 = vmul.f32 %v638, %v643
    %v647 = vmul.f32 %v639, %v643
    %v648 = vmul.f32 %v640, %v643
    %v649 = vld [vmem:[%s9] sm:$0x1]
    %v651 = vperm.slane %v649, 0
    %v653 = vadd.f32 %v645, %v651
    %v654 = vadd.f32 %v646, %v651
    %v655 = vadd.f32 %v647, %v651
    %v656 = vadd.f32 %v648, %v651
    %v657 = vmax.f32 %v653, 0.0
    %v658 = vmax.f32 %v654, 0.0
    %v659 = vmax.f32 %v655, 0.0
    %v660 = vmax.f32 %v656, 0.0
    %v661 = vpack.c.bf16 %v657, %v657
    %v662 = vpack.c.bf16 %v658, %v658
    %v663 = vpack.c.bf16 %v659, %v659
    %v664 = vpack.c.bf16 %v660, %v660
    %v665 = vld [vmem:[#allocation7] sm:$0xff]
    %v666 = vld [vmem:[#allocation7 + $0x8] sm:$0xff]
    %v667 = vld [vmem:[#allocation7 + $0x10] sm:$0xff]
    %v668 = vld [vmem:[#allocation7 + $0x18] sm:$0xff]
    %v669 = vld [vmem:[#allocation7 + $0x20] sm:$0xff]
    %v670 = vld [vmem:[#allocation7 + $0x28] sm:$0xff]
    %v671 = vld [vmem:[#allocation7 + $0x30] sm:$0xff]
    %v672 = vld [vmem:[#allocation7 + $0x38] sm:$0xff]
    %v673 = vld [vmem:[#allocation7 + $0x40] sm:$0xff]
    %v674 = vld [vmem:[#allocation7 + $0x48] sm:$0xff]
    %v675 = vld [vmem:[#allocation7 + $0x50] sm:$0xff]
    %v676 = vld [vmem:[#allocation7 + $0x58] sm:$0xff]
    %v677 = vld [vmem:[#allocation7 + $0x60] sm:$0xff]
    %v678 = vld [vmem:[#allocation7 + $0x68] sm:$0xff]
    %v679 = vld [vmem:[#allocation7 + $0x70] sm:$0xff]
    %v680 = vld [vmem:[#allocation7 + $0x78] sm:$0xff]
    %s681 = scalar_lea.vmem [#allocation7], 128
    %v682 = vld [vmem:[%s681] sm:$0xff]
    %v683 = vld [vmem:[%s681 + $0x8] sm:$0xff]
    %v684 = vld [vmem:[%s681 + $0x10] sm:$0xff]
    %v685 = vld [vmem:[%s681 + $0x18] sm:$0xff]
    %v686 = vld [vmem:[%s681 + $0x20] sm:$0xff]
    %v687 = vld [vmem:[%s681 + $0x28] sm:$0xff]
    %v688 = vld [vmem:[%s681 + $0x30] sm:$0xff]
    %v689 = vld [vmem:[%s681 + $0x38] sm:$0xff]
    %v690 = vld [vmem:[%s681 + $0x40] sm:$0xff]
    %v691 = vld [vmem:[%s681 + $0x48] sm:$0xff]
    %v692 = vld [vmem:[%s681 + $0x50] sm:$0xff]
    %v693 = vld [vmem:[%s681 + $0x58] sm:$0xff]
    %v694 = vld [vmem:[%s681 + $0x60] sm:$0xff]
    %v695 = vld [vmem:[%s681 + $0x68] sm:$0xff]
    %v696 = vld [vmem:[%s681 + $0x70] sm:$0xff]
    %v697 = vld [vmem:[%s681 + $0x78] sm:$0xff]
    %v702 = vunpack.c.l.b16 %v661
    %v703 = vunpack.c.l.b16 %v662
    %v704 = vunpack.c.l.b16 %v663
    %v705 = vunpack.c.l.b16 %v664
    %v706 = vpack.c.b16 %v703, %v702
    %v707 = vpack.c.b16 %v705, %v704
    %v726 = vunpack.c.l.b16 %v682
    %v727 = vunpack.c.h.b16 %v682
    %v728 = vunpack.c.l.b16 %v683
    %v729 = vunpack.c.h.b16 %v683
    %v730 = vunpack.c.l.b16 %v684
    %v731 = vunpack.c.h.b16 %v684
    %v732 = vunpack.c.l.b16 %v685
    %v733 = vunpack.c.h.b16 %v685
    %v734 = vunpack.c.l.b16 %v686
    %v735 = vunpack.c.h.b16 %v686
    %v736 = vunpack.c.l.b16 %v687
    %v737 = vunpack.c.h.b16 %v687
    %v738 = vunpack.c.l.b16 %v688
    %v739 = vunpack.c.h.b16 %v688
    %v740 = vunpack.c.l.b16 %v689
    %v741 = vunpack.c.h.b16 %v689
    %v742 = vunpack.c.l.b16 %v690
    %v743 = vunpack.c.h.b16 %v690
    %v744 = vunpack.c.l.b16 %v691
    %v745 = vunpack.c.h.b16 %v691
    %v746 = vunpack.c.l.b16 %v692
    %v747 = vunpack.c.h.b16 %v692
    %v748 = vunpack.c.l.b16 %v693
    %v749 = vunpack.c.h.b16 %v693
    %v750 = vunpack.c.l.b16 %v694
    %v751 = vunpack.c.h.b16 %v694
    %v752 = vunpack.c.l.b16 %v695
    %v753 = vunpack.c.h.b16 %v695
    %v754 = vunpack.c.l.b16 %v696
    %v755 = vunpack.c.h.b16 %v696
    %v756 = vunpack.c.l.b16 %v697
    %v757 = vunpack.c.h.b16 %v697
    %v758 = vpack.c.b16 %v728, %v726
    %v759 = vpack.c.b16 %v729, %v727
    %v760 = vpack.c.b16 %v732, %v730
    %v761 = vpack.c.b16 %v733, %v731
    %v762 = vpack.c.b16 %v736, %v734
    %v763 = vpack.c.b16 %v737, %v735
    %v764 = vpack.c.b16 %v740, %v738
    %v765 = vpack.c.b16 %v741, %v739
    %v766 = vpack.c.b16 %v744, %v742
    %v767 = vpack.c.b16 %v745, %v743
    %v768 = vpack.c.b16 %v748, %v746
    %v769 = vpack.c.b16 %v749, %v747
    %v770 = vpack.c.b16 %v752, %v750
    %v771 = vpack.c.b16 %v753, %v751
    %v772 = vpack.c.b16 %v756, %v754
    %v773 = vpack.c.b16 %v757, %v755
    %790 = vmatpush.bf16.msra.mxu0 %v772
    %791 = vmatpush.bf16.msra.mxu0 %v770
    %792 = vmatpush.bf16.msra.mxu0 %v768
    %793 = vmatpush.bf16.msra.mxu0 %v766
    %794 = vmatpush.bf16.msra.mxu0 %v764
    %795 = vmatpush.bf16.msra.mxu0 %v762
    %796 = vmatpush.bf16.msra.mxu0 %v760
    %797 = vmatpush.bf16.msra.mxu0 %v758
    %798 = vmatmul.bf16.gmra.mxu0 %v706
    %v799 = vpop.f32.mrf.mxu0
    %v800 = vadd.f32 0.0, %v799
    %v801 = vpop.f32.mrf.mxu0
    %v802 = vadd.f32 0.0, %v801
    %803 = vmatmul.bf16.gmra.mxu0 %v707
    %v804 = vpop.f32.mrf.mxu0
    %v805 = vadd.f32 0.0, %v804
    %v806 = vpop.f32.mrf.mxu0
    %v807 = vadd.f32 0.0, %v806
    %808 = vdwg.mxu0
    %809 = vmatpush.bf16.msra.mxu0 %v773
    %810 = vmatpush.bf16.msra.mxu0 %v771
    %811 = vmatpush.bf16.msra.mxu0 %v769
    %812 = vmatpush.bf16.msra.mxu0 %v767
    %813 = vmatpush.bf16.msra.mxu0 %v765
    %814 = vmatpush.bf16.msra.mxu0 %v763
    %815 = vmatpush.bf16.msra.mxu0 %v761
    %816 = vmatpush.bf16.msra.mxu0 %v759
    %817 = vmatmul.bf16.gmra.mxu0 %v706
    %v818 = vpop.f32.mrf.mxu0
    %v819 = vadd.f32 0.0, %v818
    %v820 = vpop.f32.mrf.mxu0
    %v821 = vadd.f32 0.0, %v820
    %822 = vmatmul.bf16.gmra.mxu0 %v707
    %v823 = vpop.f32.mrf.mxu0
    %v824 = vadd.f32 0.0, %v823
    %v825 = vpop.f32.mrf.mxu0
    %v826 = vadd.f32 0.0, %v825
    %827 = vdwg.mxu0
    %v828 = vpack.c.b16 %v702, %v345
    %v829 = vpack.c.b16 %v704, %v703
    %v848 = vunpack.c.l.b16 %v665
    %v849 = vunpack.c.h.b16 %v665
    %v850 = vunpack.c.l.b16 %v666
    %v851 = vunpack.c.h.b16 %v666
    %v852 = vunpack.c.l.b16 %v667
    %v853 = vunpack.c.h.b16 %v667
    %v854 = vunpack.c.l.b16 %v668
    %v855 = vunpack.c.h.b16 %v668
    %v856 = vunpack.c.l.b16 %v669
    %v857 = vunpack.c.h.b16 %v669
    %v858 = vunpack.c.l.b16 %v670
    %v859 = vunpack.c.h.b16 %v670
    %v860 = vunpack.c.l.b16 %v671
    %v861 = vunpack.c.h.b16 %v671
    %v862 = vunpack.c.l.b16 %v672
    %v863 = vunpack.c.h.b16 %v672
    %v864 = vunpack.c.l.b16 %v673
    %v865 = vunpack.c.h.b16 %v673
    %v866 = vunpack.c.l.b16 %v674
    %v867 = vunpack.c.h.b16 %v674
    %v868 = vunpack.c.l.b16 %v675
    %v869 = vunpack.c.h.b16 %v675
    %v870 = vunpack.c.l.b16 %v676
    %v871 = vunpack.c.h.b16 %v676
    %v872 = vunpack.c.l.b16 %v677
    %v873 = vunpack.c.h.b16 %v677
    %v874 = vunpack.c.l.b16 %v678
    %v875 = vunpack.c.h.b16 %v678
    %v876 = vunpack.c.l.b16 %v679
    %v877 = vunpack.c.h.b16 %v679
    %v878 = vunpack.c.l.b16 %v680
    %v879 = vunpack.c.h.b16 %v680
    %v880 = vpack.c.b16 %v850, %v848
    %v881 = vpack.c.b16 %v851, %v849
    %v882 = vpack.c.b16 %v854, %v852
    %v883 = vpack.c.b16 %v855, %v853
    %v884 = vpack.c.b16 %v858, %v856
    %v885 = vpack.c.b16 %v859, %v857
    %v886 = vpack.c.b16 %v862, %v860
    %v887 = vpack.c.b16 %v863, %v861
    %v888 = vpack.c.b16 %v866, %v864
    %v889 = vpack.c.b16 %v867, %v865
    %v890 = vpack.c.b16 %v870, %v868
    %v891 = vpack.c.b16 %v871, %v869
    %v892 = vpack.c.b16 %v874, %v872
    %v893 = vpack.c.b16 %v875, %v873
    %v894 = vpack.c.b16 %v878, %v876
    %v895 = vpack.c.b16 %v879, %v877
    %912 = vmatpush.bf16.msra.mxu0 %v894
    %913 = vmatpush.bf16.msra.mxu0 %v892
    %914 = vmatpush.bf16.msra.mxu0 %v890
    %915 = vmatpush.bf16.msra.mxu0 %v888
    %916 = vmatpush.bf16.msra.mxu0 %v886
    %917 = vmatpush.bf16.msra.mxu0 %v884
    %918 = vmatpush.bf16.msra.mxu0 %v882
    %919 = vmatpush.bf16.msra.mxu0 %v880
    %920 = vmatmul.bf16.gmra.mxu0 %v828
    %v921 = vpop.f32.mrf.mxu0
    %v922 = vadd.f32 %v800, %v921
    %v923 = vpop.f32.mrf.mxu0
    %v924 = vadd.f32 %v802, %v923
    %925 = vmatmul.bf16.gmra.mxu0 %v829
    %v926 = vpop.f32.mrf.mxu0
    %v927 = vadd.f32 %v805, %v926
    %v928 = vpop.f32.mrf.mxu0
    %v929 = vadd.f32 %v807, %v928
    %930 = vdwg.mxu0
    %931 = vmatpush.bf16.msra.mxu0 %v895
    %932 = vmatpush.bf16.msra.mxu0 %v893
    %933 = vmatpush.bf16.msra.mxu0 %v891
    %934 = vmatpush.bf16.msra.mxu0 %v889
    %935 = vmatpush.bf16.msra.mxu0 %v887
    %936 = vmatpush.bf16.msra.mxu0 %v885
    %937 = vmatpush.bf16.msra.mxu0 %v883
    %938 = vmatpush.bf16.msra.mxu0 %v881
    %939 = vmatmul.bf16.gmra.mxu0 %v828
    %v940 = vpop.f32.mrf.mxu0
    %v941 = vadd.f32 %v819, %v940
    %v942 = vpop.f32.mrf.mxu0
    %v943 = vadd.f32 %v821, %v942
    %944 = vmatmul.bf16.gmra.mxu0 %v829
    %v945 = vpop.f32.mrf.mxu0
    %v946 = vadd.f32 %v824, %v945
    %v947 = vpop.f32.mrf.mxu0
    %v948 = vadd.f32 %v826, %v947
    %949 = vdwg.mxu0
    %s950 = scalar_lea.vmem [#allocation7], 256
    %v951 = vld [vmem:[%s950] sm:$0xff]
    %v952 = vld [vmem:[%s950 + $0x8] sm:$0xff]
    %v953 = vld [vmem:[%s950 + $0x10] sm:$0xff]
    %v954 = vld [vmem:[%s950 + $0x18] sm:$0xff]
    %v955 = vld [vmem:[%s950 + $0x20] sm:$0xff]
    %v956 = vld [vmem:[%s950 + $0x28] sm:$0xff]
    %v957 = vld [vmem:[%s950 + $0x30] sm:$0xff]
    %v958 = vld [vmem:[%s950 + $0x38] sm:$0xff]
    %v959 = vld [vmem:[%s950 + $0x40] sm:$0xff]
    %v960 = vld [vmem:[%s950 + $0x48] sm:$0xff]
    %v961 = vld [vmem:[%s950 + $0x50] sm:$0xff]
    %v962 = vld [vmem:[%s950 + $0x58] sm:$0xff]
    %v963 = vld [vmem:[%s950 + $0x60] sm:$0xff]
    %v964 = vld [vmem:[%s950 + $0x68] sm:$0xff]
    %v965 = vld [vmem:[%s950 + $0x70] sm:$0xff]
    %v966 = vld [vmem:[%s950 + $0x78] sm:$0xff]
    %v967 = vpack.c.b16 %v345, %v705
    %v985 = vunpack.c.l.b16 %v951
    %v986 = vunpack.c.h.b16 %v951
    %v987 = vunpack.c.l.b16 %v952
    %v988 = vunpack.c.h.b16 %v952
    %v989 = vunpack.c.l.b16 %v953
    %v990 = vunpack.c.h.b16 %v953
    %v991 = vunpack.c.l.b16 %v954
    %v992 = vunpack.c.h.b16 %v954
    %v993 = vunpack.c.l.b16 %v955
    %v994 = vunpack.c.h.b16 %v955
    %v995 = vunpack.c.l.b16 %v956
    %v996 = vunpack.c.h.b16 %v956
    %v997 = vunpack.c.l.b16 %v957
    %v998 = vunpack.c.h.b16 %v957
    %v999 = vunpack.c.l.b16 %v958
    %v1000 = vunpack.c.h.b16 %v958
    %v1001 = vunpack.c.l.b16 %v959
    %v1002 = vunpack.c.h.b16 %v959
    %v1003 = vunpack.c.l.b16 %v960
    %v1004 = vunpack.c.h.b16 %v960
    %v1005 = vunpack.c.l.b16 %v961
    %v1006 = vunpack.c.h.b16 %v961
    %v1007 = vunpack.c.l.b16 %v962
    %v1008 = vunpack.c.h.b16 %v962
    %v1009 = vunpack.c.l.b16 %v963
    %v1010 = vunpack.c.h.b16 %v963
    %v1011 = vunpack.c.l.b16 %v964
    %v1012 = vunpack.c.h.b16 %v964
    %v1013 = vunpack.c.l.b16 %v965
    %v1014 = vunpack.c.h.b16 %v965
    %v1015 = vunpack.c.l.b16 %v966
    %v1016 = vunpack.c.h.b16 %v966
    %v1017 = vpack.c.b16 %v987, %v985
    %v1018 = vpack.c.b16 %v988, %v986
    %v1019 = vpack.c.b16 %v991, %v989
    %v1020 = vpack.c.b16 %v992, %v990
    %v1021 = vpack.c.b16 %v995, %v993
    %v1022 = vpack.c.b16 %v996, %v994
    %v1023 = vpack.c.b16 %v999, %v997
    %v1024 = vpack.c.b16 %v1000, %v998
    %v1025 = vpack.c.b16 %v1003, %v1001
    %v1026 = vpack.c.b16 %v1004, %v1002
    %v1027 = vpack.c.b16 %v1007, %v1005
    %v1028 = vpack.c.b16 %v1008, %v1006
    %v1029 = vpack.c.b16 %v1011, %v1009
    %v1030 = vpack.c.b16 %v1012, %v1010
    %v1031 = vpack.c.b16 %v1015, %v1013
    %v1032 = vpack.c.b16 %v1016, %v1014
    %1049 = vmatpush.bf16.msra.mxu0 %v1031
    %1050 = vmatpush.bf16.msra.mxu0 %v1029
    %1051 = vmatpush.bf16.msra.mxu0 %v1027
    %1052 = vmatpush.bf16.msra.mxu0 %v1025
    %1053 = vmatpush.bf16.msra.mxu0 %v1023
    %1054 = vmatpush.bf16.msra.mxu0 %v1021
    %1055 = vmatpush.bf16.msra.mxu0 %v1019
    %1056 = vmatpush.bf16.msra.mxu0 %v1017
    %1057 = vmatmul.bf16.gmra.mxu0 %v829
    %v1058 = vpop.f32.mrf.mxu0
    %v1059 = vadd.f32 0.0, %v1058
    %v1060 = vpop.f32.mrf.mxu0
    %v1061 = vadd.f32 0.0, %v1060
    %1062 = vmatmul.bf16.gmra.mxu0 %v967
    %v1063 = vpop.f32.mrf.mxu0
    %v1064 = vadd.f32 0.0, %v1063
    %v1065 = vpop.f32.mrf.mxu0
    %v1066 = vadd.f32 0.0, %v1065
    %1067 = vdwg.mxu0
    %1068 = vmatpush.bf16.msra.mxu0 %v1032
    %1069 = vmatpush.bf16.msra.mxu0 %v1030
    %1070 = vmatpush.bf16.msra.mxu0 %v1028
    %1071 = vmatpush.bf16.msra.mxu0 %v1026
    %1072 = vmatpush.bf16.msra.mxu0 %v1024
    %1073 = vmatpush.bf16.msra.mxu0 %v1022
    %1074 = vmatpush.bf16.msra.mxu0 %v1020
    %1075 = vmatpush.bf16.msra.mxu0 %v1018
    %1076 = vmatmul.bf16.gmra.mxu0 %v829
    %v1077 = vpop.f32.mrf.mxu0
    %v1078 = vadd.f32 0.0, %v1077
    %v1079 = vpop.f32.mrf.mxu0
    %v1080 = vadd.f32 0.0, %v1079
    %1081 = vmatmul.bf16.gmra.mxu0 %v967
    %v1082 = vpop.f32.mrf.mxu0
    %v1083 = vadd.f32 0.0, %v1082
    %v1084 = vpop.f32.mrf.mxu0
    %v1085 = vadd.f32 0.0, %v1084
    %1086 = vdwg.mxu0
    %v1087 = vadd.f32 %v922, %v1059
    %v1088 = vadd.f32 %v941, %v1078
    %v1089 = vadd.f32 %v924, %v1061
    %v1090 = vadd.f32 %v943, %v1080
    %v1091 = vadd.f32 %v927, %v1064
    %v1092 = vadd.f32 %v946, %v1083
    %v1093 = vadd.f32 %v929, %v1066
    %v1094 = vadd.f32 %v948, %v1085
    %v1095 = vld [vmem:[%s11] sm:$0x3]
    %v1097 = vperm.slane %v1095, 0
    %v1098 = vperm.slane %v1095, 1
    %v1101 = vmul.f32 %v1087, %v1097
    %v1102 = vmul.f32 %v1088, %v1098
    %v1103 = vmul.f32 %v1089, %v1097
    %v1104 = vmul.f32 %v1090, %v1098
    %v1105 = vmul.f32 %v1091, %v1097
    %v1106 = vmul.f32 %v1092, %v1098
    %v1107 = vmul.f32 %v1093, %v1097
    %v1108 = vmul.f32 %v1094, %v1098
    %v1109 = vld [vmem:[%s12] sm:$0x3]
    %v1111 = vperm.slane %v1109, 0
    %v1112 = vperm.slane %v1109, 1
    %v1115 = vadd.f32 %v1101, %v1111
    %v1116 = vadd.f32 %v1102, %v1112
    %v1117 = vadd.f32 %v1103, %v1111
    %v1118 = vadd.f32 %v1104, %v1112
    %v1119 = vadd.f32 %v1105, %v1111
    %v1120 = vadd.f32 %v1106, %v1112
    %v1121 = vadd.f32 %v1107, %v1111
    %v1122 = vadd.f32 %v1108, %v1112
    %v1123 = vmax.f32 %v1115, 0.0
    %v1124 = vmax.f32 %v1116, 0.0
    %v1125 = vmax.f32 %v1117, 0.0
    %v1126 = vmax.f32 %v1118, 0.0
    %v1127 = vmax.f32 %v1119, 0.0
    %v1128 = vmax.f32 %v1120, 0.0
    %v1129 = vmax.f32 %v1121, 0.0
    %v1130 = vmax.f32 %v1122, 0.0
    %v1131 = vpack.c.bf16 %v1124, %v1123
    %v1132 = vpack.c.bf16 %v1126, %v1125
    %v1133 = vpack.c.bf16 %v1128, %v1127
    %v1134 = vpack.c.bf16 %v1130, %v1129
    %v1135 = vld [vmem:[#allocation8] sm:$0xff]
    %v1136 = vld [vmem:[#allocation8 + $0x8] sm:$0xff]
    %v1137 = vld [vmem:[#allocation8 + $0x10] sm:$0xff]
    %v1138 = vld [vmem:[#allocation8 + $0x18] sm:$0xff]
    %v1139 = vld [vmem:[#allocation8 + $0x20] sm:$0xff]
    %v1140 = vld [vmem:[#allocation8 + $0x28] sm:$0xff]
    %v1141 = vld [vmem:[#allocation8 + $0x30] sm:$0xff]
    %v1142 = vld [vmem:[#allocation8 + $0x38] sm:$0xff]
    %v1143 = vld [vmem:[#allocation8 + $0x40] sm:$0xff]
    %v1144 = vld [vmem:[#allocation8 + $0x48] sm:$0xff]
    %v1145 = vld [vmem:[#allocation8 + $0x50] sm:$0xff]
    %v1146 = vld [vmem:[#allocation8 + $0x58] sm:$0xff]
    %v1147 = vld [vmem:[#allocation8 + $0x60] sm:$0xff]
    %v1148 = vld [vmem:[#allocation8 + $0x68] sm:$0xff]
    %v1149 = vld [vmem:[#allocation8 + $0x70] sm:$0xff]
    %v1150 = vld [vmem:[#allocation8 + $0x78] sm:$0xff]
    %v1151 = vld [vmem:[#allocation8 + $0x80] sm:$0xff]
    %v1152 = vld [vmem:[#allocation8 + $0x88] sm:$0xff]
    %v1153 = vld [vmem:[#allocation8 + $0x90] sm:$0xff]
    %v1154 = vld [vmem:[#allocation8 + $0x98] sm:$0xff]
    %v1155 = vld [vmem:[#allocation8 + $0xa0] sm:$0xff]
    %v1156 = vld [vmem:[#allocation8 + $0xa8] sm:$0xff]
    %v1157 = vld [vmem:[#allocation8 + $0xb0] sm:$0xff]
    %v1158 = vld [vmem:[#allocation8 + $0xb8] sm:$0xff]
    %v1159 = vld [vmem:[#allocation8 + $0xc0] sm:$0xff]
    %v1160 = vld [vmem:[#allocation8 + $0xc8] sm:$0xff]
    %v1161 = vld [vmem:[#allocation8 + $0xd0] sm:$0xff]
    %v1162 = vld [vmem:[#allocation8 + $0xd8] sm:$0xff]
    %v1163 = vld [vmem:[#allocation8 + $0xe0] sm:$0xff]
    %v1164 = vld [vmem:[#allocation8 + $0xe8] sm:$0xff]
    %v1165 = vld [vmem:[#allocation8 + $0xf0] sm:$0xff]
    %v1166 = vld [vmem:[#allocation8 + $0xf8] sm:$0xff]
    %s1167 = scalar_lea.vmem [#allocation8], 256
    %v1168 = vld [vmem:[%s1167] sm:$0xff]
    %v1169 = vld [vmem:[%s1167 + $0x8] sm:$0xff]
    %v1170 = vld [vmem:[%s1167 + $0x10] sm:$0xff]
    %v1171 = vld [vmem:[%s1167 + $0x18] sm:$0xff]
    %v1172 = vld [vmem:[%s1167 + $0x20] sm:$0xff]
    %v1173 = vld [vmem:[%s1167 + $0x28] sm:$0xff]
    %v1174 = vld [vmem:[%s1167 + $0x30] sm:$0xff]
    %v1175 = vld [vmem:[%s1167 + $0x38] sm:$0xff]
    %v1176 = vld [vmem:[%s1167 + $0x40] sm:$0xff]
    %v1177 = vld [vmem:[%s1167 + $0x48] sm:$0xff]
    %v1178 = vld [vmem:[%s1167 + $0x50] sm:$0xff]
    %v1179 = vld [vmem:[%s1167 + $0x58] sm:$0xff]
    %v1180 = vld [vmem:[%s1167 + $0x60] sm:$0xff]
    %v1181 = vld [vmem:[%s1167 + $0x68] sm:$0xff]
    %v1182 = vld [vmem:[%s1167 + $0x70] sm:$0xff]
    %v1183 = vld [vmem:[%s1167 + $0x78] sm:$0xff]
    %v1184 = vld [vmem:[%s1167 + $0x80] sm:$0xff]
    %v1185 = vld [vmem:[%s1167 + $0x88] sm:$0xff]
    %v1186 = vld [vmem:[%s1167 + $0x90] sm:$0xff]
    %v1187 = vld [vmem:[%s1167 + $0x98] sm:$0xff]
    %v1188 = vld [vmem:[%s1167 + $0xa0] sm:$0xff]
    %v1189 = vld [vmem:[%s1167 + $0xa8] sm:$0xff]
    %v1190 = vld [vmem:[%s1167 + $0xb0] sm:$0xff]
    %v1191 = vld [vmem:[%s1167 + $0xb8] sm:$0xff]
    %v1192 = vld [vmem:[%s1167 + $0xc0] sm:$0xff]
    %v1193 = vld [vmem:[%s1167 + $0xc8] sm:$0xff]
    %v1194 = vld [vmem:[%s1167 + $0xd0] sm:$0xff]
    %v1195 = vld [vmem:[%s1167 + $0xd8] sm:$0xff]
    %v1196 = vld [vmem:[%s1167 + $0xe0] sm:$0xff]
    %v1197 = vld [vmem:[%s1167 + $0xe8] sm:$0xff]
    %v1198 = vld [vmem:[%s1167 + $0xf0] sm:$0xff]
    %v1199 = vld [vmem:[%s1167 + $0xf8] sm:$0xff]
    %v1201 = vunpack.c.l.b16 %v1132
    %v1202 = vunpack.c.h.b16 %v1132
    %v1203 = vpack.c.b16 %v1201, %v1201
    %v1204 = vpack.c.b16 %v1202, %v1202
    %v1239 = vunpack.c.l.b16 %v1168
    %v1240 = vunpack.c.h.b16 %v1168
    %v1241 = vunpack.c.l.b16 %v1169
    %v1242 = vunpack.c.h.b16 %v1169
    %v1243 = vunpack.c.l.b16 %v1170
    %v1244 = vunpack.c.h.b16 %v1170
    %v1245 = vunpack.c.l.b16 %v1171
    %v1246 = vunpack.c.h.b16 %v1171
    %v1247 = vunpack.c.l.b16 %v1172
    %v1248 = vunpack.c.h.b16 %v1172
    %v1249 = vunpack.c.l.b16 %v1173
    %v1250 = vunpack.c.h.b16 %v1173
    %v1251 = vunpack.c.l.b16 %v1174
    %v1252 = vunpack.c.h.b16 %v1174
    %v1253 = vunpack.c.l.b16 %v1175
    %v1254 = vunpack.c.h.b16 %v1175
    %v1255 = vunpack.c.l.b16 %v1176
    %v1256 = vunpack.c.h.b16 %v1176
    %v1257 = vunpack.c.l.b16 %v1177
    %v1258 = vunpack.c.h.b16 %v1177
    %v1259 = vunpack.c.l.b16 %v1178
    %v1260 = vunpack.c.h.b16 %v1178
    %v1261 = vunpack.c.l.b16 %v1179
    %v1262 = vunpack.c.h.b16 %v1179
    %v1263 = vunpack.c.l.b16 %v1180
    %v1264 = vunpack.c.h.b16 %v1180
    %v1265 = vunpack.c.l.b16 %v1181
    %v1266 = vunpack.c.h.b16 %v1181
    %v1267 = vunpack.c.l.b16 %v1182
    %v1268 = vunpack.c.h.b16 %v1182
    %v1269 = vunpack.c.l.b16 %v1183
    %v1270 = vunpack.c.h.b16 %v1183
    %v1271 = vunpack.c.l.b16 %v1184
    %v1272 = vunpack.c.h.b16 %v1184
    %v1273 = vunpack.c.l.b16 %v1185
    %v1274 = vunpack.c.h.b16 %v1185
    %v1275 = vunpack.c.l.b16 %v1186
    %v1276 = vunpack.c.h.b16 %v1186
    %v1277 = vunpack.c.l.b16 %v1187
    %v1278 = vunpack.c.h.b16 %v1187
    %v1279 = vunpack.c.l.b16 %v1188
    %v1280 = vunpack.c.h.b16 %v1188
    %v1281 = vunpack.c.l.b16 %v1189
    %v1282 = vunpack.c.h.b16 %v1189
    %v1283 = vunpack.c.l.b16 %v1190
    %v1284 = vunpack.c.h.b16 %v1190
    %v1285 = vunpack.c.l.b16 %v1191
    %v1286 = vunpack.c.h.b16 %v1191
    %v1287 = vunpack.c.l.b16 %v1192
    %v1288 = vunpack.c.h.b16 %v1192
    %v1289 = vunpack.c.l.b16 %v1193
    %v1290 = vunpack.c.h.b16 %v1193
    %v1291 = vunpack.c.l.b16 %v1194
    %v1292 = vunpack.c.h.b16 %v1194
    %v1293 = vunpack.c.l.b16 %v1195
    %v1294 = vunpack.c.h.b16 %v1195
    %v1295 = vunpack.c.l.b16 %v1196
    %v1296 = vunpack.c.h.b16 %v1196
    %v1297 = vunpack.c.l.b16 %v1197
    %v1298 = vunpack.c.h.b16 %v1197
    %v1299 = vunpack.c.l.b16 %v1198
    %v1300 = vunpack.c.h.b16 %v1198
    %v1301 = vunpack.c.l.b16 %v1199
    %v1302 = vunpack.c.h.b16 %v1199
    %v1303 = vpack.c.b16 %v1241, %v1239
    %v1304 = vpack.c.b16 %v1242, %v1240
    %v1305 = vpack.c.b16 %v1245, %v1243
    %v1306 = vpack.c.b16 %v1246, %v1244
    %v1307 = vpack.c.b16 %v1249, %v1247
    %v1308 = vpack.c.b16 %v1250, %v1248
    %v1309 = vpack.c.b16 %v1253, %v1251
    %v1310 = vpack.c.b16 %v1254, %v1252
    %v1311 = vpack.c.b16 %v1257, %v1255
    %v1312 = vpack.c.b16 %v1258, %v1256
    %v1313 = vpack.c.b16 %v1261, %v1259
    %v1314 = vpack.c.b16 %v1262, %v1260
    %v1315 = vpack.c.b16 %v1265, %v1263
    %v1316 = vpack.c.b16 %v1266, %v1264
    %v1317 = vpack.c.b16 %v1269, %v1267
    %v1318 = vpack.c.b16 %v1270, %v1268
    %v1319 = vpack.c.b16 %v1273, %v1271
    %v1320 = vpack.c.b16 %v1274, %v1272
    %v1321 = vpack.c.b16 %v1277, %v1275
    %v1322 = vpack.c.b16 %v1278, %v1276
    %v1323 = vpack.c.b16 %v1281, %v1279
    %v1324 = vpack.c.b16 %v1282, %v1280
    %v1325 = vpack.c.b16 %v1285, %v1283
    %v1326 = vpack.c.b16 %v1286, %v1284
    %v1327 = vpack.c.b16 %v1289, %v1287
    %v1328 = vpack.c.b16 %v1290, %v1288
    %v1329 = vpack.c.b16 %v1293, %v1291
    %v1330 = vpack.c.b16 %v1294, %v1292
    %v1331 = vpack.c.b16 %v1297, %v1295
    %v1332 = vpack.c.b16 %v1298, %v1296
    %v1333 = vpack.c.b16 %v1301, %v1299
    %v1334 = vpack.c.b16 %v1302, %v1300
    %1367 = vmatpush.bf16.msra.mxu0 %v1317
    %1368 = vmatpush.bf16.msra.mxu0 %v1315
    %1369 = vmatpush.bf16.msra.mxu0 %v1313
    %1370 = vmatpush.bf16.msra.mxu0 %v1311
    %1371 = vmatpush.bf16.msra.mxu0 %v1309
    %1372 = vmatpush.bf16.msra.mxu0 %v1307
    %1373 = vmatpush.bf16.msra.mxu0 %v1305
    %1374 = vmatpush.bf16.msra.mxu0 %v1303
    %1375 = vmatmul.bf16.gmra.mxu0 %v1203
    %v1376 = vpop.f32.mrf.mxu0
    %v1377 = vadd.f32 0.0, %v1376
    %v1378 = vpop.f32.mrf.mxu0
    %1379 = vdwg.mxu0
    %1380 = vmatpush.bf16.msra.mxu0 %v1333
    %1381 = vmatpush.bf16.msra.mxu0 %v1331
    %1382 = vmatpush.bf16.msra.mxu0 %v1329
    %1383 = vmatpush.bf16.msra.mxu0 %v1327
    %1384 = vmatpush.bf16.msra.mxu0 %v1325
    %1385 = vmatpush.bf16.msra.mxu0 %v1323
    %1386 = vmatpush.bf16.msra.mxu0 %v1321
    %1387 = vmatpush.bf16.msra.mxu0 %v1319
    %1388 = vmatmul.bf16.gmra.mxu0 %v1204
    %v1389 = vpop.f32.mrf.mxu0
    %v1390 = vadd.f32 %v1377, %v1389
    %v1391 = vpop.f32.mrf.mxu0
    %1392 = vdwg.mxu0
    %1393 = vmatpush.bf16.msra.mxu0 %v1318
    %1394 = vmatpush.bf16.msra.mxu0 %v1316
    %1395 = vmatpush.bf16.msra.mxu0 %v1314
    %1396 = vmatpush.bf16.msra.mxu0 %v1312
    %1397 = vmatpush.bf16.msra.mxu0 %v1310
    %1398 = vmatpush.bf16.msra.mxu0 %v1308
    %1399 = vmatpush.bf16.msra.mxu0 %v1306
    %1400 = vmatpush.bf16.msra.mxu0 %v1304
    %1401 = vmatmul.bf16.gmra.mxu0 %v1203
    %v1402 = vpop.f32.mrf.mxu0
    %v1403 = vadd.f32 0.0, %v1402
    %v1404 = vpop.f32.mrf.mxu0
    %1405 = vdwg.mxu0
    %1406 = vmatpush.bf16.msra.mxu0 %v1334
    %1407 = vmatpush.bf16.msra.mxu0 %v1332
    %1408 = vmatpush.bf16.msra.mxu0 %v1330
    %1409 = vmatpush.bf16.msra.mxu0 %v1328
    %1410 = vmatpush.bf16.msra.mxu0 %v1326
    %1411 = vmatpush.bf16.msra.mxu0 %v1324
    %1412 = vmatpush.bf16.msra.mxu0 %v1322
    %1413 = vmatpush.bf16.msra.mxu0 %v1320
    %1414 = vmatmul.bf16.gmra.mxu0 %v1204
    %v1415 = vpop.f32.mrf.mxu0
    %v1416 = vadd.f32 %v1403, %v1415
    %v1417 = vpop.f32.mrf.mxu0
    %1418 = vdwg.mxu0
    %v1420 = vunpack.c.l.b16 %v1131
    %v1421 = vunpack.c.h.b16 %v1131
    %v1422 = vpack.c.b16 %v1420, %v1420
    %v1423 = vpack.c.b16 %v1421, %v1421
    %v1458 = vunpack.c.l.b16 %v1135
    %v1459 = vunpack.c.h.b16 %v1135
    %v1460 = vunpack.c.l.b16 %v1136
    %v1461 = vunpack.c.h.b16 %v1136
    %v1462 = vunpack.c.l.b16 %v1137
    %v1463 = vunpack.c.h.b16 %v1137
    %v1464 = vunpack.c.l.b16 %v1138
    %v1465 = vunpack.c.h.b16 %v1138
    %v1466 = vunpack.c.l.b16 %v1139
    %v1467 = vunpack.c.h.b16 %v1139
    %v1468 = vunpack.c.l.b16 %v1140
    %v1469 = vunpack.c.h.b16 %v1140
    %v1470 = vunpack.c.l.b16 %v1141
    %v1471 = vunpack.c.h.b16 %v1141
    %v1472 = vunpack.c.l.b16 %v1142
    %v1473 = vunpack.c.h.b16 %v1142
    %v1474 = vunpack.c.l.b16 %v1143
    %v1475 = vunpack.c.h.b16 %v1143
    %v1476 = vunpack.c.l.b16 %v1144
    %v1477 = vunpack.c.h.b16 %v1144
    %v1478 = vunpack.c.l.b16 %v1145
    %v1479 = vunpack.c.h.b16 %v1145
    %v1480 = vunpack.c.l.b16 %v1146
    %v1481 = vunpack.c.h.b16 %v1146
    %v1482 = vunpack.c.l.b16 %v1147
    %v1483 = vunpack.c.h.b16 %v1147
    %v1484 = vunpack.c.l.b16 %v1148
    %v1485 = vunpack.c.h.b16 %v1148
    %v1486 = vunpack.c.l.b16 %v1149
    %v1487 = vunpack.c.h.b16 %v1149
    %v1488 = vunpack.c.l.b16 %v1150
    %v1489 = vunpack.c.h.b16 %v1150
    %v1490 = vunpack.c.l.b16 %v1151
    %v1491 = vunpack.c.h.b16 %v1151
    %v1492 = vunpack.c.l.b16 %v1152
    %v1493 = vunpack.c.h.b16 %v1152
    %v1494 = vunpack.c.l.b16 %v1153
    %v1495 = vunpack.c.h.b16 %v1153
    %v1496 = vunpack.c.l.b16 %v1154
    %v1497 = vunpack.c.h.b16 %v1154
    %v1498 = vunpack.c.l.b16 %v1155
    %v1499 = vunpack.c.h.b16 %v1155
    %v1500 = vunpack.c.l.b16 %v1156
    %v1501 = vunpack.c.h.b16 %v1156
    %v1502 = vunpack.c.l.b16 %v1157
    %v1503 = vunpack.c.h.b16 %v1157
    %v1504 = vunpack.c.l.b16 %v1158
    %v1505 = vunpack.c.h.b16 %v1158
    %v1506 = vunpack.c.l.b16 %v1159
    %v1507 = vunpack.c.h.b16 %v1159
    %v1508 = vunpack.c.l.b16 %v1160
    %v1509 = vunpack.c.h.b16 %v1160
    %v1510 = vunpack.c.l.b16 %v1161
    %v1511 = vunpack.c.h.b16 %v1161
    %v1512 = vunpack.c.l.b16 %v1162
    %v1513 = vunpack.c.h.b16 %v1162
    %v1514 = vunpack.c.l.b16 %v1163
    %v1515 = vunpack.c.h.b16 %v1163
    %v1516 = vunpack.c.l.b16 %v1164
    %v1517 = vunpack.c.h.b16 %v1164
    %v1518 = vunpack.c.l.b16 %v1165
    %v1519 = vunpack.c.h.b16 %v1165
    %v1520 = vunpack.c.l.b16 %v1166
    %v1521 = vunpack.c.h.b16 %v1166
    %v1522 = vpack.c.b16 %v1460, %v1458
    %v1523 = vpack.c.b16 %v1461, %v1459
    %v1524 = vpack.c.b16 %v1464, %v1462
    %v1525 = vpack.c.b16 %v1465, %v1463
    %v1526 = vpack.c.b16 %v1468, %v1466
    %v1527 = vpack.c.b16 %v1469, %v1467
    %v1528 = vpack.c.b16 %v1472, %v1470
    %v1529 = vpack.c.b16 %v1473, %v1471
    %v1530 = vpack.c.b16 %v1476, %v1474
    %v1531 = vpack.c.b16 %v1477, %v1475
    %v1532 = vpack.c.b16 %v1480, %v1478
    %v1533 = vpack.c.b16 %v1481, %v1479
    %v1534 = vpack.c.b16 %v1484, %v1482
    %v1535 = vpack.c.b16 %v1485, %v1483
    %v1536 = vpack.c.b16 %v1488, %v1486
    %v1537 = vpack.c.b16 %v1489, %v1487
    %v1538 = vpack.c.b16 %v1492, %v1490
    %v1539 = vpack.c.b16 %v1493, %v1491
    %v1540 = vpack.c.b16 %v1496, %v1494
    %v1541 = vpack.c.b16 %v1497, %v1495
    %v1542 = vpack.c.b16 %v1500, %v1498
    %v1543 = vpack.c.b16 %v1501, %v1499
    %v1544 = vpack.c.b16 %v1504, %v1502
    %v1545 = vpack.c.b16 %v1505, %v1503
    %v1546 = vpack.c.b16 %v1508, %v1506
    %v1547 = vpack.c.b16 %v1509, %v1507
    %v1548 = vpack.c.b16 %v1512, %v1510
    %v1549 = vpack.c.b16 %v1513, %v1511
    %v1550 = vpack.c.b16 %v1516, %v1514
    %v1551 = vpack.c.b16 %v1517, %v1515
    %v1552 = vpack.c.b16 %v1520, %v1518
    %v1553 = vpack.c.b16 %v1521, %v1519
    %1586 = vmatpush.bf16.msra.mxu0 %v1536
    %1587 = vmatpush.bf16.msra.mxu0 %v1534
    %1588 = vmatpush.bf16.msra.mxu0 %v1532
    %1589 = vmatpush.bf16.msra.mxu0 %v1530
    %1590 = vmatpush.bf16.msra.mxu0 %v1528
    %1591 = vmatpush.bf16.msra.mxu0 %v1526
    %1592 = vmatpush.bf16.msra.mxu0 %v1524
    %1593 = vmatpush.bf16.msra.mxu0 %v1522
    %1594 = vmatmul.bf16.gmra.mxu0 %v1422
    %v1595 = vpop.f32.mrf.mxu0
    %v1596 = vadd.f32 %v1390, %v1595
    %v1597 = vpop.f32.mrf.mxu0
    %1598 = vdwg.mxu0
    %1599 = vmatpush.bf16.msra.mxu0 %v1552
    %1600 = vmatpush.bf16.msra.mxu0 %v1550
    %1601 = vmatpush.bf16.msra.mxu0 %v1548
    %1602 = vmatpush.bf16.msra.mxu0 %v1546
    %1603 = vmatpush.bf16.msra.mxu0 %v1544
    %1604 = vmatpush.bf16.msra.mxu0 %v1542
    %1605 = vmatpush.bf16.msra.mxu0 %v1540
    %1606 = vmatpush.bf16.msra.mxu0 %v1538
    %1607 = vmatmul.bf16.gmra.mxu0 %v1423
    %v1608 = vpop.f32.mrf.mxu0
    %v1609 = vadd.f32 %v1596, %v1608
    %v1610 = vpop.f32.mrf.mxu0
    %1611 = vdwg.mxu0
    %1612 = vmatpush.bf16.msra.mxu0 %v1537
    %1613 = vmatpush.bf16.msra.mxu0 %v1535
    %1614 = vmatpush.bf16.msra.mxu0 %v1533
    %1615 = vmatpush.bf16.msra.mxu0 %v1531
    %1616 = vmatpush.bf16.msra.mxu0 %v1529
    %1617 = vmatpush.bf16.msra.mxu0 %v1527
    %1618 = vmatpush.bf16.msra.mxu0 %v1525
    %1619 = vmatpush.bf16.msra.mxu0 %v1523
    %1620 = vmatmul.bf16.gmra.mxu0 %v1422
    %v1621 = vpop.f32.mrf.mxu0
    %v1622 = vadd.f32 %v1416, %v1621
    %v1623 = vpop.f32.mrf.mxu0
    %1624 = vdwg.mxu0
    %1625 = vmatpush.bf16.msra.mxu0 %v1553
    %1626 = vmatpush.bf16.msra.mxu0 %v1551
    %1627 = vmatpush.bf16.msra.mxu0 %v1549
    %1628 = vmatpush.bf16.msra.mxu0 %v1547
    %1629 = vmatpush.bf16.msra.mxu0 %v1545
    %1630 = vmatpush.bf16.msra.mxu0 %v1543
    %1631 = vmatpush.bf16.msra.mxu0 %v1541
    %1632 = vmatpush.bf16.msra.mxu0 %v1539
    %1633 = vmatmul.bf16.gmra.mxu0 %v1423
    %v1634 = vpop.f32.mrf.mxu0
    %v1635 = vadd.f32 %v1622, %v1634
    %v1636 = vpop.f32.mrf.mxu0
    %1637 = vdwg.mxu0
    %s1638 = scalar_lea.vmem [#allocation8], 512
    %v1639 = vld [vmem:[%s1638] sm:$0xff]
    %v1640 = vld [vmem:[%s1638 + $0x8] sm:$0xff]
    %v1641 = vld [vmem:[%s1638 + $0x10] sm:$0xff]
    %v1642 = vld [vmem:[%s1638 + $0x18] sm:$0xff]
    %v1643 = vld [vmem:[%s1638 + $0x20] sm:$0xff]
    %v1644 = vld [vmem:[%s1638 + $0x28] sm:$0xff]
    %v1645 = vld [vmem:[%s1638 + $0x30] sm:$0xff]
    %v1646 = vld [vmem:[%s1638 + $0x38] sm:$0xff]
    %v1647 = vld [vmem:[%s1638 + $0x40] sm:$0xff]
    %v1648 = vld [vmem:[%s1638 + $0x48] sm:$0xff]
    %v1649 = vld [vmem:[%s1638 + $0x50] sm:$0xff]
    %v1650 = vld [vmem:[%s1638 + $0x58] sm:$0xff]
    %v1651 = vld [vmem:[%s1638 + $0x60] sm:$0xff]
    %v1652 = vld [vmem:[%s1638 + $0x68] sm:$0xff]
    %v1653 = vld [vmem:[%s1638 + $0x70] sm:$0xff]
    %v1654 = vld [vmem:[%s1638 + $0x78] sm:$0xff]
    %v1655 = vld [vmem:[%s1638 + $0x80] sm:$0xff]
    %v1656 = vld [vmem:[%s1638 + $0x88] sm:$0xff]
    %v1657 = vld [vmem:[%s1638 + $0x90] sm:$0xff]
    %v1658 = vld [vmem:[%s1638 + $0x98] sm:$0xff]
    %v1659 = vld [vmem:[%s1638 + $0xa0] sm:$0xff]
    %v1660 = vld [vmem:[%s1638 + $0xa8] sm:$0xff]
    %v1661 = vld [vmem:[%s1638 + $0xb0] sm:$0xff]
    %v1662 = vld [vmem:[%s1638 + $0xb8] sm:$0xff]
    %v1663 = vld [vmem:[%s1638 + $0xc0] sm:$0xff]
    %v1664 = vld [vmem:[%s1638 + $0xc8] sm:$0xff]
    %v1665 = vld [vmem:[%s1638 + $0xd0] sm:$0xff]
    %v1666 = vld [vmem:[%s1638 + $0xd8] sm:$0xff]
    %v1667 = vld [vmem:[%s1638 + $0xe0] sm:$0xff]
    %v1668 = vld [vmem:[%s1638 + $0xe8] sm:$0xff]
    %v1669 = vld [vmem:[%s1638 + $0xf0] sm:$0xff]
    %v1670 = vld [vmem:[%s1638 + $0xf8] sm:$0xff]
    %v1672 = vunpack.c.l.b16 %v1133
    %v1673 = vunpack.c.h.b16 %v1133
    %v1674 = vpack.c.b16 %v1672, %v1672
    %v1675 = vpack.c.b16 %v1673, %v1673
    %v1710 = vunpack.c.l.b16 %v1639
    %v1711 = vunpack.c.h.b16 %v1639
    %v1712 = vunpack.c.l.b16 %v1640
    %v1713 = vunpack.c.h.b16 %v1640
    %v1714 = vunpack.c.l.b16 %v1641
    %v1715 = vunpack.c.h.b16 %v1641
    %v1716 = vunpack.c.l.b16 %v1642
    %v1717 = vunpack.c.h.b16 %v1642
    %v1718 = vunpack.c.l.b16 %v1643
    %v1719 = vunpack.c.h.b16 %v1643
    %v1720 = vunpack.c.l.b16 %v1644
    %v1721 = vunpack.c.h.b16 %v1644
    %v1722 = vunpack.c.l.b16 %v1645
    %v1723 = vunpack.c.h.b16 %v1645
    %v1724 = vunpack.c.l.b16 %v1646
    %v1725 = vunpack.c.h.b16 %v1646
    %v1726 = vunpack.c.l.b16 %v1647
    %v1727 = vunpack.c.h.b16 %v1647
    %v1728 = vunpack.c.l.b16 %v1648
    %v1729 = vunpack.c.h.b16 %v1648
    %v1730 = vunpack.c.l.b16 %v1649
    %v1731 = vunpack.c.h.b16 %v1649
    %v1732 = vunpack.c.l.b16 %v1650
    %v1733 = vunpack.c.h.b16 %v1650
    %v1734 = vunpack.c.l.b16 %v1651
    %v1735 = vunpack.c.h.b16 %v1651
    %v1736 = vunpack.c.l.b16 %v1652
    %v1737 = vunpack.c.h.b16 %v1652
    %v1738 = vunpack.c.l.b16 %v1653
    %v1739 = vunpack.c.h.b16 %v1653
    %v1740 = vunpack.c.l.b16 %v1654
    %v1741 = vunpack.c.h.b16 %v1654
    %v1742 = vunpack.c.l.b16 %v1655
    %v1743 = vunpack.c.h.b16 %v1655
    %v1744 = vunpack.c.l.b16 %v1656
    %v1745 = vunpack.c.h.b16 %v1656
    %v1746 = vunpack.c.l.b16 %v1657
    %v1747 = vunpack.c.h.b16 %v1657
    %v1748 = vunpack.c.l.b16 %v1658
    %v1749 = vunpack.c.h.b16 %v1658
    %v1750 = vunpack.c.l.b16 %v1659
    %v1751 = vunpack.c.h.b16 %v1659
    %v1752 = vunpack.c.l.b16 %v1660
    %v1753 = vunpack.c.h.b16 %v1660
    %v1754 = vunpack.c.l.b16 %v1661
    %v1755 = vunpack.c.h.b16 %v1661
    %v1756 = vunpack.c.l.b16 %v1662
    %v1757 = vunpack.c.h.b16 %v1662
    %v1758 = vunpack.c.l.b16 %v1663
    %v1759 = vunpack.c.h.b16 %v1663
    %v1760 = vunpack.c.l.b16 %v1664
    %v1761 = vunpack.c.h.b16 %v1664
    %v1762 = vunpack.c.l.b16 %v1665
    %v1763 = vunpack.c.h.b16 %v1665
    %v1764 = vunpack.c.l.b16 %v1666
    %v1765 = vunpack.c.h.b16 %v1666
    %v1766 = vunpack.c.l.b16 %v1667
    %v1767 = vunpack.c.h.b16 %v1667
    %v1768 = vunpack.c.l.b16 %v1668
    %v1769 = vunpack.c.h.b16 %v1668
    %v1770 = vunpack.c.l.b16 %v1669
    %v1771 = vunpack.c.h.b16 %v1669
    %v1772 = vunpack.c.l.b16 %v1670
    %v1773 = vunpack.c.h.b16 %v1670
    %v1774 = vpack.c.b16 %v1712, %v1710
    %v1775 = vpack.c.b16 %v1713, %v1711
    %v1776 = vpack.c.b16 %v1716, %v1714
    %v1777 = vpack.c.b16 %v1717, %v1715
    %v1778 = vpack.c.b16 %v1720, %v1718
    %v1779 = vpack.c.b16 %v1721, %v1719
    %v1780 = vpack.c.b16 %v1724, %v1722
    %v1781 = vpack.c.b16 %v1725, %v1723
    %v1782 = vpack.c.b16 %v1728, %v1726
    %v1783 = vpack.c.b16 %v1729, %v1727
    %v1784 = vpack.c.b16 %v1732, %v1730
    %v1785 = vpack.c.b16 %v1733, %v1731
    %v1786 = vpack.c.b16 %v1736, %v1734
    %v1787 = vpack.c.b16 %v1737, %v1735
    %v1788 = vpack.c.b16 %v1740, %v1738
    %v1789 = vpack.c.b16 %v1741, %v1739
    %v1790 = vpack.c.b16 %v1744, %v1742
    %v1791 = vpack.c.b16 %v1745, %v1743
    %v1792 = vpack.c.b16 %v1748, %v1746
    %v1793 = vpack.c.b16 %v1749, %v1747
    %v1794 = vpack.c.b16 %v1752, %v1750
    %v1795 = vpack.c.b16 %v1753, %v1751
    %v1796 = vpack.c.b16 %v1756, %v1754
    %v1797 = vpack.c.b16 %v1757, %v1755
    %v1798 = vpack.c.b16 %v1760, %v1758
    %v1799 = vpack.c.b16 %v1761, %v1759
    %v1800 = vpack.c.b16 %v1764, %v1762
    %v1801 = vpack.c.b16 %v1765, %v1763
    %v1802 = vpack.c.b16 %v1768, %v1766
    %v1803 = vpack.c.b16 %v1769, %v1767
    %v1804 = vpack.c.b16 %v1772, %v1770
    %v1805 = vpack.c.b16 %v1773, %v1771
    %1838 = vmatpush.bf16.msra.mxu0 %v1788
    %1839 = vmatpush.bf16.msra.mxu0 %v1786
    %1840 = vmatpush.bf16.msra.mxu0 %v1784
    %1841 = vmatpush.bf16.msra.mxu0 %v1782
    %1842 = vmatpush.bf16.msra.mxu0 %v1780
    %1843 = vmatpush.bf16.msra.mxu0 %v1778
    %1844 = vmatpush.bf16.msra.mxu0 %v1776
    %1845 = vmatpush.bf16.msra.mxu0 %v1774
    %1846 = vmatmul.bf16.gmra.mxu0 %v1674
    %v1847 = vpop.f32.mrf.mxu0
    %v1848 = vadd.f32 0.0, %v1847
    %v1849 = vpop.f32.mrf.mxu0
    %1850 = vdwg.mxu0
    %1851 = vmatpush.bf16.msra.mxu0 %v1804
    %1852 = vmatpush.bf16.msra.mxu0 %v1802
    %1853 = vmatpush.bf16.msra.mxu0 %v1800
    %1854 = vmatpush.bf16.msra.mxu0 %v1798
    %1855 = vmatpush.bf16.msra.mxu0 %v1796
    %1856 = vmatpush.bf16.msra.mxu0 %v1794
    %1857 = vmatpush.bf16.msra.mxu0 %v1792
    %1858 = vmatpush.bf16.msra.mxu0 %v1790
    %1859 = vmatmul.bf16.gmra.mxu0 %v1675
    %v1860 = vpop.f32.mrf.mxu0
    %v1861 = vadd.f32 %v1848, %v1860
    %v1862 = vpop.f32.mrf.mxu0
    %1863 = vdwg.mxu0
    %1864 = vmatpush.bf16.msra.mxu0 %v1789
    %1865 = vmatpush.bf16.msra.mxu0 %v1787
    %1866 = vmatpush.bf16.msra.mxu0 %v1785
    %1867 = vmatpush.bf16.msra.mxu0 %v1783
    %1868 = vmatpush.bf16.msra.mxu0 %v1781
    %1869 = vmatpush.bf16.msra.mxu0 %v1779
    %1870 = vmatpush.bf16.msra.mxu0 %v1777
    %1871 = vmatpush.bf16.msra.mxu0 %v1775
    %1872 = vmatmul.bf16.gmra.mxu0 %v1674
    %v1873 = vpop.f32.mrf.mxu0
    %v1874 = vadd.f32 0.0, %v1873
    %v1875 = vpop.f32.mrf.mxu0
    %1876 = vdwg.mxu0
    %1877 = vmatpush.bf16.msra.mxu0 %v1805
    %1878 = vmatpush.bf16.msra.mxu0 %v1803
    %1879 = vmatpush.bf16.msra.mxu0 %v1801
    %1880 = vmatpush.bf16.msra.mxu0 %v1799
    %1881 = vmatpush.bf16.msra.mxu0 %v1797
    %1882 = vmatpush.bf16.msra.mxu0 %v1795
    %1883 = vmatpush.bf16.msra.mxu0 %v1793
    %1884 = vmatpush.bf16.msra.mxu0 %v1791
    %1885 = vmatmul.bf16.gmra.mxu0 %v1675
    %v1886 = vpop.f32.mrf.mxu0
    %v1887 = vadd.f32 %v1874, %v1886
    %v1888 = vpop.f32.mrf.mxu0
    %1889 = vdwg.mxu0
    %v1890 = vadd.f32 %v1609, %v1861
    %v1891 = vadd.f32 %v1635, %v1887
    %s1892 = scalar_lea.vmem [#allocation8], 768
    %v1893 = vld [vmem:[%s1892] sm:$0xff]
    %v1894 = vld [vmem:[%s1892 + $0x8] sm:$0xff]
    %v1895 = vld [vmem:[%s1892 + $0x10] sm:$0xff]
    %v1896 = vld [vmem:[%s1892 + $0x18] sm:$0xff]
    %v1897 = vld [vmem:[%s1892 + $0x20] sm:$0xff]
    %v1898 = vld [vmem:[%s1892 + $0x28] sm:$0xff]
    %v1899 = vld [vmem:[%s1892 + $0x30] sm:$0xff]
    %v1900 = vld [vmem:[%s1892 + $0x38] sm:$0xff]
    %v1901 = vld [vmem:[%s1892 + $0x40] sm:$0xff]
    %v1902 = vld [vmem:[%s1892 + $0x48] sm:$0xff]
    %v1903 = vld [vmem:[%s1892 + $0x50] sm:$0xff]
    %v1904 = vld [vmem:[%s1892 + $0x58] sm:$0xff]
    %v1905 = vld [vmem:[%s1892 + $0x60] sm:$0xff]
    %v1906 = vld [vmem:[%s1892 + $0x68] sm:$0xff]
    %v1907 = vld [vmem:[%s1892 + $0x70] sm:$0xff]
    %v1908 = vld [vmem:[%s1892 + $0x78] sm:$0xff]
    %v1909 = vld [vmem:[%s1892 + $0x80] sm:$0xff]
    %v1910 = vld [vmem:[%s1892 + $0x88] sm:$0xff]
    %v1911 = vld [vmem:[%s1892 + $0x90] sm:$0xff]
    %v1912 = vld [vmem:[%s1892 + $0x98] sm:$0xff]
    %v1913 = vld [vmem:[%s1892 + $0xa0] sm:$0xff]
    %v1914 = vld [vmem:[%s1892 + $0xa8] sm:$0xff]
    %v1915 = vld [vmem:[%s1892 + $0xb0] sm:$0xff]
    %v1916 = vld [vmem:[%s1892 + $0xb8] sm:$0xff]
    %v1917 = vld [vmem:[%s1892 + $0xc0] sm:$0xff]
    %v1918 = vld [vmem:[%s1892 + $0xc8] sm:$0xff]
    %v1919 = vld [vmem:[%s1892 + $0xd0] sm:$0xff]
    %v1920 = vld [vmem:[%s1892 + $0xd8] sm:$0xff]
    %v1921 = vld [vmem:[%s1892 + $0xe0] sm:$0xff]
    %v1922 = vld [vmem:[%s1892 + $0xe8] sm:$0xff]
    %v1923 = vld [vmem:[%s1892 + $0xf0] sm:$0xff]
    %v1924 = vld [vmem:[%s1892 + $0xf8] sm:$0xff]
    %v1926 = vunpack.c.l.b16 %v1134
    %v1927 = vunpack.c.h.b16 %v1134
    %v1928 = vpack.c.b16 %v1926, %v1926
    %v1929 = vpack.c.b16 %v1927, %v1927
    %v1964 = vunpack.c.l.b16 %v1893
    %v1965 = vunpack.c.h.b16 %v1893
    %v1966 = vunpack.c.l.b16 %v1894
    %v1967 = vunpack.c.h.b16 %v1894
    %v1968 = vunpack.c.l.b16 %v1895
    %v1969 = vunpack.c.h.b16 %v1895
    %v1970 = vunpack.c.l.b16 %v1896
    %v1971 = vunpack.c.h.b16 %v1896
    %v1972 = vunpack.c.l.b16 %v1897
    %v1973 = vunpack.c.h.b16 %v1897
    %v1974 = vunpack.c.l.b16 %v1898
    %v1975 = vunpack.c.h.b16 %v1898
    %v1976 = vunpack.c.l.b16 %v1899
    %v1977 = vunpack.c.h.b16 %v1899
    %v1978 = vunpack.c.l.b16 %v1900
    %v1979 = vunpack.c.h.b16 %v1900
    %v1980 = vunpack.c.l.b16 %v1901
    %v1981 = vunpack.c.h.b16 %v1901
    %v1982 = vunpack.c.l.b16 %v1902
    %v1983 = vunpack.c.h.b16 %v1902
    %v1984 = vunpack.c.l.b16 %v1903
    %v1985 = vunpack.c.h.b16 %v1903
    %v1986 = vunpack.c.l.b16 %v1904
    %v1987 = vunpack.c.h.b16 %v1904
    %v1988 = vunpack.c.l.b16 %v1905
    %v1989 = vunpack.c.h.b16 %v1905
    %v1990 = vunpack.c.l.b16 %v1906
    %v1991 = vunpack.c.h.b16 %v1906
    %v1992 = vunpack.c.l.b16 %v1907
    %v1993 = vunpack.c.h.b16 %v1907
    %v1994 = vunpack.c.l.b16 %v1908
    %v1995 = vunpack.c.h.b16 %v1908
    %v1996 = vunpack.c.l.b16 %v1909
    %v1997 = vunpack.c.h.b16 %v1909
    %v1998 = vunpack.c.l.b16 %v1910
    %v1999 = vunpack.c.h.b16 %v1910
    %v2000 = vunpack.c.l.b16 %v1911
    %v2001 = vunpack.c.h.b16 %v1911
    %v2002 = vunpack.c.l.b16 %v1912
    %v2003 = vunpack.c.h.b16 %v1912
    %v2004 = vunpack.c.l.b16 %v1913
    %v2005 = vunpack.c.h.b16 %v1913
    %v2006 = vunpack.c.l.b16 %v1914
    %v2007 = vunpack.c.h.b16 %v1914
    %v2008 = vunpack.c.l.b16 %v1915
    %v2009 = vunpack.c.h.b16 %v1915
    %v2010 = vunpack.c.l.b16 %v1916
    %v2011 = vunpack.c.h.b16 %v1916
    %v2012 = vunpack.c.l.b16 %v1917
    %v2013 = vunpack.c.h.b16 %v1917
    %v2014 = vunpack.c.l.b16 %v1918
    %v2015 = vunpack.c.h.b16 %v1918
    %v2016 = vunpack.c.l.b16 %v1919
    %v2017 = vunpack.c.h.b16 %v1919
    %v2018 = vunpack.c.l.b16 %v1920
    %v2019 = vunpack.c.h.b16 %v1920
    %v2020 = vunpack.c.l.b16 %v1921
    %v2021 = vunpack.c.h.b16 %v1921
    %v2022 = vunpack.c.l.b16 %v1922
    %v2023 = vunpack.c.h.b16 %v1922
    %v2024 = vunpack.c.l.b16 %v1923
    %v2025 = vunpack.c.h.b16 %v1923
    %v2026 = vunpack.c.l.b16 %v1924
    %v2027 = vunpack.c.h.b16 %v1924
    %v2028 = vpack.c.b16 %v1966, %v1964
    %v2029 = vpack.c.b16 %v1967, %v1965
    %v2030 = vpack.c.b16 %v1970, %v1968
    %v2031 = vpack.c.b16 %v1971, %v1969
    %v2032 = vpack.c.b16 %v1974, %v1972
    %v2033 = vpack.c.b16 %v1975, %v1973
    %v2034 = vpack.c.b16 %v1978, %v1976
    %v2035 = vpack.c.b16 %v1979, %v1977
    %v2036 = vpack.c.b16 %v1982, %v1980
    %v2037 = vpack.c.b16 %v1983, %v1981
    %v2038 = vpack.c.b16 %v1986, %v1984
    %v2039 = vpack.c.b16 %v1987, %v1985
    %v2040 = vpack.c.b16 %v1990, %v1988
    %v2041 = vpack.c.b16 %v1991, %v1989
    %v2042 = vpack.c.b16 %v1994, %v1992
    %v2043 = vpack.c.b16 %v1995, %v1993
    %v2044 = vpack.c.b16 %v1998, %v1996
    %v2045 = vpack.c.b16 %v1999, %v1997
    %v2046 = vpack.c.b16 %v2002, %v2000
    %v2047 = vpack.c.b16 %v2003, %v2001
    %v2048 = vpack.c.b16 %v2006, %v2004
    %v2049 = vpack.c.b16 %v2007, %v2005
    %v2050 = vpack.c.b16 %v2010, %v2008
    %v2051 = vpack.c.b16 %v2011, %v2009
    %v2052 = vpack.c.b16 %v2014, %v2012
    %v2053 = vpack.c.b16 %v2015, %v2013
    %v2054 = vpack.c.b16 %v2018, %v2016
    %v2055 = vpack.c.b16 %v2019, %v2017
    %v2056 = vpack.c.b16 %v2022, %v2020
    %v2057 = vpack.c.b16 %v2023, %v2021
    %v2058 = vpack.c.b16 %v2026, %v2024
    %v2059 = vpack.c.b16 %v2027, %v2025
    %2092 = vmatpush.bf16.msra.mxu0 %v2042
    %2093 = vmatpush.bf16.msra.mxu0 %v2040
    %2094 = vmatpush.bf16.msra.mxu0 %v2038
    %2095 = vmatpush.bf16.msra.mxu0 %v2036
    %2096 = vmatpush.bf16.msra.mxu0 %v2034
    %2097 = vmatpush.bf16.msra.mxu0 %v2032
    %2098 = vmatpush.bf16.msra.mxu0 %v2030
    %2099 = vmatpush.bf16.msra.mxu0 %v2028
    %2100 = vmatmul.bf16.gmra.mxu0 %v1928
    %v2101 = vpop.f32.mrf.mxu0
    %v2102 = vadd.f32 0.0, %v2101
    %v2103 = vpop.f32.mrf.mxu0
    %2104 = vdwg.mxu0
    %2105 = vmatpush.bf16.msra.mxu0 %v2058
    %2106 = vmatpush.bf16.msra.mxu0 %v2056
    %2107 = vmatpush.bf16.msra.mxu0 %v2054
    %2108 = vmatpush.bf16.msra.mxu0 %v2052
    %2109 = vmatpush.bf16.msra.mxu0 %v2050
    %2110 = vmatpush.bf16.msra.mxu0 %v2048
    %2111 = vmatpush.bf16.msra.mxu0 %v2046
    %2112 = vmatpush.bf16.msra.mxu0 %v2044
    %2113 = vmatmul.bf16.gmra.mxu0 %v1929
    %v2114 = vpop.f32.mrf.mxu0
    %v2115 = vadd.f32 %v2102, %v2114
    %v2116 = vpop.f32.mrf.mxu0
    %2117 = vdwg.mxu0
    %2118 = vmatpush.bf16.msra.mxu0 %v2043
    %2119 = vmatpush.bf16.msra.mxu0 %v2041
    %2120 = vmatpush.bf16.msra.mxu0 %v2039
    %2121 = vmatpush.bf16.msra.mxu0 %v2037
    %2122 = vmatpush.bf16.msra.mxu0 %v2035
    %2123 = vmatpush.bf16.msra.mxu0 %v2033
    %2124 = vmatpush.bf16.msra.mxu0 %v2031
    %2125 = vmatpush.bf16.msra.mxu0 %v2029
    %2126 = vmatmul.bf16.gmra.mxu0 %v1928
    %v2127 = vpop.f32.mrf.mxu0
    %v2128 = vadd.f32 0.0, %v2127
    %v2129 = vpop.f32.mrf.mxu0
    %2130 = vdwg.mxu0
    %2131 = vmatpush.bf16.msra.mxu0 %v2059
    %2132 = vmatpush.bf16.msra.mxu0 %v2057
    %2133 = vmatpush.bf16.msra.mxu0 %v2055
    %2134 = vmatpush.bf16.msra.mxu0 %v2053
    %2135 = vmatpush.bf16.msra.mxu0 %v2051
    %2136 = vmatpush.bf16.msra.mxu0 %v2049
    %2137 = vmatpush.bf16.msra.mxu0 %v2047
    %2138 = vmatpush.bf16.msra.mxu0 %v2045
    %2139 = vmatmul.bf16.gmra.mxu0 %v1929
    %v2140 = vpop.f32.mrf.mxu0
    %v2141 = vadd.f32 %v2128, %v2140
    %v2142 = vpop.f32.mrf.mxu0
    %2143 = vdwg.mxu0
    %v2144 = vadd.f32 %v1890, %v2115
    %v2145 = vadd.f32 %v1891, %v2141
    %v2146 = vld [vmem:[%s14] sm:$0x3]
    %v2148 = vperm.slane %v2146, 0
    %v2149 = vperm.slane %v2146, 1
    %v2152 = vadd.f32 %v2144, %v2148
    %v2153 = vadd.f32 %v2145, %v2149
    %v2154 = vmax.f32 %v2152, 0.0
    %v2155 = vmax.f32 %v2153, 0.0
    %v2156 = vpack.c.bf16 %v2154, %v2154
    %v2157 = vpack.c.bf16 %v2155, %v2155
    %v2158 = vld [vmem:[#allocation10] sm:$0xf]
    %v2159 = vld [vmem:[#allocation10 + $0x4] sm:$0xf]
    %v2160 = vld [vmem:[#allocation10 + $0x8] sm:$0xf]
    %v2161 = vld [vmem:[#allocation10 + $0xc] sm:$0xf]
    %v2162 = vld [vmem:[#allocation10 + $0x10] sm:$0xf]
    %v2163 = vld [vmem:[#allocation10 + $0x14] sm:$0xf]
    %v2164 = vld [vmem:[#allocation10 + $0x18] sm:$0xf]
    %v2165 = vld [vmem:[#allocation10 + $0x1c] sm:$0xf]
    %v2166 = vld [vmem:[#allocation10 + $0x20] sm:$0xf]
    %v2167 = vld [vmem:[#allocation10 + $0x24] sm:$0xf]
    %v2168 = vld [vmem:[#allocation10 + $0x28] sm:$0xf]
    %v2169 = vld [vmem:[#allocation10 + $0x2c] sm:$0xf]
    %v2170 = vld [vmem:[#allocation10 + $0x30] sm:$0xf]
    %v2171 = vld [vmem:[#allocation10 + $0x34] sm:$0xf]
    %v2172 = vld [vmem:[#allocation10 + $0x38] sm:$0xf]
    %v2173 = vld [vmem:[#allocation10 + $0x3c] sm:$0xf]
    %v2174 = vld [vmem:[#allocation10 + $0x40] sm:$0xf]
    %v2175 = vld [vmem:[#allocation10 + $0x44] sm:$0xf]
    %v2176 = vld [vmem:[#allocation10 + $0x48] sm:$0xf]
    %v2177 = vld [vmem:[#allocation10 + $0x4c] sm:$0xf]
    %v2178 = vld [vmem:[#allocation10 + $0x50] sm:$0xf]
    %v2179 = vld [vmem:[#allocation10 + $0x54] sm:$0xf]
    %v2180 = vld [vmem:[#allocation10 + $0x58] sm:$0xf]
    %v2181 = vld [vmem:[#allocation10 + $0x5c] sm:$0xf]
    %v2182 = vld [vmem:[#allocation10 + $0x60] sm:$0xf]
    %v2183 = vld [vmem:[#allocation10 + $0x64] sm:$0xf]
    %v2184 = vld [vmem:[#allocation10 + $0x68] sm:$0xf]
    %v2185 = vld [vmem:[#allocation10 + $0x6c] sm:$0xf]
    %v2186 = vld [vmem:[#allocation10 + $0x70] sm:$0xf]
    %v2187 = vld [vmem:[#allocation10 + $0x74] sm:$0xf]
    %v2188 = vld [vmem:[#allocation10 + $0x78] sm:$0xf]
    %v2189 = vld [vmem:[#allocation10 + $0x7c] sm:$0xf]
    %v2190 = vld [vmem:[%s16] sm:$0x1]
    %v2192 = vperm.slane %v2190, 0
    %v2226 = vunpack.c.l.b16 %v2158
    %v2227 = vunpack.c.l.b16 %v2159
    %v2228 = vunpack.c.l.b16 %v2160
    %v2229 = vunpack.c.l.b16 %v2161
    %v2230 = vunpack.c.l.b16 %v2162
    %v2231 = vunpack.c.l.b16 %v2163
    %v2232 = vunpack.c.l.b16 %v2164
    %v2233 = vunpack.c.l.b16 %v2165
    %v2234 = vunpack.c.l.b16 %v2166
    %v2235 = vunpack.c.l.b16 %v2167
    %v2236 = vunpack.c.l.b16 %v2168
    %v2237 = vunpack.c.l.b16 %v2169
    %v2238 = vunpack.c.l.b16 %v2170
    %v2239 = vunpack.c.l.b16 %v2171
    %v2240 = vunpack.c.l.b16 %v2172
    %v2241 = vunpack.c.l.b16 %v2173
    %v2242 = vunpack.c.l.b16 %v2174
    %v2243 = vunpack.c.l.b16 %v2175
    %v2244 = vunpack.c.l.b16 %v2176
    %v2245 = vunpack.c.l.b16 %v2177
    %v2246 = vunpack.c.l.b16 %v2178
    %v2247 = vunpack.c.l.b16 %v2179
    %v2248 = vunpack.c.l.b16 %v2180
    %v2249 = vunpack.c.l.b16 %v2181
    %v2250 = vunpack.c.l.b16 %v2182
    %v2251 = vunpack.c.l.b16 %v2183
    %v2252 = vunpack.c.l.b16 %v2184
    %v2253 = vunpack.c.l.b16 %v2185
    %v2254 = vunpack.c.l.b16 %v2186
    %v2255 = vunpack.c.l.b16 %v2187
    %v2256 = vunpack.c.l.b16 %v2188
    %v2257 = vunpack.c.l.b16 %v2189
    %v2258 = vpack.c.b16 %v2227, %v2226
    %v2259 = vpack.c.b16 %v2229, %v2228
    %v2260 = vpack.c.b16 %v2231, %v2230
    %v2261 = vpack.c.b16 %v2233, %v2232
    %v2262 = vpack.c.b16 %v2235, %v2234
    %v2263 = vpack.c.b16 %v2237, %v2236
    %v2264 = vpack.c.b16 %v2239, %v2238
    %v2265 = vpack.c.b16 %v2241, %v2240
    %v2266 = vpack.c.b16 %v2243, %v2242
    %v2267 = vpack.c.b16 %v2245, %v2244
    %v2268 = vpack.c.b16 %v2247, %v2246
    %v2269 = vpack.c.b16 %v2249, %v2248
    %v2270 = vpack.c.b16 %v2251, %v2250
    %v2271 = vpack.c.b16 %v2253, %v2252
    %v2272 = vpack.c.b16 %v2255, %v2254
    %v2273 = vpack.c.b16 %v2257, %v2256
    %2290 = vmatpush.bf16.msra.mxu0 %v2265
    %2291 = vmatpush.bf16.msra.mxu0 %v2264
    %2292 = vmatpush.bf16.msra.mxu0 %v2263
    %2293 = vmatpush.bf16.msra.mxu0 %v2262
    %2294 = vmatpush.bf16.msra.mxu0 %v2261
    %2295 = vmatpush.bf16.msra.mxu0 %v2260
    %2296 = vmatpush.bf16.msra.mxu0 %v2259
    %2297 = vmatpush.bf16.msra.mxu0 %v2258
    %2298 = vmatmul.bf16.gmra.mxu0 %v2156
    %v2299 = vpop.f32.mrf.mxu0
    %v2300 = vadd.f32 %v2192, %v2299
    %v2301 = vpop.f32.mrf.mxu0
    %2302 = vdwg.mxu0
    %2303 = vmatpush.bf16.msra.mxu0 %v2273
    %2304 = vmatpush.bf16.msra.mxu0 %v2272
    %2305 = vmatpush.bf16.msra.mxu0 %v2271
    %2306 = vmatpush.bf16.msra.mxu0 %v2270
    %2307 = vmatpush.bf16.msra.mxu0 %v2269
    %2308 = vmatpush.bf16.msra.mxu0 %v2268
    %2309 = vmatpush.bf16.msra.mxu0 %v2267
    %2310 = vmatpush.bf16.msra.mxu0 %v2266
    %2311 = vmatmul.bf16.gmra.mxu0 %v2157
    %v2312 = vpop.f32.mrf.mxu0
    %v2313 = vadd.f32 %v2300, %v2312
    %v2314 = vpop.f32.mrf.mxu0
    %2315 = vdwg.mxu0
    %v2316 = vmax.f32 %v2313, 0.0
    %v2317 = vpack.c.bf16 %v2316, %v2316
    %v2318 = vld [vmem:[%s17] sm:$0xf]
    %v2319 = vld [vmem:[%s17 + $0x4] sm:$0xf]
    %v2320 = vld [vmem:[%s17 + $0x8] sm:$0xf]
    %v2321 = vld [vmem:[%s17 + $0xc] sm:$0xf]
    %v2322 = vld [vmem:[%s17 + $0x10] sm:$0xf]
    %v2323 = vld [vmem:[%s17 + $0x14] sm:$0xf]
    %v2324 = vld [vmem:[%s17 + $0x18] sm:$0xf]
    %v2325 = vld [vmem:[%s17 + $0x1c] sm:$0xf]
    %v2326 = vld [vmem:[%s17 + $0x20] sm:$0xf]
    %v2327 = vld [vmem:[%s17 + $0x24] sm:$0xf]
    %v2328 = vld [vmem:[%s17 + $0x28] sm:$0xf]
    %v2329 = vld [vmem:[%s17 + $0x2c] sm:$0xf]
    %v2330 = vld [vmem:[%s17 + $0x30] sm:$0xf]
    %v2331 = vld [vmem:[%s17 + $0x34] sm:$0xf]
    %v2332 = vld [vmem:[%s17 + $0x38] sm:$0xf]
    %v2333 = vld [vmem:[%s17 + $0x3c] sm:$0xf]
    %v2334 = vld [vmem:[%s18] sm:$0x1]
    %v2336 = vperm.slane %v2334, 0
    %v2354 = vunpack.c.l.b16 %v2318
    %v2355 = vunpack.c.l.b16 %v2319
    %v2356 = vunpack.c.l.b16 %v2320
    %v2357 = vunpack.c.l.b16 %v2321
    %v2358 = vunpack.c.l.b16 %v2322
    %v2359 = vunpack.c.l.b16 %v2323
    %v2360 = vunpack.c.l.b16 %v2324
    %v2361 = vunpack.c.l.b16 %v2325
    %v2362 = vunpack.c.l.b16 %v2326
    %v2363 = vunpack.c.l.b16 %v2327
    %v2364 = vunpack.c.l.b16 %v2328
    %v2365 = vunpack.c.l.b16 %v2329
    %v2366 = vunpack.c.l.b16 %v2330
    %v2367 = vunpack.c.l.b16 %v2331
    %v2368 = vunpack.c.l.b16 %v2332
    %v2369 = vunpack.c.l.b16 %v2333
    %v2370 = vpack.c.b16 %v2355, %v2354
    %v2371 = vpack.c.b16 %v2357, %v2356
    %v2372 = vpack.c.b16 %v2359, %v2358
    %v2373 = vpack.c.b16 %v2361, %v2360
    %v2374 = vpack.c.b16 %v2363, %v2362
    %v2375 = vpack.c.b16 %v2365, %v2364
    %v2376 = vpack.c.b16 %v2367, %v2366
    %v2377 = vpack.c.b16 %v2369, %v2368
    %2386 = vmatpush.bf16.msra.mxu0 %v2377
    %2387 = vmatpush.bf16.msra.mxu0 %v2376
    %2388 = vmatpush.bf16.msra.mxu0 %v2375
    %2389 = vmatpush.bf16.msra.mxu0 %v2374
    %2390 = vmatpush.bf16.msra.mxu0 %v2373
    %2391 = vmatpush.bf16.msra.mxu0 %v2372
    %2392 = vmatpush.bf16.msra.mxu0 %v2371
    %2393 = vmatpush.bf16.msra.mxu0 %v2370
    %2394 = vmatmul.bf16.gmra.mxu0 %v2317
    %v2395 = vpop.f32.mrf.mxu0
    %v2396 = vadd.f32 %v2336, %v2395
    %v2397 = vpop.f32.mrf.mxu0
    %2398 = vdwg.mxu0
    %v2399 = vxor.u32 %v2396, 2147483648
    %v2400 = vmul.f32 %v2399, 1.442695
    %v2401 = vpow.pop %v2400
    %v2402 = vadd.f32 %v2401, 1.0
    %v2403 = vrcp.pop %v2402
    %v2404 = vmul.f32 %v2402, %v2403
    %v2405 = vsub.f32 1.0, %v2404
    %v2406 = vmul.f32 %v2403, %v2405
    %v2407 = vadd.f32 %v2403, %v2406
    %vm2408 = vweird.f32 %v2402
    %vm2409 = vweird.f32 %v2403
    %vm2410 = vmor %vm2408, %vm2409
    %v2411 = vsel %vm2410, %v2403, %v2407
    %v2412 = vand.u32 2147483647, %v2402
    %vm2413 = vcmp.eq.f32.partialorder %v2412, 8.507059e+37
    %v2414 = vand.u32 %v2402, 2147483648
    %v2415 = vor.u32 1.1754944e-38, %v2414
    %v2416 = vsel %vm2413, %v2415, %v2411
    %v2417 = vmul.f32 1.0, %v2416
    %2418 = vst [vmem:[#allocation11] sm:$0xff] %v2417
    // Predicated region
    $region98: #{tpu_custom_call.1} parent=1 // pred_check
      _
    $region99: #{tpu_custom_call.1} parent=1 // pred_check_branch
      %2420 = sbr.rel (0) target = $region101
    $region100: #{tpu_custom_call.1} parent=1 // pred_region
      %2422 = vsyncadd [#allocation4], 0
      %s2424 = sshll.u32 [#allocation11], 4
      %s2425 = int_to_ptr.vmem [resolvable:$true] %s2424
      %s2426 = sshll.u32 %s19, 4
      %s2427 = int_to_ptr.hbm [resolvable:$true] %s2426
      %2429 = dma.vmem_to_hbm [thread:$0]  %s2425, 128, %s2427, [#allocation4]
    $region101: #{tpu_custom_call.1} parent=1 // pred_fallthru
      _
    // Predicated region
    $region102: #{tpu_custom_call.1} parent=1 // pred_check
      _
    $region103: #{tpu_custom_call.1} parent=1 // pred_check_branch
      %2431 = sbr.rel (0) target = $region105
    $region104: #{tpu_custom_call.1} parent=1 // pred_region
      %2433 = dma.done [#allocation4], 128
    $region105: #{tpu_custom_call.1} parent=1 // pred_fallthru
      _
    %2434 = vsyncpa [#allocation3], 1
    %2435 = vsyncpa [#allocation6], 1
    %2436 = vsyncpa [#allocation9], 1
    %2437 = vsyncpa [#allocation4], 1

// kernel: tpu_custom_call.1
$region0: #{tpu_custom_call.1}
  #allocation0 [shape = 'u32[]', space=smem, size = 0x4, offset = 0x4, fixed_abs, tag = 'smem constant byte address 0x4 - core index']
  #allocation1 [shape = 'u32[72,128]{1,0:T(1,128)}', space=vmem, size = 0x9000, scoped, tag = 'internal scratch']
  %s0 = inlined_call_operand.vmem [shape: f32[8,8,1], index: 0, kind: input, shape index: {}]
  %s1 = inlined_call_operand.vmem [shape: f32[3,1,32], index: 1, kind: input, shape index: {}]
  %s2 = inlined_call_operand.vmem [shape: f32[1,32], index: 2, kind: input, shape index: {}]
  %s3 = inlined_call_operand.vmem [shape: f32[1,32], index: 3, kind: input, shape index: {}]
  %s4 = inlined_call_operand.hbm [shape: bf16[3,32,64], index: 4, kind: input, shape index: {}]
  %s5 = inlined_call_operand.vmem [shape: f32[1,64], index: 5, kind: input, shape index: {}]
  %s6 = inlined_call_operand.vmem [shape: f32[1,64], index: 6, kind: input, shape index: {}]
  %s7 = inlined_call_operand.hbm [shape: bf16[3,64,128], index: 7, kind: input, shape index: {}]
  %s8 = inlined_call_operand.vmem [shape: f32[1,128], index: 8, kind: input, shape index: {}]
  %s9 = inlined_call_operand.vmem [shape: f32[1,128], index: 9, kind: input, shape index: {}]
  %s10 = inlined_call_operand.hbm [shape: bf16[3,128,256], index: 10, kind: input, shape index: {}]
  %s11 = inlined_call_operand.vmem [shape: f32[1,256], index: 11, kind: input, shape index: {}]
  %s12 = inlined_call_operand.vmem [shape: f32[1,256], index: 12, kind: input, shape index: {}]
  %s13 = inlined_call_operand.hbm [shape: bf16[4,256,256], index: 13, kind: input, shape index: {}]
  %s14 = inlined_call_operand.vmem [shape: f32[1,256], index: 14, kind: input, shape index: {}]
  %s15 = inlined_call_operand.hbm [shape: bf16[256,128], index: 15, kind: input, shape index: {}]
  %s16 = inlined_call_operand.vmem [shape: f32[1,128], index: 16, kind: input, shape index: {}]
  %s17 = inlined_call_operand.vmem [shape: bf16[128,128], index: 17, kind: input, shape index: {}]
  %s18 = inlined_call_operand.vmem [shape: f32[1,128], index: 18, kind: input, shape index: {}]
  %s19 = inlined_call_operand.hbm [shape: f32[8,128], index: 19, kind: output, shape index: {}]
  %s20 = sld [smem:[#allocation0]]
  $region106: #{tpu_custom_call.1} parent=0
    _
  %s22 = ssub.s32 1, %s20
  %s23 = scalar_select 0, %s22, %s20
  $region1: #{tpu_custom_call.1} parent=0
    #allocation2 [shape = 'u8[24576]{0}', space=vmem, size = 0x6000, scoped, tag = 'input window, operand 4, single buffered']
    #allocation3 [shape = 's32[1]{0}', space=sflag, size = 0x4, scoped, tag = 'scoped memory for tpu_custom_call.1']
    #allocation4 [shape = 's32[1]{0}', space=sflag, size = 0x4, scoped, tag = 'scoped memory for tpu_custom_call.1']
    #allocation5 [shape = 'u8[49152]{0}', space=vmem, size = 0xc000, scoped, tag = 'input window, operand 7, single buffered']
    #allocation6 [shape = 's32[1]{0}', space=sflag, size = 0x4, scoped, tag = 'scoped memory for tpu_custom_call.1']
    #allocation7 [shape = 'u8[196608]{0}', space=vmem, size = 0x30000, scoped, tag = 'input window, operand 10, single buffered']
    #allocation8 [shape = 'u8[524288]{0}', space=vmem, size = 0x80000, scoped, tag = 'input window, operand 13, single buffered']
    #allocation9 [shape = 's32[1]{0}', space=sflag, size = 0x4, scoped, tag = 'scoped memory for tpu_custom_call.1']
    #allocation10 [shape = 'u8[65536]{0}', space=vmem, size = 0x10000, scoped, tag = 'input window, operand 15, single buffered']
    #allocation11 [shape = 'u8[4096]{0}', space=vmem, size = 0x1000, scoped, tag = 'output window, operand 0, single buffered']
    %24 = vsyncpa [#allocation3], 0
    %25 = vsyncpa [#allocation6], 0
    %26 = vsyncpa [#allocation9], 0
    %27 = vsyncpa [#allocation4], 0
    // Predicated region
    $region2: #{tpu_custom_call.1} parent=1 // pred_check
      _
    $region3: #{tpu_custom_call.1} parent=1 // pred_check_branch
      %29 = sbr.rel (0) target = $region5
    $region4: #{tpu_custom_call.1} parent=1 // pred_region
      _
    $region5: #{tpu_custom_call.1} parent=1 // pred_fallthru
      _
    // Predicated region
    $region6: #{tpu_custom_call.1} parent=1 // pred_check
      _
    $region7: #{tpu_custom_call.1} parent=1 // pred_check_branch
      %31 = sbr.rel (0) target = $region9
    $region8: #{tpu_custom_call.1} parent=1 // pred_region
      _
    $region9: #{tpu_custom_call.1} parent=1 // pred_fallthru
      _
    // Predicated region
    $region10: #{tpu_custom_call.1} parent=1 // pred_check
      _
    $region11: #{tpu_custom_call.1} parent=1 // pred_check_branch
      %33 = sbr.rel (0) target = $region13
    $region12: #{tpu_custom_call.1} parent=1 // pred_region
      _
    $region13: #{tpu_custom_call.1} parent=1 // pred_fallthru
      _
    // Predicated region
    $region14: #{tpu_custom_call.1} parent=1 // pred_check
      _
    $region15: #{tpu_custom_call.1} parent=1 // pred_check_branch
      %35 = sbr.rel (0) target = $region17
    $region16: #{tpu_custom_call.1} parent=1 // pred_region
      _
    $region17: #{tpu_custom_call.1} parent=1 // pred_fallthru
      _
    // Predicated region
    $region18: #{tpu_custom_call.1} parent=1 // pred_check
      _
    $region19: #{tpu_custom_call.1} parent=1 // pred_check_branch
      %37 = sbr.rel (0) target = $region21
    $region20: #{tpu_custom_call.1} parent=1 // pred_region
      %39 = vsyncadd [#allocation3], 0
      %s40 = sshll.u32 %s4, 4
      %s41 = int_to_ptr.hbm [resolvable:$true] %s40
      %s42 = sshll.u32 [#allocation2], 4
      %s43 = int_to_ptr.vmem [resolvable:$true] %s42
      %48 = dma.hbm_to_vmem [thread:$0]  %s41, 768, %s43, [#allocation3], 64, 64, 4
    $region21: #{tpu_custom_call.1} parent=1 // pred_fallthru
      _
    // Predicated region
    $region22: #{tpu_custom_call.1} parent=1 // pred_check
      _
    $region23: #{tpu_custom_call.1} parent=1 // pred_check_branch
      %50 = sbr.rel (0) target = $region25
    $region24: #{tpu_custom_call.1} parent=1 // pred_region
      _
    $region25: #{tpu_custom_call.1} parent=1 // pred_fallthru
      _
    // Predicated region
    $region26: #{tpu_custom_call.1} parent=1 // pred_check
      _
    $region27: #{tpu_custom_call.1} parent=1 // pred_check_branch
      %52 = sbr.rel (0) target = $region29
    $region28: #{tpu_custom_call.1} parent=1 // pred_region
      _
    $region29: #{tpu_custom_call.1} parent=1 // pred_fallthru
      _
    // Predicated region
    $region30: #{tpu_custom_call.1} parent=1 // pred_check
      _
    $region31: #{tpu_custom_call.1} parent=1 // pred_check_branch
      %54 = sbr.rel (0) target = $region33
    $region32: #{tpu_custom_call.1} parent=1 // pred_region
      %56 = vsyncadd [#allocation6], 0
      %s57 = sshll.u32 %s7, 4
      %s58 = int_to_ptr.hbm [resolvable:$true] %s57
      %s59 = sshll.u32 [#allocation5], 4
      %s60 = int_to_ptr.vmem [resolvable:$true] %s59
      %65 = dma.hbm_to_vmem [thread:$0]  %s58, 1536, %s60, [#allocation6], 64, 64, 4
    $region33: #{tpu_custom_call.1} parent=1 // pred_fallthru
      _
    // Predicated region
    $region34: #{tpu_custom_call.1} parent=1 // pred_check
      _
    $region35: #{tpu_custom_call.1} parent=1 // pred_check_branch
      %67 = sbr.rel (0) target = $region37
    $region36: #{tpu_custom_call.1} parent=1 // pred_region
      _
    $region37: #{tpu_custom_call.1} parent=1 // pred_fallthru
      _
    // Predicated region
    $region38: #{tpu_custom_call.1} parent=1 // pred_check
      _
    $region39: #{tpu_custom_call.1} parent=1 // pred_check_branch
      %69 = sbr.rel (0) target = $region41
    $region40: #{tpu_custom_call.1} parent=1 // pred_region
      _
    $region41: #{tpu_custom_call.1} parent=1 // pred_fallthru
      _
    // Predicated region
    $region42: #{tpu_custom_call.1} parent=1 // pred_check
      _
    $region43: #{tpu_custom_call.1} parent=1 // pred_check_branch
      %71 = sbr.rel (0) target = $region45
    $region44: #{tpu_custom_call.1} parent=1 // pred_region
      %73 = vsyncadd [#allocation6], 0
      %s74 = sshll.u32 %s10, 4
      %s75 = int_to_ptr.hbm [resolvable:$true] %s74
      %s76 = sshll.u32 [#allocation7], 4
      %s77 = int_to_ptr.vmem [resolvable:$true] %s76
      %82 = dma.hbm_to_vmem [thread:$0]  %s75, 6144, %s77, [#allocation6], 128, 128, 8
    $region45: #{tpu_custom_call.1} parent=1 // pred_fallthru
      _
    // Predicated region
    $region46: #{tpu_custom_call.1} parent=1 // pred_check
      _
    $region47: #{tpu_custom_call.1} parent=1 // pred_check_branch
      %84 = sbr.rel (0) target = $region49
    $region48: #{tpu_custom_call.1} parent=1 // pred_region
      _
    $region49: #{tpu_custom_call.1} parent=1 // pred_fallthru
      _
    // Predicated region
    $region50: #{tpu_custom_call.1} parent=1 // pred_check
      _
    $region51: #{tpu_custom_call.1} parent=1 // pred_check_branch
      %86 = sbr.rel (0) target = $region53
    $region52: #{tpu_custom_call.1} parent=1 // pred_region
      _
    $region53: #{tpu_custom_call.1} parent=1 // pred_fallthru
      _
    // Predicated region
    $region54: #{tpu_custom_call.1} parent=1 // pred_check
      _
    $region55: #{tpu_custom_call.1} parent=1 // pred_check_branch
      %88 = sbr.rel (0) target = $region57
    $region56: #{tpu_custom_call.1} parent=1 // pred_region
      %90 = vsyncadd [#allocation9], 0
      %s91 = sshll.u32 %s13, 4
      %s92 = int_to_ptr.hbm [resolvable:$true] %s91
      %s93 = sshll.u32 [#allocation8], 4
      %s94 = int_to_ptr.vmem [resolvable:$true] %s93
      %99 = dma.hbm_to_vmem [thread:$0]  %s92, 16384, %s94, [#allocation9], 128, 128, 8
    $region57: #{tpu_custom_call.1} parent=1 // pred_fallthru
      _
    // Predicated region
    $region58: #{tpu_custom_call.1} parent=1 // pred_check
      _
    $region59: #{tpu_custom_call.1} parent=1 // pred_check_branch
      %101 = sbr.rel (0) target = $region61
    $region60: #{tpu_custom_call.1} parent=1 // pred_region
      _
    $region61: #{tpu_custom_call.1} parent=1 // pred_fallthru
      _
    // Predicated region
    $region62: #{tpu_custom_call.1} parent=1 // pred_check
      _
    $region63: #{tpu_custom_call.1} parent=1 // pred_check_branch
      %103 = sbr.rel (0) target = $region65
    $region64: #{tpu_custom_call.1} parent=1 // pred_region
      %105 = vsyncadd [#allocation9], 0
      %s106 = sshll.u32 %s15, 4
      %s107 = int_to_ptr.hbm [resolvable:$true] %s106
      %s108 = sshll.u32 [#allocation10], 4
      %s109 = int_to_ptr.vmem [resolvable:$true] %s108
      %114 = dma.hbm_to_vmem [thread:$0]  %s107, 2048, %s109, [#allocation9], 64, 64, 4
    $region65: #{tpu_custom_call.1} parent=1 // pred_fallthru
      _
    // Predicated region
    $region66: #{tpu_custom_call.1} parent=1 // pred_check
      _
    $region67: #{tpu_custom_call.1} parent=1 // pred_check_branch
      %116 = sbr.rel (0) target = $region69
    $region68: #{tpu_custom_call.1} parent=1 // pred_region
      _
    $region69: #{tpu_custom_call.1} parent=1 // pred_fallthru
      _
    // Predicated region
    $region70: #{tpu_custom_call.1} parent=1 // pred_check
      _
    $region71: #{tpu_custom_call.1} parent=1 // pred_check_branch
      %118 = sbr.rel (0) target = $region73
    $region72: #{tpu_custom_call.1} parent=1 // pred_region
      _
    $region73: #{tpu_custom_call.1} parent=1 // pred_fallthru
      _
    // Predicated region
    $region74: #{tpu_custom_call.1} parent=1 // pred_check
      _
    $region75: #{tpu_custom_call.1} parent=1 // pred_check_branch
      %120 = sbr.rel (0) target = $region77
    $region76: #{tpu_custom_call.1} parent=1 // pred_region
      _
    $region77: #{tpu_custom_call.1} parent=1 // pred_fallthru
      _
    // Predicated region
    $region78: #{tpu_custom_call.1} parent=1 // pred_check
      _
    $region79: #{tpu_custom_call.1} parent=1 // pred_check_branch
      %122 = sbr.rel (0) target = $region81
    $region80: #{tpu_custom_call.1} parent=1 // pred_region
      %124 = dma.done [#allocation3], 768
    $region81: #{tpu_custom_call.1} parent=1 // pred_fallthru
      _
    // Predicated region
    $region82: #{tpu_custom_call.1} parent=1 // pred_check
      _
    $region83: #{tpu_custom_call.1} parent=1 // pred_check_branch
      %126 = sbr.rel (0) target = $region85
    $region84: #{tpu_custom_call.1} parent=1 // pred_region
      %128 = dma.done [#allocation6], 1536
    $region85: #{tpu_custom_call.1} parent=1 // pred_fallthru
      _
    // Predicated region
    $region86: #{tpu_custom_call.1} parent=1 // pred_check
      _
    $region87: #{tpu_custom_call.1} parent=1 // pred_check_branch
      %130 = sbr.rel (0) target = $region89
    $region88: #{tpu_custom_call.1} parent=1 // pred_region
      %132 = dma.done [#allocation6], 6144
    $region89: #{tpu_custom_call.1} parent=1 // pred_fallthru
      _
    // Predicated region
    $region90: #{tpu_custom_call.1} parent=1 // pred_check
      _
    $region91: #{tpu_custom_call.1} parent=1 // pred_check_branch
      %134 = sbr.rel (0) target = $region93
    $region92: #{tpu_custom_call.1} parent=1 // pred_region
      %136 = dma.done [#allocation9], 16384
    $region93: #{tpu_custom_call.1} parent=1 // pred_fallthru
      _
    // Predicated region
    $region94: #{tpu_custom_call.1} parent=1 // pred_check
      _
    $region95: #{tpu_custom_call.1} parent=1 // pred_check_branch
      %138 = sbr.rel (0) target = $region97
    $region96: #{tpu_custom_call.1} parent=1 // pred_region
      %140 = dma.done [#allocation9], 2048
    $region97: #{tpu_custom_call.1} parent=1 // pred_fallthru
      _
    %v142 = vld [vmem:[%s0] sm:$0xff]
    %v143 = vld [vmem:[%s0 + $0x8] sm:$0xff]
    %v144 = vld [vmem:[%s0 + $0x10] sm:$0xff]
    %v145 = vld [vmem:[%s0 + $0x18] sm:$0xff]
    %v146 = vld [vmem:[%s0 + $0x20] sm:$0xff]
    %v147 = vld [vmem:[%s0 + $0x28] sm:$0xff]
    %v148 = vld [vmem:[%s0 + $0x30] sm:$0xff]
    %v149 = vld [vmem:[%s0 + $0x38] sm:$0xff]
    %v150 = vld [vmem:[%s1] sm:$0x1]
    %v151 = vld [vmem:[%s1 + $0x1] sm:$0x1]
    %v152 = vld [vmem:[%s1 + $0x2] sm:$0x1]
    %154 = vset.pattern.permute.xlu0 0
    %155 = vperm.xlu0 %154, 0.0
    %v156 = vpop.permute.xlu0 %155
    %159 = vset.pattern.permute.xlu0 0
    %160 = vperm.xlu0 %159, %v142
    %v161 = vpop.permute.xlu0 %160
    %164 = vset.pattern.permute.xlu0 0
    %165 = vperm.xlu0 %164, %v143
    %v166 = vpop.permute.xlu0 %165
    %169 = vset.pattern.permute.xlu0 0
    %170 = vperm.xlu0 %169, %v144
    %v171 = vpop.permute.xlu0 %170
    %174 = vset.pattern.permute.xlu0 0
    %175 = vperm.xlu0 %174, %v145
    %v176 = vpop.permute.xlu0 %175
    %179 = vset.pattern.permute.xlu0 0
    %180 = vperm.xlu0 %179, %v146
    %v181 = vpop.permute.xlu0 %180
    %184 = vset.pattern.permute.xlu0 0
    %185 = vperm.xlu0 %184, %v147
    %v186 = vpop.permute.xlu0 %185
    %189 = vset.pattern.permute.xlu0 0
    %190 = vperm.xlu0 %189, %v148
    %v191 = vpop.permute.xlu0 %190
    %v194 = vperm.slane %v150, 0
    %v196 = vmul.f32 %v156, %v194
    %v197 = vmul.f32 %v161, %v194
    %v198 = vmul.f32 %v166, %v194
    %v199 = vmul.f32 %v171, %v194
    %v200 = vmul.f32 %v176, %v194
    %v201 = vmul.f32 %v181, %v194
    %v202 = vmul.f32 %v186, %v194
    %v203 = vmul.f32 %v191, %v194
    %205 = vset.pattern.permute.xlu0 0
    %206 = vperm.xlu0 %205, %v149
    %v207 = vpop.permute.xlu0 %206
    %v210 = vperm.slane %v151, 0
    %v212 = vmul.f32 %v161, %v210
    %v213 = vmul.f32 %v166, %v210
    %v214 = vmul.f32 %v171, %v210
    %v215 = vmul.f32 %v176, %v210
    %v216 = vmul.f32 %v181, %v210
    %v217 = vmul.f32 %v186, %v210
    %v218 = vmul.f32 %v191, %v210
    %v219 = vmul.f32 %v207, %v210
    %v220 = vadd.f32 %v196, %v212
    %v221 = vadd.f32 %v197, %v213
    %v222 = vadd.f32 %v198, %v214
    %v223 = vadd.f32 %v199, %v215
    %v224 = vadd.f32 %v200, %v216
    %v225 = vadd.f32 %v201, %v217
    %v226 = vadd.f32 %v202, %v218
    %v227 = vadd.f32 %v203, %v219
    %v229 = vperm.slane %v152, 0
    %v231 = vmul.f32 %v166, %v229
    %v232 = vmul.f32 %v171, %v229
    %v233 = vmul.f32 %v176, %v229
    %v234 = vmul.f32 %v181, %v229
    %v235 = vmul.f32 %v186, %v229
    %v236 = vmul.f32 %v191, %v229
    %v237 = vmul.f32 %v207, %v229
    %v238 = vmul.f32 %v156, %v229
    %v239 = vadd.f32 %v220, %v231
    %v240 = vadd.f32 %v221, %v232
    %v241 = vadd.f32 %v222, %v233
    %v242 = vadd.f32 %v223, %v234
    %v243 = vadd.f32 %v224, %v235
    %v244 = vadd.f32 %v225, %v236
    %v245 = vadd.f32 %v226, %v237
    %v246 = vadd.f32 %v227, %v238
    %v247 = vld [vmem:[%s2] sm:$0x1]
    %v249 = vperm.slane %v247, 0
    %v251 = vmul.f32 %v239, %v249
    %v252 = vmul.f32 %v240, %v249
    %v253 = vmul.f32 %v241, %v249
    %v254 = vmul.f32 %v242, %v249
    %v255 = vmul.f32 %v243, %v249
    %v256 = vmul.f32 %v244, %v249
    %v257 = vmul.f32 %v245, %v249
    %v258 = vmul.f32 %v246, %v249
    %v259 = vld [vmem:[%s3] sm:$0x1]
    %v261 = vperm.slane %v259, 0
    %v263 = vadd.f32 %v251, %v261
    %v264 = vadd.f32 %v252, %v261
    %v265 = vadd.f32 %v253, %v261
    %v266 = vadd.f32 %v254, %v261
    %v267 = vadd.f32 %v255, %v261
    %v268 = vadd.f32 %v256, %v261
    %v269 = vadd.f32 %v257, %v261
    %v270 = vadd.f32 %v258, %v261
    %v271 = vmax.f32 %v263, 0.0
    %v272 = vmax.f32 %v264, 0.0
    %v273 = vmax.f32 %v265, 0.0
    %v274 = vmax.f32 %v266, 0.0
    %v275 = vmax.f32 %v267, 0.0
    %v276 = vmax.f32 %v268, 0.0
    %v277 = vmax.f32 %v269, 0.0
    %v278 = vmax.f32 %v270, 0.0
    %v279 = vmax.f32 %v271, %v272
    %v280 = vmax.f32 %v273, %v274
    %v281 = vmax.f32 %v275, %v276
    %v282 = vmax.f32 %v277, %v278
    %v283 = vpack.c.bf16 %v279, %v279
    %v284 = vpack.c.bf16 %v280, %v280
    %v285 = vpack.c.bf16 %v281, %v281
    %v286 = vpack.c.bf16 %v282, %v282
    %v287 = vld [vmem:[#allocation2] sm:$0xf]
    %v288 = vld [vmem:[#allocation2 + $0x4] sm:$0xf]
    %v289 = vld [vmem:[#allocation2 + $0x8] sm:$0xf]
    %v290 = vld [vmem:[#allocation2 + $0xc] sm:$0xf]
    %s291 = scalar_lea.vmem [#allocation2], 16
    %v292 = vld [vmem:[%s291] sm:$0xf]
    %v293 = vld [vmem:[%s291 + $0x4] sm:$0xf]
    %v294 = vld [vmem:[%s291 + $0x8] sm:$0xf]
    %v295 = vld [vmem:[%s291 + $0xc] sm:$0xf]
    %v300 = vunpack.c.l.b16 %v283
    %v301 = vunpack.c.l.b16 %v284
    %v302 = vunpack.c.l.b16 %v285
    %v303 = vunpack.c.l.b16 %v286
    %v304 = vpack.c.b16 %v301, %v300
    %v305 = vpack.c.b16 %v303, %v302
    %v310 = vunpack.c.l.b16 %v292
    %v311 = vunpack.c.l.b16 %v293
    %v312 = vunpack.c.l.b16 %v294
    %v313 = vunpack.c.l.b16 %v295
    %v314 = vpack.c.b16 %v311, %v310
    %v315 = vpack.c.b16 %v313, %v312
    %vm318 = vcmask 261120
    %v320 = vsel %vm318, %v304, 0
    %v323 = vsel %vm318, %v305, 0
    %325 = vmatpush.bf16.msra.mxu0 0
    %326 = vmatpush.bf16.msra.mxu0 0
    %327 = vmatpush.bf16.msra.mxu0 0
    %328 = vmatpush.bf16.msra.mxu0 0
    %329 = vmatpush.bf16.msra.mxu0 0
    %330 = vmatpush.bf16.msra.mxu0 0
    %331 = vmatpush.bf16.msra.mxu0 %v315
    %332 = vmatpush.bf16.msra.mxu0 %v314
    %333 = vmatmul.bf16.gmra.mxu0 %v320
    %v334 = vpop.f32.mrf.mxu0
    %v335 = vadd.f32 0.0, %v334
    %v336 = vpop.f32.mrf.mxu0
    %v337 = vadd.f32 0.0, %v336
    %338 = vmatmul.bf16.gmra.mxu0 %v323
    %v339 = vpop.f32.mrf.mxu0
    %v340 = vadd.f32 0.0, %v339
    %v341 = vpop.f32.mrf.mxu0
    %v342 = vadd.f32 0.0, %v341
    %343 = vdwg.mxu0
    %v345 = vunpack.c.l.b16 0
    %v346 = vpack.c.b16 %v300, %v345
    %v347 = vpack.c.b16 %v302, %v301
    %v352 = vunpack.c.l.b16 %v287
    %v353 = vunpack.c.l.b16 %v288
    %v354 = vunpack.c.l.b16 %v289
    %v355 = vunpack.c.l.b16 %v290
    %v356 = vpack.c.b16 %v353, %v352
    %v357 = vpack.c.b16 %v355, %v354
    %v361 = vsel %vm318, %v346, 0
    %v364 = vsel %vm318, %v347, 0
    %366 = vmatpush.bf16.msra.mxu0 0
    %367 = vmatpush.bf16.msra.mxu0 0
    %368 = vmatpush.bf16.msra.mxu0 0
    %369 = vmatpush.bf16.msra.mxu0 0
    %370 = vmatpush.bf16.msra.mxu0 0
    %371 = vmatpush.bf16.msra.mxu0 0
    %372 = vmatpush.bf16.msra.mxu0 %v357
    %373 = vmatpush.bf16.msra.mxu0 %v356
    %374 = vmatmul.bf16.gmra.mxu0 %v361
    %v375 = vpop.f32.mrf.mxu0
    %v376 = vadd.f32 %v335, %v375
    %v377 = vpop.f32.mrf.mxu0
    %v378 = vadd.f32 %v337, %v377
    %379 = vmatmul.bf16.gmra.mxu0 %v364
    %v380 = vpop.f32.mrf.mxu0
    %v381 = vadd.f32 %v340, %v380
    %v382 = vpop.f32.mrf.mxu0
    %v383 = vadd.f32 %v342, %v382
    %384 = vdwg.mxu0
    %s385 = scalar_lea.vmem [#allocation2], 32
    %v386 = vld [vmem:[%s385] sm:$0xf]
    %v387 = vld [vmem:[%s385 + $0x4] sm:$0xf]
    %v388 = vld [vmem:[%s385 + $0x8] sm:$0xf]
    %v389 = vld [vmem:[%s385 + $0xc] sm:$0xf]
    %v390 = vpack.c.b16 %v345, %v303
    %v395 = vunpack.c.l.b16 %v386
    %v396 = vunpack.c.l.b16 %v387
    %v397 = vunpack.c.l.b16 %v388
    %v398 = vunpack.c.l.b16 %v389
    %v399 = vpack.c.b16 %v396, %v395
    %v400 = vpack.c.b16 %v398, %v397
    %v404 = vsel %vm318, %v390, 0
    %406 = vmatpush.bf16.msra.mxu0 0
    %407 = vmatpush.bf16.msra.mxu0 0
    %408 = vmatpush.bf16.msra.mxu0 0
    %409 = vmatpush.bf16.msra.mxu0 0
    %410 = vmatpush.bf16.msra.mxu0 0
    %411 = vmatpush.bf16.msra.mxu0 0
    %412 = vmatpush.bf16.msra.mxu0 %v400
    %413 = vmatpush.bf16.msra.mxu0 %v399
    %414 = vmatmul.bf16.gmra.mxu0 %v364
    %v415 = vpop.f32.mrf.mxu0
    %v416 = vadd.f32 0.0, %v415
    %v417 = vpop.f32.mrf.mxu0
    %v418 = vadd.f32 0.0, %v417
    %419 = vmatmul.bf16.gmra.mxu0 %v404
    %v420 = vpop.f32.mrf.mxu0
    %v421 = vadd.f32 0.0, %v420
    %v422 = vpop.f32.mrf.mxu0
    %v423 = vadd.f32 0.0, %v422
    %424 = vdwg.mxu0
    %v425 = vadd.f32 %v376, %v416
    %v426 = vadd.f32 %v378, %v418
    %v427 = vadd.f32 %v381, %v421
    %v428 = vadd.f32 %v383, %v423
    %v429 = vld [vmem:[%s5] sm:$0x1]
    %v431 = vperm.slane %v429, 0
    %v433 = vmul.f32 %v425, %v431
    %v434 = vmul.f32 %v426, %v431
    %v435 = vmul.f32 %v427, %v431
    %v436 = vmul.f32 %v428, %v431
    %v437 = vld [vmem:[%s6] sm:$0x1]
    %v439 = vperm.slane %v437, 0
    %v441 = vadd.f32 %v433, %v439
    %v442 = vadd.f32 %v434, %v439
    %v443 = vadd.f32 %v435, %v439
    %v444 = vadd.f32 %v436, %v439
    %v445 = vmax.f32 %v441, 0.0
    %v446 = vmax.f32 %v442, 0.0
    %v447 = vmax.f32 %v443, 0.0
    %v448 = vmax.f32 %v444, 0.0
    %v449 = vpack.c.bf16 %v445, %v445
    %v450 = vpack.c.bf16 %v446, %v446
    %v451 = vpack.c.bf16 %v447, %v447
    %v452 = vpack.c.bf16 %v448, %v448
    %v453 = vld [vmem:[#allocation5] sm:$0xf]
    %v454 = vld [vmem:[#allocation5 + $0x4] sm:$0xf]
    %v455 = vld [vmem:[#allocation5 + $0x8] sm:$0xf]
    %v456 = vld [vmem:[#allocation5 + $0xc] sm:$0xf]
    %v457 = vld [vmem:[#allocation5 + $0x10] sm:$0xf]
    %v458 = vld [vmem:[#allocation5 + $0x14] sm:$0xf]
    %v459 = vld [vmem:[#allocation5 + $0x18] sm:$0xf]
    %v460 = vld [vmem:[#allocation5 + $0x1c] sm:$0xf]
    %s461 = scalar_lea.vmem [#allocation5], 32
    %v462 = vld [vmem:[%s461] sm:$0xf]
    %v463 = vld [vmem:[%s461 + $0x4] sm:$0xf]
    %v464 = vld [vmem:[%s461 + $0x8] sm:$0xf]
    %v465 = vld [vmem:[%s461 + $0xc] sm:$0xf]
    %v466 = vld [vmem:[%s461 + $0x10] sm:$0xf]
    %v467 = vld [vmem:[%s461 + $0x14] sm:$0xf]
    %v468 = vld [vmem:[%s461 + $0x18] sm:$0xf]
    %v469 = vld [vmem:[%s461 + $0x1c] sm:$0xf]
    %v474 = vunpack.c.l.b16 %v449
    %v475 = vunpack.c.l.b16 %v450
    %v476 = vunpack.c.l.b16 %v451
    %v477 = vunpack.c.l.b16 %v452
    %v478 = vpack.c.b16 %v475, %v474
    %v479 = vpack.c.b16 %v477, %v476
    %v488 = vunpack.c.l.b16 %v462
    %v489 = vunpack.c.l.b16 %v463
    %v490 = vunpack.c.l.b16 %v464
    %v491 = vunpack.c.l.b16 %v465
    %v492 = vunpack.c.l.b16 %v466
    %v493 = vunpack.c.l.b16 %v467
    %v494 = vunpack.c.l.b16 %v468
    %v495 = vunpack.c.l.b16 %v469
    %v496 = vpack.c.b16 %v489, %v488
    %v497 = vpack.c.b16 %v491, %v490
    %v498 = vpack.c.b16 %v493, %v492
    %v499 = vpack.c.b16 %v495, %v494
    %vm504 = vcmask 523264
    %v506 = vsel %vm504, %v478, 0
    %v509 = vsel %vm504, %v479, 0
    %511 = vmatpush.bf16.msra.mxu0 0
    %512 = vmatpush.bf16.msra.mxu0 0
    %513 = vmatpush.bf16.msra.mxu0 0
    %514 = vmatpush.bf16.msra.mxu0 0
    %515 = vmatpush.bf16.msra.mxu0 %v499
    %516 = vmatpush.bf16.msra.mxu0 %v498
    %517 = vmatpush.bf16.msra.mxu0 %v497
    %518 = vmatpush.bf16.msra.mxu0 %v496
    %519 = vmatmul.bf16.gmra.mxu0 %v506
    %v520 = vpop.f32.mrf.mxu0
    %v521 = vadd.f32 0.0, %v520
    %v522 = vpop.f32.mrf.mxu0
    %v523 = vadd.f32 0.0, %v522
    %524 = vmatmul.bf16.gmra.mxu0 %v509
    %v525 = vpop.f32.mrf.mxu0
    %v526 = vadd.f32 0.0, %v525
    %v527 = vpop.f32.mrf.mxu0
    %v528 = vadd.f32 0.0, %v527
    %529 = vdwg.mxu0
    %v530 = vpack.c.b16 %v474, %v345
    %v531 = vpack.c.b16 %v476, %v475
    %v540 = vunpack.c.l.b16 %v453
    %v541 = vunpack.c.l.b16 %v454
    %v542 = vunpack.c.l.b16 %v455
    %v543 = vunpack.c.l.b16 %v456
    %v544 = vunpack.c.l.b16 %v457
    %v545 = vunpack.c.l.b16 %v458
    %v546 = vunpack.c.l.b16 %v459
    %v547 = vunpack.c.l.b16 %v460
    %v548 = vpack.c.b16 %v541, %v540
    %v549 = vpack.c.b16 %v543, %v542
    %v550 = vpack.c.b16 %v545, %v544
    %v551 = vpack.c.b16 %v547, %v546
    %v557 = vsel %vm504, %v530, 0
    %v560 = vsel %vm504, %v531, 0
    %562 = vmatpush.bf16.msra.mxu0 0
    %563 = vmatpush.bf16.msra.mxu0 0
    %564 = vmatpush.bf16.msra.mxu0 0
    %565 = vmatpush.bf16.msra.mxu0 0
    %566 = vmatpush.bf16.msra.mxu0 %v551
    %567 = vmatpush.bf16.msra.mxu0 %v550
    %568 = vmatpush.bf16.msra.mxu0 %v549
    %569 = vmatpush.bf16.msra.mxu0 %v548
    %570 = vmatmul.bf16.gmra.mxu0 %v557
    %v571 = vpop.f32.mrf.mxu0
    %v572 = vadd.f32 %v521, %v571
    %v573 = vpop.f32.mrf.mxu0
    %v574 = vadd.f32 %v523, %v573
    %575 = vmatmul.bf16.gmra.mxu0 %v560
    %v576 = vpop.f32.mrf.mxu0
    %v577 = vadd.f32 %v526, %v576
    %v578 = vpop.f32.mrf.mxu0
    %v579 = vadd.f32 %v528, %v578
    %580 = vdwg.mxu0
    %s581 = scalar_lea.vmem [#allocation5], 64
    %v582 = vld [vmem:[%s581] sm:$0xf]
    %v583 = vld [vmem:[%s581 + $0x4] sm:$0xf]
    %v584 = vld [vmem:[%s581 + $0x8] sm:$0xf]
    %v585 = vld [vmem:[%s581 + $0xc] sm:$0xf]
    %v586 = vld [vmem:[%s581 + $0x10] sm:$0xf]
    %v587 = vld [vmem:[%s581 + $0x14] sm:$0xf]
    %v588 = vld [vmem:[%s581 + $0x18] sm:$0xf]
    %v589 = vld [vmem:[%s581 + $0x1c] sm:$0xf]
    %v590 = vpack.c.b16 %v345, %v477
    %v599 = vunpack.c.l.b16 %v582
    %v600 = vunpack.c.l.b16 %v583
    %v601 = vunpack.c.l.b16 %v584
    %v602 = vunpack.c.l.b16 %v585
    %v603 = vunpack.c.l.b16 %v586
    %v604 = vunpack.c.l.b16 %v587
    %v605 = vunpack.c.l.b16 %v588
    %v606 = vunpack.c.l.b16 %v589
    %v607 = vpack.c.b16 %v600, %v599
    %v608 = vpack.c.b16 %v602, %v601
    %v609 = vpack.c.b16 %v604, %v603
    %v610 = vpack.c.b16 %v606, %v605
    %v616 = vsel %vm504, %v590, 0
    %618 = vmatpush.bf16.msra.mxu0 0
    %619 = vmatpush.bf16.msra.mxu0 0
    %620 = vmatpush.bf16.msra.mxu0 0
    %621 = vmatpush.bf16.msra.mxu0 0
    %622 = vmatpush.bf16.msra.mxu0 %v610
    %623 = vmatpush.bf16.msra.mxu0 %v609
    %624 = vmatpush.bf16.msra.mxu0 %v608
    %625 = vmatpush.bf16.msra.mxu0 %v607
    %626 = vmatmul.bf16.gmra.mxu0 %v560
    %v627 = vpop.f32.mrf.mxu0
    %v628 = vadd.f32 0.0, %v627
    %v629 = vpop.f32.mrf.mxu0
    %v630 = vadd.f32 0.0, %v629
    %631 = vmatmul.bf16.gmra.mxu0 %v616
    %v632 = vpop.f32.mrf.mxu0
    %v633 = vadd.f32 0.0, %v632
    %v634 = vpop.f32.mrf.mxu0
    %v635 = vadd.f32 0.0, %v634
    %636 = vdwg.mxu0
    %v637 = vadd.f32 %v572, %v628
    %v638 = vadd.f32 %v574, %v630
    %v639 = vadd.f32 %v577, %v633
    %v640 = vadd.f32 %v579, %v635
    %v641 = vld [vmem:[%s8] sm:$0x1]
    %v643 = vperm.slane %v641, 0
    %v645 = vmul.f32 %v637, %v643
    %v646 = vmul.f32 %v638, %v643
    %v647 = vmul.f32 %v639, %v643
    %v648 = vmul.f32 %v640, %v643
    %v649 = vld [vmem:[%s9] sm:$0x1]
    %v651 = vperm.slane %v649, 0
    %v653 = vadd.f32 %v645, %v651
    %v654 = vadd.f32 %v646, %v651
    %v655 = vadd.f32 %v647, %v651
    %v656 = vadd.f32 %v648, %v651
    %v657 = vmax.f32 %v653, 0.0
    %v658 = vmax.f32 %v654, 0.0
    %v659 = vmax.f32 %v655, 0.0
    %v660 = vmax.f32 %v656, 0.0
    %v661 = vpack.c.bf16 %v657, %v657
    %v662 = vpack.c.bf16 %v658, %v658
    %v663 = vpack.c.bf16 %v659, %v659
    %v664 = vpack.c.bf16 %v660, %v660
    %v665 = vld [vmem:[#allocation7] sm:$0xff]
    %v666 = vld [vmem:[#allocation7 + $0x8] sm:$0xff]
    %v667 = vld [vmem:[#allocation7 + $0x10] sm:$0xff]
    %v668 = vld [vmem:[#allocation7 + $0x18] sm:$0xff]
    %v669 = vld [vmem:[#allocation7 + $0x20] sm:$0xff]
    %v670 = vld [vmem:[#allocation7 + $0x28] sm:$0xff]
    %v671 = vld [vmem:[#allocation7 + $0x30] sm:$0xff]
    %v672 = vld [vmem:[#allocation7 + $0x38] sm:$0xff]
    %v673 = vld [vmem:[#allocation7 + $0x40] sm:$0xff]
    %v674 = vld [vmem:[#allocation7 + $0x48] sm:$0xff]
    %v675 = vld [vmem:[#allocation7 + $0x50] sm:$0xff]
    %v676 = vld [vmem:[#allocation7 + $0x58] sm:$0xff]
    %v677 = vld [vmem:[#allocation7 + $0x60] sm:$0xff]
    %v678 = vld [vmem:[#allocation7 + $0x68] sm:$0xff]
    %v679 = vld [vmem:[#allocation7 + $0x70] sm:$0xff]
    %v680 = vld [vmem:[#allocation7 + $0x78] sm:$0xff]
    %s681 = scalar_lea.vmem [#allocation7], 128
    %v682 = vld [vmem:[%s681] sm:$0xff]
    %v683 = vld [vmem:[%s681 + $0x8] sm:$0xff]
    %v684 = vld [vmem:[%s681 + $0x10] sm:$0xff]
    %v685 = vld [vmem:[%s681 + $0x18] sm:$0xff]
    %v686 = vld [vmem:[%s681 + $0x20] sm:$0xff]
    %v687 = vld [vmem:[%s681 + $0x28] sm:$0xff]
    %v688 = vld [vmem:[%s681 + $0x30] sm:$0xff]
    %v689 = vld [vmem:[%s681 + $0x38] sm:$0xff]
    %v690 = vld [vmem:[%s681 + $0x40] sm:$0xff]
    %v691 = vld [vmem:[%s681 + $0x48] sm:$0xff]
    %v692 = vld [vmem:[%s681 + $0x50] sm:$0xff]
    %v693 = vld [vmem:[%s681 + $0x58] sm:$0xff]
    %v694 = vld [vmem:[%s681 + $0x60] sm:$0xff]
    %v695 = vld [vmem:[%s681 + $0x68] sm:$0xff]
    %v696 = vld [vmem:[%s681 + $0x70] sm:$0xff]
    %v697 = vld [vmem:[%s681 + $0x78] sm:$0xff]
    %v702 = vunpack.c.l.b16 %v661
    %v703 = vunpack.c.l.b16 %v662
    %v704 = vunpack.c.l.b16 %v663
    %v705 = vunpack.c.l.b16 %v664
    %v706 = vpack.c.b16 %v703, %v702
    %v707 = vpack.c.b16 %v705, %v704
    %v726 = vunpack.c.l.b16 %v682
    %v727 = vunpack.c.h.b16 %v682
    %v728 = vunpack.c.l.b16 %v683
    %v729 = vunpack.c.h.b16 %v683
    %v730 = vunpack.c.l.b16 %v684
    %v731 = vunpack.c.h.b16 %v684
    %v732 = vunpack.c.l.b16 %v685
    %v733 = vunpack.c.h.b16 %v685
    %v734 = vunpack.c.l.b16 %v686
    %v735 = vunpack.c.h.b16 %v686
    %v736 = vunpack.c.l.b16 %v687
    %v737 = vunpack.c.h.b16 %v687
    %v738 = vunpack.c.l.b16 %v688
    %v739 = vunpack.c.h.b16 %v688
    %v740 = vunpack.c.l.b16 %v689
    %v741 = vunpack.c.h.b16 %v689
    %v742 = vunpack.c.l.b16 %v690
    %v743 = vunpack.c.h.b16 %v690
    %v744 = vunpack.c.l.b16 %v691
    %v745 = vunpack.c.h.b16 %v691
    %v746 = vunpack.c.l.b16 %v692
    %v747 = vunpack.c.h.b16 %v692
    %v748 = vunpack.c.l.b16 %v693
    %v749 = vunpack.c.h.b16 %v693
    %v750 = vunpack.c.l.b16 %v694
    %v751 = vunpack.c.h.b16 %v694
    %v752 = vunpack.c.l.b16 %v695
    %v753 = vunpack.c.h.b16 %v695
    %v754 = vunpack.c.l.b16 %v696
    %v755 = vunpack.c.h.b16 %v696
    %v756 = vunpack.c.l.b16 %v697
    %v757 = vunpack.c.h.b16 %v697
    %v758 = vpack.c.b16 %v728, %v726
    %v759 = vpack.c.b16 %v729, %v727
    %v760 = vpack.c.b16 %v732, %v730
    %v761 = vpack.c.b16 %v733, %v731
    %v762 = vpack.c.b16 %v736, %v734
    %v763 = vpack.c.b16 %v737, %v735
    %v764 = vpack.c.b16 %v740, %v738
    %v765 = vpack.c.b16 %v741, %v739
    %v766 = vpack.c.b16 %v744, %v742
    %v767 = vpack.c.b16 %v745, %v743
    %v768 = vpack.c.b16 %v748, %v746
    %v769 = vpack.c.b16 %v749, %v747
    %v770 = vpack.c.b16 %v752, %v750
    %v771 = vpack.c.b16 %v753, %v751
    %v772 = vpack.c.b16 %v756, %v754
    %v773 = vpack.c.b16 %v757, %v755
    %790 = vmatpush.bf16.msra.mxu0 %v772
    %791 = vmatpush.bf16.msra.mxu0 %v770
    %792 = vmatpush.bf16.msra.mxu0 %v768
    %793 = vmatpush.bf16.msra.mxu0 %v766
    %794 = vmatpush.bf16.msra.mxu0 %v764
    %795 = vmatpush.bf16.msra.mxu0 %v762
    %796 = vmatpush.bf16.msra.mxu0 %v760
    %797 = vmatpush.bf16.msra.mxu0 %v758
    %798 = vmatmul.bf16.gmra.mxu0 %v706
    %v799 = vpop.f32.mrf.mxu0
    %v800 = vadd.f32 0.0, %v799
    %v801 = vpop.f32.mrf.mxu0
    %v802 = vadd.f32 0.0, %v801
    %803 = vmatmul.bf16.gmra.mxu0 %v707
    %v804 = vpop.f32.mrf.mxu0
    %v805 = vadd.f32 0.0, %v804
    %v806 = vpop.f32.mrf.mxu0
    %v807 = vadd.f32 0.0, %v806
    %808 = vdwg.mxu0
    %809 = vmatpush.bf16.msra.mxu0 %v773
    %810 = vmatpush.bf16.msra.mxu0 %v771
    %811 = vmatpush.bf16.msra.mxu0 %v769
    %812 = vmatpush.bf16.msra.mxu0 %v767
    %813 = vmatpush.bf16.msra.mxu0 %v765
    %814 = vmatpush.bf16.msra.mxu0 %v763
    %815 = vmatpush.bf16.msra.mxu0 %v761
    %816 = vmatpush.bf16.msra.mxu0 %v759
    %817 = vmatmul.bf16.gmra.mxu0 %v706
    %v818 = vpop.f32.mrf.mxu0
    %v819 = vadd.f32 0.0, %v818
    %v820 = vpop.f32.mrf.mxu0
    %v821 = vadd.f32 0.0, %v820
    %822 = vmatmul.bf16.gmra.mxu0 %v707
    %v823 = vpop.f32.mrf.mxu0
    %v824 = vadd.f32 0.0, %v823
    %v825 = vpop.f32.mrf.mxu0
    %v826 = vadd.f32 0.0, %v825
    %827 = vdwg.mxu0
    %v828 = vpack.c.b16 %v702, %v345
    %v829 = vpack.c.b16 %v704, %v703
    %v848 = vunpack.c.l.b16 %v665
    %v849 = vunpack.c.h.b16 %v665
    %v850 = vunpack.c.l.b16 %v666
    %v851 = vunpack.c.h.b16 %v666
    %v852 = vunpack.c.l.b16 %v667
    %v853 = vunpack.c.h.b16 %v667
    %v854 = vunpack.c.l.b16 %v668
    %v855 = vunpack.c.h.b16 %v668
    %v856 = vunpack.c.l.b16 %v669
    %v857 = vunpack.c.h.b16 %v669
    %v858 = vunpack.c.l.b16 %v670
    %v859 = vunpack.c.h.b16 %v670
    %v860 = vunpack.c.l.b16 %v671
    %v861 = vunpack.c.h.b16 %v671
    %v862 = vunpack.c.l.b16 %v672
    %v863 = vunpack.c.h.b16 %v672
    %v864 = vunpack.c.l.b16 %v673
    %v865 = vunpack.c.h.b16 %v673
    %v866 = vunpack.c.l.b16 %v674
    %v867 = vunpack.c.h.b16 %v674
    %v868 = vunpack.c.l.b16 %v675
    %v869 = vunpack.c.h.b16 %v675
    %v870 = vunpack.c.l.b16 %v676
    %v871 = vunpack.c.h.b16 %v676
    %v872 = vunpack.c.l.b16 %v677
    %v873 = vunpack.c.h.b16 %v677
    %v874 = vunpack.c.l.b16 %v678
    %v875 = vunpack.c.h.b16 %v678
    %v876 = vunpack.c.l.b16 %v679
    %v877 = vunpack.c.h.b16 %v679
    %v878 = vunpack.c.l.b16 %v680
    %v879 = vunpack.c.h.b16 %v680
    %v880 = vpack.c.b16 %v850, %v848
    %v881 = vpack.c.b16 %v851, %v849
    %v882 = vpack.c.b16 %v854, %v852
    %v883 = vpack.c.b16 %v855, %v853
    %v884 = vpack.c.b16 %v858, %v856
    %v885 = vpack.c.b16 %v859, %v857
    %v886 = vpack.c.b16 %v862, %v860
    %v887 = vpack.c.b16 %v863, %v861
    %v888 = vpack.c.b16 %v866, %v864
    %v889 = vpack.c.b16 %v867, %v865
    %v890 = vpack.c.b16 %v870, %v868
    %v891 = vpack.c.b16 %v871, %v869
    %v892 = vpack.c.b16 %v874, %v872
    %v893 = vpack.c.b16 %v875, %v873
    %v894 = vpack.c.b16 %v878, %v876
    %v895 = vpack.c.b16 %v879, %v877
    %912 = vmatpush.bf16.msra.mxu0 %v894
    %913 = vmatpush.bf16.msra.mxu0 %v892
    %914 = vmatpush.bf16.msra.mxu0 %v890
    %915 = vmatpush.bf16.msra.mxu0 %v888
    %916 = vmatpush.bf16.msra.mxu0 %v886
    %917 = vmatpush.bf16.msra.mxu0 %v884
    %918 = vmatpush.bf16.msra.mxu0 %v882
    %919 = vmatpush.bf16.msra.mxu0 %v880
    %920 = vmatmul.bf16.gmra.mxu0 %v828
    %v921 = vpop.f32.mrf.mxu0
    %v922 = vadd.f32 %v800, %v921
    %v923 = vpop.f32.mrf.mxu0
    %v924 = vadd.f32 %v802, %v923
    %925 = vmatmul.bf16.gmra.mxu0 %v829
    %v926 = vpop.f32.mrf.mxu0
    %v927 = vadd.f32 %v805, %v926
    %v928 = vpop.f32.mrf.mxu0
    %v929 = vadd.f32 %v807, %v928
    %930 = vdwg.mxu0
    %931 = vmatpush.bf16.msra.mxu0 %v895
    %932 = vmatpush.bf16.msra.mxu0 %v893
    %933 = vmatpush.bf16.msra.mxu0 %v891
    %934 = vmatpush.bf16.msra.mxu0 %v889
    %935 = vmatpush.bf16.msra.mxu0 %v887
    %936 = vmatpush.bf16.msra.mxu0 %v885
    %937 = vmatpush.bf16.msra.mxu0 %v883
    %938 = vmatpush.bf16.msra.mxu0 %v881
    %939 = vmatmul.bf16.gmra.mxu0 %v828
    %v940 = vpop.f32.mrf.mxu0
    %v941 = vadd.f32 %v819, %v940
    %v942 = vpop.f32.mrf.mxu0
    %v943 = vadd.f32 %v821, %v942
    %944 = vmatmul.bf16.gmra.mxu0 %v829
    %v945 = vpop.f32.mrf.mxu0
    %v946 = vadd.f32 %v824, %v945
    %v947 = vpop.f32.mrf.mxu0
    %v948 = vadd.f32 %v826, %v947
    %949 = vdwg.mxu0
    %s950 = scalar_lea.vmem [#allocation7], 256
    %v951 = vld [vmem:[%s950] sm:$0xff]
    %v952 = vld [vmem:[%s950 + $0x8] sm:$0xff]
    %v953 = vld [vmem:[%s950 + $0x10] sm:$0xff]
    %v954 = vld [vmem:[%s950 + $0x18] sm:$0xff]
    %v955 = vld [vmem:[%s950 + $0x20] sm:$0xff]
    %v956 = vld [vmem:[%s950 + $0x28] sm:$0xff]
    %v957 = vld [vmem:[%s950 + $0x30] sm:$0xff]
    %v958 = vld [vmem:[%s950 + $0x38] sm:$0xff]
    %v959 = vld [vmem:[%s950 + $0x40] sm:$0xff]
    %v960 = vld [vmem:[%s950 + $0x48] sm:$0xff]
    %v961 = vld [vmem:[%s950 + $0x50] sm:$0xff]
    %v962 = vld [vmem:[%s950 + $0x58] sm:$0xff]
    %v963 = vld [vmem:[%s950 + $0x60] sm:$0xff]
    %v964 = vld [vmem:[%s950 + $0x68] sm:$0xff]
    %v965 = vld [vmem:[%s950 + $0x70] sm:$0xff]
    %v966 = vld [vmem:[%s950 + $0x78] sm:$0xff]
    %v967 = vpack.c.b16 %v345, %v705
    %v985 = vunpack.c.l.b16 %v951
    %v986 = vunpack.c.h.b16 %v951
    %v987 = vunpack.c.l.b16 %v952
    %v988 = vunpack.c.h.b16 %v952
    %v989 = vunpack.c.l.b16 %v953
    %v990 = vunpack.c.h.b16 %v953
    %v991 = vunpack.c.l.b16 %v954
    %v992 = vunpack.c.h.b16 %v954
    %v993 = vunpack.c.l.b16 %v955
    %v994 = vunpack.c.h.b16 %v955
    %v995 = vunpack.c.l.b16 %v956
    %v996 = vunpack.c.h.b16 %v956
    %v997 = vunpack.c.l.b16 %v957
    %v998 = vunpack.c.h.b16 %v957
    %v999 = vunpack.c.l.b16 %v958
    %v1000 = vunpack.c.h.b16 %v958
    %v1001 = vunpack.c.l.b16 %v959
    %v1002 = vunpack.c.h.b16 %v959
    %v1003 = vunpack.c.l.b16 %v960
    %v1004 = vunpack.c.h.b16 %v960
    %v1005 = vunpack.c.l.b16 %v961
    %v1006 = vunpack.c.h.b16 %v961
    %v1007 = vunpack.c.l.b16 %v962
    %v1008 = vunpack.c.h.b16 %v962
    %v1009 = vunpack.c.l.b16 %v963
    %v1010 = vunpack.c.h.b16 %v963
    %v1011 = vunpack.c.l.b16 %v964
    %v1012 = vunpack.c.h.b16 %v964
    %v1013 = vunpack.c.l.b16 %v965
    %v1014 = vunpack.c.h.b16 %v965
    %v1015 = vunpack.c.l.b16 %v966
    %v1016 = vunpack.c.h.b16 %v966
    %v1017 = vpack.c.b16 %v987, %v985
    %v1018 = vpack.c.b16 %v988, %v986
    %v1019 = vpack.c.b16 %v991, %v989
    %v1020 = vpack.c.b16 %v992, %v990
    %v1021 = vpack.c.b16 %v995, %v993
    %v1022 = vpack.c.b16 %v996, %v994
    %v1023 = vpack.c.b16 %v999, %v997
    %v1024 = vpack.c.b16 %v1000, %v998
    %v1025 = vpack.c.b16 %v1003, %v1001
    %v1026 = vpack.c.b16 %v1004, %v1002
    %v1027 = vpack.c.b16 %v1007, %v1005
    %v1028 = vpack.c.b16 %v1008, %v1006
    %v1029 = vpack.c.b16 %v1011, %v1009
    %v1030 = vpack.c.b16 %v1012, %v1010
    %v1031 = vpack.c.b16 %v1015, %v1013
    %v1032 = vpack.c.b16 %v1016, %v1014
    %1049 = vmatpush.bf16.msra.mxu0 %v1031
    %1050 = vmatpush.bf16.msra.mxu0 %v1029
    %1051 = vmatpush.bf16.msra.mxu0 %v1027
    %1052 = vmatpush.bf16.msra.mxu0 %v1025
    %1053 = vmatpush.bf16.msra.mxu0 %v1023
    %1054 = vmatpush.bf16.msra.mxu0 %v1021
    %1055 = vmatpush.bf16.msra.mxu0 %v1019
    %1056 = vmatpush.bf16.msra.mxu0 %v1017
    %1057 = vmatmul.bf16.gmra.mxu0 %v829
    %v1058 = vpop.f32.mrf.mxu0
    %v1059 = vadd.f32 0.0, %v1058
    %v1060 = vpop.f32.mrf.mxu0
    %v1061 = vadd.f32 0.0, %v1060
    %1062 = vmatmul.bf16.gmra.mxu0 %v967
    %v1063 = vpop.f32.mrf.mxu0
    %v1064 = vadd.f32 0.0, %v1063
    %v1065 = vpop.f32.mrf.mxu0
    %v1066 = vadd.f32 0.0, %v1065
    %1067 = vdwg.mxu0
    %1068 = vmatpush.bf16.msra.mxu0 %v1032
    %1069 = vmatpush.bf16.msra.mxu0 %v1030
    %1070 = vmatpush.bf16.msra.mxu0 %v1028
    %1071 = vmatpush.bf16.msra.mxu0 %v1026
    %1072 = vmatpush.bf16.msra.mxu0 %v1024
    %1073 = vmatpush.bf16.msra.mxu0 %v1022
    %1074 = vmatpush.bf16.msra.mxu0 %v1020
    %1075 = vmatpush.bf16.msra.mxu0 %v1018
    %1076 = vmatmul.bf16.gmra.mxu0 %v829
    %v1077 = vpop.f32.mrf.mxu0
    %v1078 = vadd.f32 0.0, %v1077
    %v1079 = vpop.f32.mrf.mxu0
    %v1080 = vadd.f32 0.0, %v1079
    %1081 = vmatmul.bf16.gmra.mxu0 %v967
    %v1082 = vpop.f32.mrf.mxu0
    %v1083 = vadd.f32 0.0, %v1082
    %v1084 = vpop.f32.mrf.mxu0
    %v1085 = vadd.f32 0.0, %v1084
    %1086 = vdwg.mxu0
    %v1087 = vadd.f32 %v922, %v1059
    %v1088 = vadd.f32 %v941, %v1078
    %v1089 = vadd.f32 %v924, %v1061
    %v1090 = vadd.f32 %v943, %v1080
    %v1091 = vadd.f32 %v927, %v1064
    %v1092 = vadd.f32 %v946, %v1083
    %v1093 = vadd.f32 %v929, %v1066
    %v1094 = vadd.f32 %v948, %v1085
    %v1095 = vld [vmem:[%s11] sm:$0x3]
    %v1097 = vperm.slane %v1095, 0
    %v1098 = vperm.slane %v1095, 1
    %v1101 = vmul.f32 %v1087, %v1097
    %v1102 = vmul.f32 %v1088, %v1098
    %v1103 = vmul.f32 %v1089, %v1097
    %v1104 = vmul.f32 %v1090, %v1098
    %v1105 = vmul.f32 %v1091, %v1097
    %v1106 = vmul.f32 %v1092, %v1098
    %v1107 = vmul.f32 %v1093, %v1097
    %v1108 = vmul.f32 %v1094, %v1098
    %v1109 = vld [vmem:[%s12] sm:$0x3]
    %v1111 = vperm.slane %v1109, 0
    %v1112 = vperm.slane %v1109, 1
    %v1115 = vadd.f32 %v1101, %v1111
    %v1116 = vadd.f32 %v1102, %v1112
    %v1117 = vadd.f32 %v1103, %v1111
    %v1118 = vadd.f32 %v1104, %v1112
    %v1119 = vadd.f32 %v1105, %v1111
    %v1120 = vadd.f32 %v1106, %v1112
    %v1121 = vadd.f32 %v1107, %v1111
    %v1122 = vadd.f32 %v1108, %v1112
    %v1123 = vmax.f32 %v1115, 0.0
    %v1124 = vmax.f32 %v1116, 0.0
    %v1125 = vmax.f32 %v1117, 0.0
    %v1126 = vmax.f32 %v1118, 0.0
    %v1127 = vmax.f32 %v1119, 0.0
    %v1128 = vmax.f32 %v1120, 0.0
    %v1129 = vmax.f32 %v1121, 0.0
    %v1130 = vmax.f32 %v1122, 0.0
    %v1131 = vpack.c.bf16 %v1124, %v1123
    %v1132 = vpack.c.bf16 %v1126, %v1125
    %v1133 = vpack.c.bf16 %v1128, %v1127
    %v1134 = vpack.c.bf16 %v1130, %v1129
    %v1135 = vld [vmem:[#allocation8] sm:$0xff]
    %v1136 = vld [vmem:[#allocation8 + $0x8] sm:$0xff]
    %v1137 = vld [vmem:[#allocation8 + $0x10] sm:$0xff]
    %v1138 = vld [vmem:[#allocation8 + $0x18] sm:$0xff]
    %v1139 = vld [vmem:[#allocation8 + $0x20] sm:$0xff]
    %v1140 = vld [vmem:[#allocation8 + $0x28] sm:$0xff]
    %v1141 = vld [vmem:[#allocation8 + $0x30] sm:$0xff]
    %v1142 = vld [vmem:[#allocation8 + $0x38] sm:$0xff]
    %v1143 = vld [vmem:[#allocation8 + $0x40] sm:$0xff]
    %v1144 = vld [vmem:[#allocation8 + $0x48] sm:$0xff]
    %v1145 = vld [vmem:[#allocation8 + $0x50] sm:$0xff]
    %v1146 = vld [vmem:[#allocation8 + $0x58] sm:$0xff]
    %v1147 = vld [vmem:[#allocation8 + $0x60] sm:$0xff]
    %v1148 = vld [vmem:[#allocation8 + $0x68] sm:$0xff]
    %v1149 = vld [vmem:[#allocation8 + $0x70] sm:$0xff]
    %v1150 = vld [vmem:[#allocation8 + $0x78] sm:$0xff]
    %v1151 = vld [vmem:[#allocation8 + $0x80] sm:$0xff]
    %v1152 = vld [vmem:[#allocation8 + $0x88] sm:$0xff]
    %v1153 = vld [vmem:[#allocation8 + $0x90] sm:$0xff]
    %v1154 = vld [vmem:[#allocation8 + $0x98] sm:$0xff]
    %v1155 = vld [vmem:[#allocation8 + $0xa0] sm:$0xff]
    %v1156 = vld [vmem:[#allocation8 + $0xa8] sm:$0xff]
    %v1157 = vld [vmem:[#allocation8 + $0xb0] sm:$0xff]
    %v1158 = vld [vmem:[#allocation8 + $0xb8] sm:$0xff]
    %v1159 = vld [vmem:[#allocation8 + $0xc0] sm:$0xff]
    %v1160 = vld [vmem:[#allocation8 + $0xc8] sm:$0xff]
    %v1161 = vld [vmem:[#allocation8 + $0xd0] sm:$0xff]
    %v1162 = vld [vmem:[#allocation8 + $0xd8] sm:$0xff]
    %v1163 = vld [vmem:[#allocation8 + $0xe0] sm:$0xff]
    %v1164 = vld [vmem:[#allocation8 + $0xe8] sm:$0xff]
    %v1165 = vld [vmem:[#allocation8 + $0xf0] sm:$0xff]
    %v1166 = vld [vmem:[#allocation8 + $0xf8] sm:$0xff]
    %s1167 = scalar_lea.vmem [#allocation8], 256
    %v1168 = vld [vmem:[%s1167] sm:$0xff]
    %v1169 = vld [vmem:[%s1167 + $0x8] sm:$0xff]
    %v1170 = vld [vmem:[%s1167 + $0x10] sm:$0xff]
    %v1171 = vld [vmem:[%s1167 + $0x18] sm:$0xff]
    %v1172 = vld [vmem:[%s1167 + $0x20] sm:$0xff]
    %v1173 = vld [vmem:[%s1167 + $0x28] sm:$0xff]
    %v1174 = vld [vmem:[%s1167 + $0x30] sm:$0xff]
    %v1175 = vld [vmem:[%s1167 + $0x38] sm:$0xff]
    %v1176 = vld [vmem:[%s1167 + $0x40] sm:$0xff]
    %v1177 = vld [vmem:[%s1167 + $0x48] sm:$0xff]
    %v1178 = vld [vmem:[%s1167 + $0x50] sm:$0xff]
    %v1179 = vld [vmem:[%s1167 + $0x58] sm:$0xff]
    %v1180 = vld [vmem:[%s1167 + $0x60] sm:$0xff]
    %v1181 = vld [vmem:[%s1167 + $0x68] sm:$0xff]
    %v1182 = vld [vmem:[%s1167 + $0x70] sm:$0xff]
    %v1183 = vld [vmem:[%s1167 + $0x78] sm:$0xff]
    %v1184 = vld [vmem:[%s1167 + $0x80] sm:$0xff]
    %v1185 = vld [vmem:[%s1167 + $0x88] sm:$0xff]
    %v1186 = vld [vmem:[%s1167 + $0x90] sm:$0xff]
    %v1187 = vld [vmem:[%s1167 + $0x98] sm:$0xff]
    %v1188 = vld [vmem:[%s1167 + $0xa0] sm:$0xff]
    %v1189 = vld [vmem:[%s1167 + $0xa8] sm:$0xff]
    %v1190 = vld [vmem:[%s1167 + $0xb0] sm:$0xff]
    %v1191 = vld [vmem:[%s1167 + $0xb8] sm:$0xff]
    %v1192 = vld [vmem:[%s1167 + $0xc0] sm:$0xff]
    %v1193 = vld [vmem:[%s1167 + $0xc8] sm:$0xff]
    %v1194 = vld [vmem:[%s1167 + $0xd0] sm:$0xff]
    %v1195 = vld [vmem:[%s1167 + $0xd8] sm:$0xff]
    %v1196 = vld [vmem:[%s1167 + $0xe0] sm:$0xff]
    %v1197 = vld [vmem:[%s1167 + $0xe8] sm:$0xff]
    %v1198 = vld [vmem:[%s1167 + $0xf0] sm:$0xff]
    %v1199 = vld [vmem:[%s1167 + $0xf8] sm:$0xff]
    %v1201 = vunpack.c.l.b16 %v1132
    %v1202 = vunpack.c.h.b16 %v1132
    %v1203 = vpack.c.b16 %v1201, %v1201
    %v1204 = vpack.c.b16 %v1202, %v1202
    %v1239 = vunpack.c.l.b16 %v1168
    %v1240 = vunpack.c.h.b16 %v1168
    %v1241 = vunpack.c.l.b16 %v1169
    %v1242 = vunpack.c.h.b16 %v1169
    %v1243 = vunpack.c.l.b16 %v1170
    %v1244 = vunpack.c.h.b16 %v1170
    %v1245 = vunpack.c.l.b16 %v1171
    %v1246 = vunpack.c.h.b16 %v1171
    %v1247 = vunpack.c.l.b16 %v1172
    %v1248 = vunpack.c.h.b16 %v1172
    %v1249 = vunpack.c.l.b16 %v1173
    %v1250 = vunpack.c.h.b16 %v1173
    %v1251 = vunpack.c.l.b16 %v1174
    %v1252 = vunpack.c.h.b16 %v1174
    %v1253 = vunpack.c.l.b16 %v1175
    %v1254 = vunpack.c.h.b16 %v1175
    %v1255 = vunpack.c.l.b16 %v1176
    %v1256 = vunpack.c.h.b16 %v1176
    %v1257 = vunpack.c.l.b16 %v1177
    %v1258 = vunpack.c.h.b16 %v1177
    %v1259 = vunpack.c.l.b16 %v1178
    %v1260 = vunpack.c.h.b16 %v1178
    %v1261 = vunpack.c.l.b16 %v1179
    %v1262 = vunpack.c.h.b16 %v1179
    %v1263 = vunpack.c.l.b16 %v1180
    %v1264 = vunpack.c.h.b16 %v1180
    %v1265 = vunpack.c.l.b16 %v1181
    %v1266 = vunpack.c.h.b16 %v1181
    %v1267 = vunpack.c.l.b16 %v1182
    %v1268 = vunpack.c.h.b16 %v1182
    %v1269 = vunpack.c.l.b16 %v1183
    %v1270 = vunpack.c.h.b16 %v1183
    %v1271 = vunpack.c.l.b16 %v1184
    %v1272 = vunpack.c.h.b16 %v1184
    %v1273 = vunpack.c.l.b16 %v1185
    %v1274 = vunpack.c.h.b16 %v1185
    %v1275 = vunpack.c.l.b16 %v1186
    %v1276 = vunpack.c.h.b16 %v1186
    %v1277 = vunpack.c.l.b16 %v1187
    %v1278 = vunpack.c.h.b16 %v1187
    %v1279 = vunpack.c.l.b16 %v1188
    %v1280 = vunpack.c.h.b16 %v1188
    %v1281 = vunpack.c.l.b16 %v1189
    %v1282 = vunpack.c.h.b16 %v1189
    %v1283 = vunpack.c.l.b16 %v1190
    %v1284 = vunpack.c.h.b16 %v1190
    %v1285 = vunpack.c.l.b16 %v1191
    %v1286 = vunpack.c.h.b16 %v1191
    %v1287 = vunpack.c.l.b16 %v1192
    %v1288 = vunpack.c.h.b16 %v1192
    %v1289 = vunpack.c.l.b16 %v1193
    %v1290 = vunpack.c.h.b16 %v1193
    %v1291 = vunpack.c.l.b16 %v1194
    %v1292 = vunpack.c.h.b16 %v1194
    %v1293 = vunpack.c.l.b16 %v1195
    %v1294 = vunpack.c.h.b16 %v1195
    %v1295 = vunpack.c.l.b16 %v1196
    %v1296 = vunpack.c.h.b16 %v1196
    %v1297 = vunpack.c.l.b16 %v1197
    %v1298 = vunpack.c.h.b16 %v1197
    %v1299 = vunpack.c.l.b16 %v1198
    %v1300 = vunpack.c.h.b16 %v1198
    %v1301 = vunpack.c.l.b16 %v1199
    %v1302 = vunpack.c.h.b16 %v1199
    %v1303 = vpack.c.b16 %v1241, %v1239
    %v1304 = vpack.c.b16 %v1242, %v1240
    %v1305 = vpack.c.b16 %v1245, %v1243
    %v1306 = vpack.c.b16 %v1246, %v1244
    %v1307 = vpack.c.b16 %v1249, %v1247
    %v1308 = vpack.c.b16 %v1250, %v1248
    %v1309 = vpack.c.b16 %v1253, %v1251
    %v1310 = vpack.c.b16 %v1254, %v1252
    %v1311 = vpack.c.b16 %v1257, %v1255
    %v1312 = vpack.c.b16 %v1258, %v1256
    %v1313 = vpack.c.b16 %v1261, %v1259
    %v1314 = vpack.c.b16 %v1262, %v1260
    %v1315 = vpack.c.b16 %v1265, %v1263
    %v1316 = vpack.c.b16 %v1266, %v1264
    %v1317 = vpack.c.b16 %v1269, %v1267
    %v1318 = vpack.c.b16 %v1270, %v1268
    %v1319 = vpack.c.b16 %v1273, %v1271
    %v1320 = vpack.c.b16 %v1274, %v1272
    %v1321 = vpack.c.b16 %v1277, %v1275
    %v1322 = vpack.c.b16 %v1278, %v1276
    %v1323 = vpack.c.b16 %v1281, %v1279
    %v1324 = vpack.c.b16 %v1282, %v1280
    %v1325 = vpack.c.b16 %v1285, %v1283
    %v1326 = vpack.c.b16 %v1286, %v1284
    %v1327 = vpack.c.b16 %v1289, %v1287
    %v1328 = vpack.c.b16 %v1290, %v1288
    %v1329 = vpack.c.b16 %v1293, %v1291
    %v1330 = vpack.c.b16 %v1294, %v1292
    %v1331 = vpack.c.b16 %v1297, %v1295
    %v1332 = vpack.c.b16 %v1298, %v1296
    %v1333 = vpack.c.b16 %v1301, %v1299
    %v1334 = vpack.c.b16 %v1302, %v1300
    %1367 = vmatpush.bf16.msra.mxu0 %v1317
    %1368 = vmatpush.bf16.msra.mxu0 %v1315
    %1369 = vmatpush.bf16.msra.mxu0 %v1313
    %1370 = vmatpush.bf16.msra.mxu0 %v1311
    %1371 = vmatpush.bf16.msra.mxu0 %v1309
    %1372 = vmatpush.bf16.msra.mxu0 %v1307
    %1373 = vmatpush.bf16.msra.mxu0 %v1305
    %1374 = vmatpush.bf16.msra.mxu0 %v1303
    %1375 = vmatmul.bf16.gmra.mxu0 %v1203
    %v1376 = vpop.f32.mrf.mxu0
    %v1377 = vadd.f32 0.0, %v1376
    %v1378 = vpop.f32.mrf.mxu0
    %1379 = vdwg.mxu0
    %1380 = vmatpush.bf16.msra.mxu0 %v1333
    %1381 = vmatpush.bf16.msra.mxu0 %v1331
    %1382 = vmatpush.bf16.msra.mxu0 %v1329
    %1383 = vmatpush.bf16.msra.mxu0 %v1327
    %1384 = vmatpush.bf16.msra.mxu0 %v1325
    %1385 = vmatpush.bf16.msra.mxu0 %v1323
    %1386 = vmatpush.bf16.msra.mxu0 %v1321
    %1387 = vmatpush.bf16.msra.mxu0 %v1319
    %1388 = vmatmul.bf16.gmra.mxu0 %v1204
    %v1389 = vpop.f32.mrf.mxu0
    %v1390 = vadd.f32 %v1377, %v1389
    %v1391 = vpop.f32.mrf.mxu0
    %1392 = vdwg.mxu0
    %1393 = vmatpush.bf16.msra.mxu0 %v1318
    %1394 = vmatpush.bf16.msra.mxu0 %v1316
    %1395 = vmatpush.bf16.msra.mxu0 %v1314
    %1396 = vmatpush.bf16.msra.mxu0 %v1312
    %1397 = vmatpush.bf16.msra.mxu0 %v1310
    %1398 = vmatpush.bf16.msra.mxu0 %v1308
    %1399 = vmatpush.bf16.msra.mxu0 %v1306
    %1400 = vmatpush.bf16.msra.mxu0 %v1304
    %1401 = vmatmul.bf16.gmra.mxu0 %v1203
    %v1402 = vpop.f32.mrf.mxu0
    %v1403 = vadd.f32 0.0, %v1402
    %v1404 = vpop.f32.mrf.mxu0
    %1405 = vdwg.mxu0
    %1406 = vmatpush.bf16.msra.mxu0 %v1334
    %1407 = vmatpush.bf16.msra.mxu0 %v1332
    %1408 = vmatpush.bf16.msra.mxu0 %v1330
    %1409 = vmatpush.bf16.msra.mxu0 %v1328
    %1410 = vmatpush.bf16.msra.mxu0 %v1326
    %1411 = vmatpush.bf16.msra.mxu0 %v1324
    %1412 = vmatpush.bf16.msra.mxu0 %v1322
    %1413 = vmatpush.bf16.msra.mxu0 %v1320
    %1414 = vmatmul.bf16.gmra.mxu0 %v1204
    %v1415 = vpop.f32.mrf.mxu0
    %v1416 = vadd.f32 %v1403, %v1415
    %v1417 = vpop.f32.mrf.mxu0
    %1418 = vdwg.mxu0
    %v1420 = vunpack.c.l.b16 %v1131
    %v1421 = vunpack.c.h.b16 %v1131
    %v1422 = vpack.c.b16 %v1420, %v1420
    %v1423 = vpack.c.b16 %v1421, %v1421
    %v1458 = vunpack.c.l.b16 %v1135
    %v1459 = vunpack.c.h.b16 %v1135
    %v1460 = vunpack.c.l.b16 %v1136
    %v1461 = vunpack.c.h.b16 %v1136
    %v1462 = vunpack.c.l.b16 %v1137
    %v1463 = vunpack.c.h.b16 %v1137
    %v1464 = vunpack.c.l.b16 %v1138
    %v1465 = vunpack.c.h.b16 %v1138
    %v1466 = vunpack.c.l.b16 %v1139
    %v1467 = vunpack.c.h.b16 %v1139
    %v1468 = vunpack.c.l.b16 %v1140
    %v1469 = vunpack.c.h.b16 %v1140
    %v1470 = vunpack.c.l.b16 %v1141
    %v1471 = vunpack.c.h.b16 %v1141
    %v1472 = vunpack.c.l.b16 %v1142
    %v1473 = vunpack.c.h.b16 %v1142
    %v1474 = vunpack.c.l.b16 %v1143
    %v1475 = vunpack.c.h.b16 %v1143
    %v1476 = vunpack.c.l.b16 %v1144
    %v1477 = vunpack.c.h.b16 %v1144
    %v1478 = vunpack.c.l.b16 %v1145
    %v1479 = vunpack.c.h.b16 %v1145
    %v1480 = vunpack.c.l.b16 %v1146
    %v1481 = vunpack.c.h.b16 %v1146
    %v1482 = vunpack.c.l.b16 %v1147
    %v1483 = vunpack.c.h.b16 %v1147
    %v1484 = vunpack.c.l.b16 %v1148
    %v1485 = vunpack.c.h.b16 %v1148
    %v1486 = vunpack.c.l.b16 %v1149
    %v1487 = vunpack.c.h.b16 %v1149
    %v1488 = vunpack.c.l.b16 %v1150
    %v1489 = vunpack.c.h.b16 %v1150
    %v1490 = vunpack.c.l.b16 %v1151
    %v1491 = vunpack.c.h.b16 %v1151
    %v1492 = vunpack.c.l.b16 %v1152
    %v1493 = vunpack.c.h.b16 %v1152
    %v1494 = vunpack.c.l.b16 %v1153
    %v1495 = vunpack.c.h.b16 %v1153
    %v1496 = vunpack.c.l.b16 %v1154
    %v1497 = vunpack.c.h.b16 %v1154
    %v1498 = vunpack.c.l.b16 %v1155
    %v1499 = vunpack.c.h.b16 %v1155
    %v1500 = vunpack.c.l.b16 %v1156
    %v1501 = vunpack.c.h.b16 %v1156
    %v1502 = vunpack.c.l.b16 %v1157
    %v1503 = vunpack.c.h.b16 %v1157
    %v1504 = vunpack.c.l.b16 %v1158
    %v1505 = vunpack.c.h.b16 %v1158
    %v1506 = vunpack.c.l.b16 %v1159
    %v1507 = vunpack.c.h.b16 %v1159
    %v1508 = vunpack.c.l.b16 %v1160
    %v1509 = vunpack.c.h.b16 %v1160
    %v1510 = vunpack.c.l.b16 %v1161
    %v1511 = vunpack.c.h.b16 %v1161
    %v1512 = vunpack.c.l.b16 %v1162
    %v1513 = vunpack.c.h.b16 %v1162
    %v1514 = vunpack.c.l.b16 %v1163
    %v1515 = vunpack.c.h.b16 %v1163
    %v1516 = vunpack.c.l.b16 %v1164
    %v1517 = vunpack.c.h.b16 %v1164
    %v1518 = vunpack.c.l.b16 %v1165
    %v1519 = vunpack.c.h.b16 %v1165
    %v1520 = vunpack.c.l.b16 %v1166
    %v1521 = vunpack.c.h.b16 %v1166
    %v1522 = vpack.c.b16 %v1460, %v1458
    %v1523 = vpack.c.b16 %v1461, %v1459
    %v1524 = vpack.c.b16 %v1464, %v1462
    %v1525 = vpack.c.b16 %v1465, %v1463
    %v1526 = vpack.c.b16 %v1468, %v1466
    %v1527 = vpack.c.b16 %v1469, %v1467
    %v1528 = vpack.c.b16 %v1472, %v1470
    %v1529 = vpack.c.b16 %v1473, %v1471
    %v1530 = vpack.c.b16 %v1476, %v1474
    %v1531 = vpack.c.b16 %v1477, %v1475
    %v1532 = vpack.c.b16 %v1480, %v1478
    %v1533 = vpack.c.b16 %v1481, %v1479
    %v1534 = vpack.c.b16 %v1484, %v1482
    %v1535 = vpack.c.b16 %v1485, %v1483
    %v1536 = vpack.c.b16 %v1488, %v1486
    %v1537 = vpack.c.b16 %v1489, %v1487
    %v1538 = vpack.c.b16 %v1492, %v1490
    %v1539 = vpack.c.b16 %v1493, %v1491
    %v1540 = vpack.c.b16 %v1496, %v1494
    %v1541 = vpack.c.b16 %v1497, %v1495
    %v1542 = vpack.c.b16 %v1500, %v1498
    %v1543 = vpack.c.b16 %v1501, %v1499
    %v1544 = vpack.c.b16 %v1504, %v1502
    %v1545 = vpack.c.b16 %v1505, %v1503
    %v1546 = vpack.c.b16 %v1508, %v1506
    %v1547 = vpack.c.b16 %v1509, %v1507
    %v1548 = vpack.c.b16 %v1512, %v1510
    %v1549 = vpack.c.b16 %v1513, %v1511
    %v1550 = vpack.c.b16 %v1516, %v1514
    %v1551 = vpack.c.b16 %v1517, %v1515
    %v1552 = vpack.c.b16 %v1520, %v1518
    %v1553 = vpack.c.b16 %v1521, %v1519
    %1586 = vmatpush.bf16.msra.mxu0 %v1536
    %1587 = vmatpush.bf16.msra.mxu0 %v1534
    %1588 = vmatpush.bf16.msra.mxu0 %v1532
    %1589 = vmatpush.bf16.msra.mxu0 %v1530
    %1590 = vmatpush.bf16.msra.mxu0 %v1528
    %1591 = vmatpush.bf16.msra.mxu0 %v1526
    %1592 = vmatpush.bf16.msra.mxu0 %v1524
    %1593 = vmatpush.bf16.msra.mxu0 %v1522
    %1594 = vmatmul.bf16.gmra.mxu0 %v1422
    %v1595 = vpop.f32.mrf.mxu0
    %v1596 = vadd.f32 %v1390, %v1595
    %v1597 = vpop.f32.mrf.mxu0
    %1598 = vdwg.mxu0
    %1599 = vmatpush.bf16.msra.mxu0 %v1552
    %1600 = vmatpush.bf16.msra.mxu0 %v1550
    %1601 = vmatpush.bf16.msra.mxu0 %v1548
    %1602 = vmatpush.bf16.msra.mxu0 %v1546
    %1603 = vmatpush.bf16.msra.mxu0 %v1544
    %1604 = vmatpush.bf16.msra.mxu0 %v1542
    %1605 = vmatpush.bf16.msra.mxu0 %v1540
    %1606 = vmatpush.bf16.msra.mxu0 %v1538
    %1607 = vmatmul.bf16.gmra.mxu0 %v1423
    %v1608 = vpop.f32.mrf.mxu0
    %v1609 = vadd.f32 %v1596, %v1608
    %v1610 = vpop.f32.mrf.mxu0
    %1611 = vdwg.mxu0
    %1612 = vmatpush.bf16.msra.mxu0 %v1537
    %1613 = vmatpush.bf16.msra.mxu0 %v1535
    %1614 = vmatpush.bf16.msra.mxu0 %v1533
    %1615 = vmatpush.bf16.msra.mxu0 %v1531
    %1616 = vmatpush.bf16.msra.mxu0 %v1529
    %1617 = vmatpush.bf16.msra.mxu0 %v1527
    %1618 = vmatpush.bf16.msra.mxu0 %v1525
    %1619 = vmatpush.bf16.msra.mxu0 %v1523
    %1620 = vmatmul.bf16.gmra.mxu0 %v1422
    %v1621 = vpop.f32.mrf.mxu0
    %v1622 = vadd.f32 %v1416, %v1621
    %v1623 = vpop.f32.mrf.mxu0
    %1624 = vdwg.mxu0
    %1625 = vmatpush.bf16.msra.mxu0 %v1553
    %1626 = vmatpush.bf16.msra.mxu0 %v1551
    %1627 = vmatpush.bf16.msra.mxu0 %v1549
    %1628 = vmatpush.bf16.msra.mxu0 %v1547
    %1629 = vmatpush.bf16.msra.mxu0 %v1545
    %1630 = vmatpush.bf16.msra.mxu0 %v1543
    %1631 = vmatpush.bf16.msra.mxu0 %v1541
    %1632 = vmatpush.bf16.msra.mxu0 %v1539
    %1633 = vmatmul.bf16.gmra.mxu0 %v1423
    %v1634 = vpop.f32.mrf.mxu0
    %v1635 = vadd.f32 %v1622, %v1634
    %v1636 = vpop.f32.mrf.mxu0
    %1637 = vdwg.mxu0
    %s1638 = scalar_lea.vmem [#allocation8], 512
    %v1639 = vld [vmem:[%s1638] sm:$0xff]
    %v1640 = vld [vmem:[%s1638 + $0x8] sm:$0xff]
    %v1641 = vld [vmem:[%s1638 + $0x10] sm:$0xff]
    %v1642 = vld [vmem:[%s1638 + $0x18] sm:$0xff]
    %v1643 = vld [vmem:[%s1638 + $0x20] sm:$0xff]
    %v1644 = vld [vmem:[%s1638 + $0x28] sm:$0xff]
    %v1645 = vld [vmem:[%s1638 + $0x30] sm:$0xff]
    %v1646 = vld [vmem:[%s1638 + $0x38] sm:$0xff]
    %v1647 = vld [vmem:[%s1638 + $0x40] sm:$0xff]
    %v1648 = vld [vmem:[%s1638 + $0x48] sm:$0xff]
    %v1649 = vld [vmem:[%s1638 + $0x50] sm:$0xff]
    %v1650 = vld [vmem:[%s1638 + $0x58] sm:$0xff]
    %v1651 = vld [vmem:[%s1638 + $0x60] sm:$0xff]
    %v1652 = vld [vmem:[%s1638 + $0x68] sm:$0xff]
    %v1653 = vld [vmem:[%s1638 + $0x70] sm:$0xff]
    %v1654 = vld [vmem:[%s1638 + $0x78] sm:$0xff]
    %v1655 = vld [vmem:[%s1638 + $0x80] sm:$0xff]
    %v1656 = vld [vmem:[%s1638 + $0x88] sm:$0xff]
    %v1657 = vld [vmem:[%s1638 + $0x90] sm:$0xff]
    %v1658 = vld [vmem:[%s1638 + $0x98] sm:$0xff]
    %v1659 = vld [vmem:[%s1638 + $0xa0] sm:$0xff]
    %v1660 = vld [vmem:[%s1638 + $0xa8] sm:$0xff]
    %v1661 = vld [vmem:[%s1638 + $0xb0] sm:$0xff]
    %v1662 = vld [vmem:[%s1638 + $0xb8] sm:$0xff]
    %v1663 = vld [vmem:[%s1638 + $0xc0] sm:$0xff]
    %v1664 = vld [vmem:[%s1638 + $0xc8] sm:$0xff]
    %v1665 = vld [vmem:[%s1638 + $0xd0] sm:$0xff]
    %v1666 = vld [vmem:[%s1638 + $0xd8] sm:$0xff]
    %v1667 = vld [vmem:[%s1638 + $0xe0] sm:$0xff]
    %v1668 = vld [vmem:[%s1638 + $0xe8] sm:$0xff]
    %v1669 = vld [vmem:[%s1638 + $0xf0] sm:$0xff]
    %v1670 = vld [vmem:[%s1638 + $0xf8] sm:$0xff]
    %v1672 = vunpack.c.l.b16 %v1133
    %v1673 = vunpack.c.h.b16 %v1133
    %v1674 = vpack.c.b16 %v1672, %v1672
    %v1675 = vpack.c.b16 %v1673, %v1673
    %v1710 = vunpack.c.l.b16 %v1639
    %v1711 = vunpack.c.h.b16 %v1639
    %v1712 = vunpack.c.l.b16 %v1640
    %v1713 = vunpack.c.h.b16 %v1640
    %v1714 = vunpack.c.l.b16 %v1641
    %v1715 = vunpack.c.h.b16 %v1641
    %v1716 = vunpack.c.l.b16 %v1642
    %v1717 = vunpack.c.h.b16 %v1642
    %v1718 = vunpack.c.l.b16 %v1643
    %v1719 = vunpack.c.h.b16 %v1643
    %v1720 = vunpack.c.l.b16 %v1644
    %v1721 = vunpack.c.h.b16 %v1644
    %v1722 = vunpack.c.l.b16 %v1645
    %v1723 = vunpack.c.h.b16 %v1645
    %v1724 = vunpack.c.l.b16 %v1646
    %v1725 = vunpack.c.h.b16 %v1646
    %v1726 = vunpack.c.l.b16 %v1647
    %v1727 = vunpack.c.h.b16 %v1647
    %v1728 = vunpack.c.l.b16 %v1648
    %v1729 = vunpack.c.h.b16 %v1648
    %v1730 = vunpack.c.l.b16 %v1649
    %v1731 = vunpack.c.h.b16 %v1649
    %v1732 = vunpack.c.l.b16 %v1650
    %v1733 = vunpack.c.h.b16 %v1650
    %v1734 = vunpack.c.l.b16 %v1651
    %v1735 = vunpack.c.h.b16 %v1651
    %v1736 = vunpack.c.l.b16 %v1652
    %v1737 = vunpack.c.h.b16 %v1652
    %v1738 = vunpack.c.l.b16 %v1653
    %v1739 = vunpack.c.h.b16 %v1653
    %v1740 = vunpack.c.l.b16 %v1654
    %v1741 = vunpack.c.h.b16 %v1654
    %v1742 = vunpack.c.l.b16 %v1655
    %v1743 = vunpack.c.h.b16 %v1655
    %v1744 = vunpack.c.l.b16 %v1656
    %v1745 = vunpack.c.h.b16 %v1656
    %v1746 = vunpack.c.l.b16 %v1657
    %v1747 = vunpack.c.h.b16 %v1657
    %v1748 = vunpack.c.l.b16 %v1658
    %v1749 = vunpack.c.h.b16 %v1658
    %v1750 = vunpack.c.l.b16 %v1659
    %v1751 = vunpack.c.h.b16 %v1659
    %v1752 = vunpack.c.l.b16 %v1660
    %v1753 = vunpack.c.h.b16 %v1660
    %v1754 = vunpack.c.l.b16 %v1661
    %v1755 = vunpack.c.h.b16 %v1661
    %v1756 = vunpack.c.l.b16 %v1662
    %v1757 = vunpack.c.h.b16 %v1662
    %v1758 = vunpack.c.l.b16 %v1663
    %v1759 = vunpack.c.h.b16 %v1663
    %v1760 = vunpack.c.l.b16 %v1664
    %v1761 = vunpack.c.h.b16 %v1664
    %v1762 = vunpack.c.l.b16 %v1665
    %v1763 = vunpack.c.h.b16 %v1665
    %v1764 = vunpack.c.l.b16 %v1666
    %v1765 = vunpack.c.h.b16 %v1666
    %v1766 = vunpack.c.l.b16 %v1667
    %v1767 = vunpack.c.h.b16 %v1667
    %v1768 = vunpack.c.l.b16 %v1668
    %v1769 = vunpack.c.h.b16 %v1668
    %v1770 = vunpack.c.l.b16 %v1669
    %v1771 = vunpack.c.h.b16 %v1669
    %v1772 = vunpack.c.l.b16 %v1670
    %v1773 = vunpack.c.h.b16 %v1670
    %v1774 = vpack.c.b16 %v1712, %v1710
    %v1775 = vpack.c.b16 %v1713, %v1711
    %v1776 = vpack.c.b16 %v1716, %v1714
    %v1777 = vpack.c.b16 %v1717, %v1715
    %v1778 = vpack.c.b16 %v1720, %v1718
    %v1779 = vpack.c.b16 %v1721, %v1719
    %v1780 = vpack.c.b16 %v1724, %v1722
    %v1781 = vpack.c.b16 %v1725, %v1723
    %v1782 = vpack.c.b16 %v1728, %v1726
    %v1783 = vpack.c.b16 %v1729, %v1727
    %v1784 = vpack.c.b16 %v1732, %v1730
    %v1785 = vpack.c.b16 %v1733, %v1731
    %v1786 = vpack.c.b16 %v1736, %v1734
    %v1787 = vpack.c.b16 %v1737, %v1735
    %v1788 = vpack.c.b16 %v1740, %v1738
    %v1789 = vpack.c.b16 %v1741, %v1739
    %v1790 = vpack.c.b16 %v1744, %v1742
    %v1791 = vpack.c.b16 %v1745, %v1743
    %v1792 = vpack.c.b16 %v1748, %v1746
    %v1793 = vpack.c.b16 %v1749, %v1747
    %v1794 = vpack.c.b16 %v1752, %v1750
    %v1795 = vpack.c.b16 %v1753, %v1751
    %v1796 = vpack.c.b16 %v1756, %v1754
    %v1797 = vpack.c.b16 %v1757, %v1755
    %v1798 = vpack.c.b16 %v1760, %v1758
    %v1799 = vpack.c.b16 %v1761, %v1759
    %v1800 = vpack.c.b16 %v1764, %v1762
    %v1801 = vpack.c.b16 %v1765, %v1763
    %v1802 = vpack.c.b16 %v1768, %v1766
    %v1803 = vpack.c.b16 %v1769, %v1767
    %v1804 = vpack.c.b16 %v1772, %v1770
    %v1805 = vpack.c.b16 %v1773, %v1771
    %1838 = vmatpush.bf16.msra.mxu0 %v1788
    %1839 = vmatpush.bf16.msra.mxu0 %v1786
    %1840 = vmatpush.bf16.msra.mxu0 %v1784
    %1841 = vmatpush.bf16.msra.mxu0 %v1782
    %1842 = vmatpush.bf16.msra.mxu0 %v1780
    %1843 = vmatpush.bf16.msra.mxu0 %v1778
    %1844 = vmatpush.bf16.msra.mxu0 %v1776
    %1845 = vmatpush.bf16.msra.mxu0 %v1774
    %1846 = vmatmul.bf16.gmra.mxu0 %v1674
    %v1847 = vpop.f32.mrf.mxu0
    %v1848 = vadd.f32 0.0, %v1847
    %v1849 = vpop.f32.mrf.mxu0
    %1850 = vdwg.mxu0
    %1851 = vmatpush.bf16.msra.mxu0 %v1804
    %1852 = vmatpush.bf16.msra.mxu0 %v1802
    %1853 = vmatpush.bf16.msra.mxu0 %v1800
    %1854 = vmatpush.bf16.msra.mxu0 %v1798
    %1855 = vmatpush.bf16.msra.mxu0 %v1796
    %1856 = vmatpush.bf16.msra.mxu0 %v1794
    %1857 = vmatpush.bf16.msra.mxu0 %v1792
    %1858 = vmatpush.bf16.msra.mxu0 %v1790
    %1859 = vmatmul.bf16.gmra.mxu0 %v1675
    %v1860 = vpop.f32.mrf.mxu0
    %v1861 = vadd.f32 %v1848, %v1860
    %v1862 = vpop.f32.mrf.mxu0
    %1863 = vdwg.mxu0
    %1864 = vmatpush.bf16.msra.mxu0 %v1789
    %1865 = vmatpush.bf16.msra.mxu0 %v1787
    %1866 = vmatpush.bf16.msra.mxu0 %v1785
    %1867 = vmatpush.bf16.msra.mxu0 %v1783
    %1868 = vmatpush.bf16.msra.mxu0 %v1781
    %1869 = vmatpush.bf16.msra.mxu0 %v1779
    %1870 = vmatpush.bf16.msra.mxu0 %v1777
    %1871 = vmatpush.bf16.msra.mxu0 %v1775
    %1872 = vmatmul.bf16.gmra.mxu0 %v1674
    %v1873 = vpop.f32.mrf.mxu0
    %v1874 = vadd.f32 0.0, %v1873
    %v1875 = vpop.f32.mrf.mxu0
    %1876 = vdwg.mxu0
    %1877 = vmatpush.bf16.msra.mxu0 %v1805
    %1878 = vmatpush.bf16.msra.mxu0 %v1803
    %1879 = vmatpush.bf16.msra.mxu0 %v1801
    %1880 = vmatpush.bf16.msra.mxu0 %v1799
    %1881 = vmatpush.bf16.msra.mxu0 %v1797
    %1882 = vmatpush.bf16.msra.mxu0 %v1795
    %1883 = vmatpush.bf16.msra.mxu0 %v1793
    %1884 = vmatpush.bf16.msra.mxu0 %v1791
    %1885 = vmatmul.bf16.gmra.mxu0 %v1675
    %v1886 = vpop.f32.mrf.mxu0
    %v1887 = vadd.f32 %v1874, %v1886
    %v1888 = vpop.f32.mrf.mxu0
    %1889 = vdwg.mxu0
    %v1890 = vadd.f32 %v1609, %v1861
    %v1891 = vadd.f32 %v1635, %v1887
    %s1892 = scalar_lea.vmem [#allocation8], 768
    %v1893 = vld [vmem:[%s1892] sm:$0xff]
    %v1894 = vld [vmem:[%s1892 + $0x8] sm:$0xff]
    %v1895 = vld [vmem:[%s1892 + $0x10] sm:$0xff]
    %v1896 = vld [vmem:[%s1892 + $0x18] sm:$0xff]
    %v1897 = vld [vmem:[%s1892 + $0x20] sm:$0xff]
    %v1898 = vld [vmem:[%s1892 + $0x28] sm:$0xff]
    %v1899 = vld [vmem:[%s1892 + $0x30] sm:$0xff]
    %v1900 = vld [vmem:[%s1892 + $0x38] sm:$0xff]
    %v1901 = vld [vmem:[%s1892 + $0x40] sm:$0xff]
    %v1902 = vld [vmem:[%s1892 + $0x48] sm:$0xff]
    %v1903 = vld [vmem:[%s1892 + $0x50] sm:$0xff]
    %v1904 = vld [vmem:[%s1892 + $0x58] sm:$0xff]
    %v1905 = vld [vmem:[%s1892 + $0x60] sm:$0xff]
    %v1906 = vld [vmem:[%s1892 + $0x68] sm:$0xff]
    %v1907 = vld [vmem:[%s1892 + $0x70] sm:$0xff]
    %v1908 = vld [vmem:[%s1892 + $0x78] sm:$0xff]
    %v1909 = vld [vmem:[%s1892 + $0x80] sm:$0xff]
    %v1910 = vld [vmem:[%s1892 + $0x88] sm:$0xff]
    %v1911 = vld [vmem:[%s1892 + $0x90] sm:$0xff]
    %v1912 = vld [vmem:[%s1892 + $0x98] sm:$0xff]
    %v1913 = vld [vmem:[%s1892 + $0xa0] sm:$0xff]
    %v1914 = vld [vmem:[%s1892 + $0xa8] sm:$0xff]
    %v1915 = vld [vmem:[%s1892 + $0xb0] sm:$0xff]
    %v1916 = vld [vmem:[%s1892 + $0xb8] sm:$0xff]
    %v1917 = vld [vmem:[%s1892 + $0xc0] sm:$0xff]
    %v1918 = vld [vmem:[%s1892 + $0xc8] sm:$0xff]
    %v1919 = vld [vmem:[%s1892 + $0xd0] sm:$0xff]
    %v1920 = vld [vmem:[%s1892 + $0xd8] sm:$0xff]
    %v1921 = vld [vmem:[%s1892 + $0xe0] sm:$0xff]
    %v1922 = vld [vmem:[%s1892 + $0xe8] sm:$0xff]
    %v1923 = vld [vmem:[%s1892 + $0xf0] sm:$0xff]
    %v1924 = vld [vmem:[%s1892 + $0xf8] sm:$0xff]
    %v1926 = vunpack.c.l.b16 %v1134
    %v1927 = vunpack.c.h.b16 %v1134
    %v1928 = vpack.c.b16 %v1926, %v1926
    %v1929 = vpack.c.b16 %v1927, %v1927
    %v1964 = vunpack.c.l.b16 %v1893
    %v1965 = vunpack.c.h.b16 %v1893
    %v1966 = vunpack.c.l.b16 %v1894
    %v1967 = vunpack.c.h.b16 %v1894
    %v1968 = vunpack.c.l.b16 %v1895
    %v1969 = vunpack.c.h.b16 %v1895
    %v1970 = vunpack.c.l.b16 %v1896
    %v1971 = vunpack.c.h.b16 %v1896
    %v1972 = vunpack.c.l.b16 %v1897
    %v1973 = vunpack.c.h.b16 %v1897
    %v1974 = vunpack.c.l.b16 %v1898
    %v1975 = vunpack.c.h.b16 %v1898
    %v1976 = vunpack.c.l.b16 %v1899
    %v1977 = vunpack.c.h.b16 %v1899
    %v1978 = vunpack.c.l.b16 %v1900
    %v1979 = vunpack.c.h.b16 %v1900
    %v1980 = vunpack.c.l.b16 %v1901
    %v1981 = vunpack.c.h.b16 %v1901
    %v1982 = vunpack.c.l.b16 %v1902
    %v1983 = vunpack.c.h.b16 %v1902
    %v1984 = vunpack.c.l.b16 %v1903
    %v1985 = vunpack.c.h.b16 %v1903
    %v1986 = vunpack.c.l.b16 %v1904
    %v1987 = vunpack.c.h.b16 %v1904
    %v1988 = vunpack.c.l.b16 %v1905
    %v1989 = vunpack.c.h.b16 %v1905
    %v1990 = vunpack.c.l.b16 %v1906
    %v1991 = vunpack.c.h.b16 %v1906
    %v1992 = vunpack.c.l.b16 %v1907
    %v1993 = vunpack.c.h.b16 %v1907
    %v1994 = vunpack.c.l.b16 %v1908
    %v1995 = vunpack.c.h.b16 %v1908
    %v1996 = vunpack.c.l.b16 %v1909
    %v1997 = vunpack.c.h.b16 %v1909
    %v1998 = vunpack.c.l.b16 %v1910
    %v1999 = vunpack.c.h.b16 %v1910
    %v2000 = vunpack.c.l.b16 %v1911
    %v2001 = vunpack.c.h.b16 %v1911
    %v2002 = vunpack.c.l.b16 %v1912
    %v2003 = vunpack.c.h.b16 %v1912
    %v2004 = vunpack.c.l.b16 %v1913
    %v2005 = vunpack.c.h.b16 %v1913
    %v2006 = vunpack.c.l.b16 %v1914
    %v2007 = vunpack.c.h.b16 %v1914
    %v2008 = vunpack.c.l.b16 %v1915
    %v2009 = vunpack.c.h.b16 %v1915
    %v2010 = vunpack.c.l.b16 %v1916
    %v2011 = vunpack.c.h.b16 %v1916
    %v2012 = vunpack.c.l.b16 %v1917
    %v2013 = vunpack.c.h.b16 %v1917
    %v2014 = vunpack.c.l.b16 %v1918
    %v2015 = vunpack.c.h.b16 %v1918
    %v2016 = vunpack.c.l.b16 %v1919
    %v2017 = vunpack.c.h.b16 %v1919
    %v2018 = vunpack.c.l.b16 %v1920
    %v2019 = vunpack.c.h.b16 %v1920
    %v2020 = vunpack.c.l.b16 %v1921
    %v2021 = vunpack.c.h.b16 %v1921
    %v2022 = vunpack.c.l.b16 %v1922
    %v2023 = vunpack.c.h.b16 %v1922
    %v2024 = vunpack.c.l.b16 %v1923
    %v2025 = vunpack.c.h.b16 %v1923
    %v2026 = vunpack.c.l.b16 %v1924
    %v2027 = vunpack.c.h.b16 %v1924
    %v2028 = vpack.c.b16 %v1966, %v1964
    %v2029 = vpack.c.b16 %v1967, %v1965
    %v2030 = vpack.c.b16 %v1970, %v1968
    %v2031 = vpack.c.b16 %v1971, %v1969
    %v2032 = vpack.c.b16 %v1974, %v1972
    %v2033 = vpack.c.b16 %v1975, %v1973
    %v2034 = vpack.c.b16 %v1978, %v1976
    %v2035 = vpack.c.b16 %v1979, %v1977
    %v2036 = vpack.c.b16 %v1982, %v1980
    %v2037 = vpack.c.b16 %v1983, %v1981
    %v2038 = vpack.c.b16 %v1986, %v1984
    %v2039 = vpack.c.b16 %v1987, %v1985
    %v2040 = vpack.c.b16 %v1990, %v1988
    %v2041 = vpack.c.b16 %v1991, %v1989
    %v2042 = vpack.c.b16 %v1994, %v1992
    %v2043 = vpack.c.b16 %v1995, %v1993
    %v2044 = vpack.c.b16 %v1998, %v1996
    %v2045 = vpack.c.b16 %v1999, %v1997
    %v2046 = vpack.c.b16 %v2002, %v2000
    %v2047 = vpack.c.b16 %v2003, %v2001
    %v2048 = vpack.c.b16 %v2006, %v2004
    %v2049 = vpack.c.b16 %v2007, %v2005
    %v2050 = vpack.c.b16 %v2010, %v2008
    %v2051 = vpack.c.b16 %v2011, %v2009
    %v2052 = vpack.c.b16 %v2014, %v2012
    %v2053 = vpack.c.b16 %v2015, %v2013
    %v2054 = vpack.c.b16 %v2018, %v2016
    %v2055 = vpack.c.b16 %v2019, %v2017
    %v2056 = vpack.c.b16 %v2022, %v2020
    %v2057 = vpack.c.b16 %v2023, %v2021
    %v2058 = vpack.c.b16 %v2026, %v2024
    %v2059 = vpack.c.b16 %v2027, %v2025
    %2092 = vmatpush.bf16.msra.mxu0 %v2042
    %2093 = vmatpush.bf16.msra.mxu0 %v2040
    %2094 = vmatpush.bf16.msra.mxu0 %v2038
    %2095 = vmatpush.bf16.msra.mxu0 %v2036
    %2096 = vmatpush.bf16.msra.mxu0 %v2034
    %2097 = vmatpush.bf16.msra.mxu0 %v2032
    %2098 = vmatpush.bf16.msra.mxu0 %v2030
    %2099 = vmatpush.bf16.msra.mxu0 %v2028
    %2100 = vmatmul.bf16.gmra.mxu0 %v1928
    %v2101 = vpop.f32.mrf.mxu0
    %v2102 = vadd.f32 0.0, %v2101
    %v2103 = vpop.f32.mrf.mxu0
    %2104 = vdwg.mxu0
    %2105 = vmatpush.bf16.msra.mxu0 %v2058
    %2106 = vmatpush.bf16.msra.mxu0 %v2056
    %2107 = vmatpush.bf16.msra.mxu0 %v2054
    %2108 = vmatpush.bf16.msra.mxu0 %v2052
    %2109 = vmatpush.bf16.msra.mxu0 %v2050
    %2110 = vmatpush.bf16.msra.mxu0 %v2048
    %2111 = vmatpush.bf16.msra.mxu0 %v2046
    %2112 = vmatpush.bf16.msra.mxu0 %v2044
    %2113 = vmatmul.bf16.gmra.mxu0 %v1929
    %v2114 = vpop.f32.mrf.mxu0
    %v2115 = vadd.f32 %v2102, %v2114
    %v2116 = vpop.f32.mrf.mxu0
    %2117 = vdwg.mxu0
    %2118 = vmatpush.bf16.msra.mxu0 %v2043
    %2119 = vmatpush.bf16.msra.mxu0 %v2041
    %2120 = vmatpush.bf16.msra.mxu0 %v2039
    %2121 = vmatpush.bf16.msra.mxu0 %v2037
    %2122 = vmatpush.bf16.msra.mxu0 %v2035
    %2123 = vmatpush.bf16.msra.mxu0 %v2033
    %2124 = vmatpush.bf16.msra.mxu0 %v2031
    %2125 = vmatpush.bf16.msra.mxu0 %v2029
    %2126 = vmatmul.bf16.gmra.mxu0 %v1928
    %v2127 = vpop.f32.mrf.mxu0
    %v2128 = vadd.f32 0.0, %v2127
    %v2129 = vpop.f32.mrf.mxu0
    %2130 = vdwg.mxu0
    %2131 = vmatpush.bf16.msra.mxu0 %v2059
    %2132 = vmatpush.bf16.msra.mxu0 %v2057
    %2133 = vmatpush.bf16.msra.mxu0 %v2055
    %2134 = vmatpush.bf16.msra.mxu0 %v2053
    %2135 = vmatpush.bf16.msra.mxu0 %v2051
    %2136 = vmatpush.bf16.msra.mxu0 %v2049
    %2137 = vmatpush.bf16.msra.mxu0 %v2047
    %2138 = vmatpush.bf16.msra.mxu0 %v2045
    %2139 = vmatmul.bf16.gmra.mxu0 %v1929
    %v2140 = vpop.f32.mrf.mxu0
    %v2141 = vadd.f32 %v2128, %v2140
    %v2142 = vpop.f32.mrf.mxu0
    %2143 = vdwg.mxu0
    %v2144 = vadd.f32 %v1890, %v2115
    %v2145 = vadd.f32 %v1891, %v2141
    %v2146 = vld [vmem:[%s14] sm:$0x3]
    %v2148 = vperm.slane %v2146, 0
    %v2149 = vperm.slane %v2146, 1
    %v2152 = vadd.f32 %v2144, %v2148
    %v2153 = vadd.f32 %v2145, %v2149
    %v2154 = vmax.f32 %v2152, 0.0
    %v2155 = vmax.f32 %v2153, 0.0
    %v2156 = vpack.c.bf16 %v2154, %v2154
    %v2157 = vpack.c.bf16 %v2155, %v2155
    %v2158 = vld [vmem:[#allocation10] sm:$0xf]
    %v2159 = vld [vmem:[#allocation10 + $0x4] sm:$0xf]
    %v2160 = vld [vmem:[#allocation10 + $0x8] sm:$0xf]
    %v2161 = vld [vmem:[#allocation10 + $0xc] sm:$0xf]
    %v2162 = vld [vmem:[#allocation10 + $0x10] sm:$0xf]
    %v2163 = vld [vmem:[#allocation10 + $0x14] sm:$0xf]
    %v2164 = vld [vmem:[#allocation10 + $0x18] sm:$0xf]
    %v2165 = vld [vmem:[#allocation10 + $0x1c] sm:$0xf]
    %v2166 = vld [vmem:[#allocation10 + $0x20] sm:$0xf]
    %v2167 = vld [vmem:[#allocation10 + $0x24] sm:$0xf]
    %v2168 = vld [vmem:[#allocation10 + $0x28] sm:$0xf]
    %v2169 = vld [vmem:[#allocation10 + $0x2c] sm:$0xf]
    %v2170 = vld [vmem:[#allocation10 + $0x30] sm:$0xf]
    %v2171 = vld [vmem:[#allocation10 + $0x34] sm:$0xf]
    %v2172 = vld [vmem:[#allocation10 + $0x38] sm:$0xf]
    %v2173 = vld [vmem:[#allocation10 + $0x3c] sm:$0xf]
    %v2174 = vld [vmem:[#allocation10 + $0x40] sm:$0xf]
    %v2175 = vld [vmem:[#allocation10 + $0x44] sm:$0xf]
    %v2176 = vld [vmem:[#allocation10 + $0x48] sm:$0xf]
    %v2177 = vld [vmem:[#allocation10 + $0x4c] sm:$0xf]
    %v2178 = vld [vmem:[#allocation10 + $0x50] sm:$0xf]
    %v2179 = vld [vmem:[#allocation10 + $0x54] sm:$0xf]
    %v2180 = vld [vmem:[#allocation10 + $0x58] sm:$0xf]
    %v2181 = vld [vmem:[#allocation10 + $0x5c] sm:$0xf]
    %v2182 = vld [vmem:[#allocation10 + $0x60] sm:$0xf]
    %v2183 = vld [vmem:[#allocation10 + $0x64] sm:$0xf]
    %v2184 = vld [vmem:[#allocation10 + $0x68] sm:$0xf]
    %v2185 = vld [vmem:[#allocation10 + $0x6c] sm:$0xf]
    %v2186 = vld [vmem:[#allocation10 + $0x70] sm:$0xf]
    %v2187 = vld [vmem:[#allocation10 + $0x74] sm:$0xf]
    %v2188 = vld [vmem:[#allocation10 + $0x78] sm:$0xf]
    %v2189 = vld [vmem:[#allocation10 + $0x7c] sm:$0xf]
    %v2190 = vld [vmem:[%s16] sm:$0x1]
    %v2192 = vperm.slane %v2190, 0
    %v2226 = vunpack.c.l.b16 %v2158
    %v2227 = vunpack.c.l.b16 %v2159
    %v2228 = vunpack.c.l.b16 %v2160
    %v2229 = vunpack.c.l.b16 %v2161
    %v2230 = vunpack.c.l.b16 %v2162
    %v2231 = vunpack.c.l.b16 %v2163
    %v2232 = vunpack.c.l.b16 %v2164
    %v2233 = vunpack.c.l.b16 %v2165
    %v2234 = vunpack.c.l.b16 %v2166
    %v2235 = vunpack.c.l.b16 %v2167
    %v2236 = vunpack.c.l.b16 %v2168
    %v2237 = vunpack.c.l.b16 %v2169
    %v2238 = vunpack.c.l.b16 %v2170
    %v2239 = vunpack.c.l.b16 %v2171
    %v2240 = vunpack.c.l.b16 %v2172
    %v2241 = vunpack.c.l.b16 %v2173
    %v2242 = vunpack.c.l.b16 %v2174
    %v2243 = vunpack.c.l.b16 %v2175
    %v2244 = vunpack.c.l.b16 %v2176
    %v2245 = vunpack.c.l.b16 %v2177
    %v2246 = vunpack.c.l.b16 %v2178
    %v2247 = vunpack.c.l.b16 %v2179
    %v2248 = vunpack.c.l.b16 %v2180
    %v2249 = vunpack.c.l.b16 %v2181
    %v2250 = vunpack.c.l.b16 %v2182
    %v2251 = vunpack.c.l.b16 %v2183
    %v2252 = vunpack.c.l.b16 %v2184
    %v2253 = vunpack.c.l.b16 %v2185
    %v2254 = vunpack.c.l.b16 %v2186
    %v2255 = vunpack.c.l.b16 %v2187
    %v2256 = vunpack.c.l.b16 %v2188
    %v2257 = vunpack.c.l.b16 %v2189
    %v2258 = vpack.c.b16 %v2227, %v2226
    %v2259 = vpack.c.b16 %v2229, %v2228
    %v2260 = vpack.c.b16 %v2231, %v2230
    %v2261 = vpack.c.b16 %v2233, %v2232
    %v2262 = vpack.c.b16 %v2235, %v2234
    %v2263 = vpack.c.b16 %v2237, %v2236
    %v2264 = vpack.c.b16 %v2239, %v2238
    %v2265 = vpack.c.b16 %v2241, %v2240
    %v2266 = vpack.c.b16 %v2243, %v2242
    %v2267 = vpack.c.b16 %v2245, %v2244
    %v2268 = vpack.c.b16 %v2247, %v2246
    %v2269 = vpack.c.b16 %v2249, %v2248
    %v2270 = vpack.c.b16 %v2251, %v2250
    %v2271 = vpack.c.b16 %v2253, %v2252
    %v2272 = vpack.c.b16 %v2255, %v2254
    %v2273 = vpack.c.b16 %v2257, %v2256
    %2290 = vmatpush.bf16.msra.mxu0 %v2265
    %2291 = vmatpush.bf16.msra.mxu0 %v2264
    %2292 = vmatpush.bf16.msra.mxu0 %v2263
    %2293 = vmatpush.bf16.msra.mxu0 %v2262
    %2294 = vmatpush.bf16.msra.mxu0 %v2261
    %2295 = vmatpush.bf16.msra.mxu0 %v2260
    %2296 = vmatpush.bf16.msra.mxu0 %v2259
    %2297 = vmatpush.bf16.msra.mxu0 %v2258
    %2298 = vmatmul.bf16.gmra.mxu0 %v2156
    %v2299 = vpop.f32.mrf.mxu0
    %v2300 = vadd.f32 %v2192, %v2299
    %v2301 = vpop.f32.mrf.mxu0
    %2302 = vdwg.mxu0
    %2303 = vmatpush.bf16.msra.mxu0 %v2273
    %2304 = vmatpush.bf16.msra.mxu0 %v2272
    %2305 = vmatpush.bf16.msra.mxu0 %v2271
    %2306 = vmatpush.bf16.msra.mxu0 %v2270
    %2307 = vmatpush.bf16.msra.mxu0 %v2269
    %2308 = vmatpush.bf16.msra.mxu0 %v2268
    %2309 = vmatpush.bf16.msra.mxu0 %v2267
    %2310 = vmatpush.bf16.msra.mxu0 %v2266
    %2311 = vmatmul.bf16.gmra.mxu0 %v2157
    %v2312 = vpop.f32.mrf.mxu0
    %v2313 = vadd.f32 %v2300, %v2312
    %v2314 = vpop.f32.mrf.mxu0
    %2315 = vdwg.mxu0
    %v2316 = vmax.f32 %v2313, 0.0
    %v2317 = vpack.c.bf16 %v2316, %v2316
    %v2318 = vld [vmem:[%s17] sm:$0xf]
    %v2319 = vld [vmem:[%s17 + $0x4] sm:$0xf]
    %v2320 = vld [vmem:[%s17 + $0x8] sm:$0xf]
    %v2321 = vld [vmem:[%s17 + $0xc] sm:$0xf]
    %v2322 = vld [vmem:[%s17 + $0x10] sm:$0xf]
    %v2323 = vld [vmem:[%s17 + $0x14] sm:$0xf]
    %v2324 = vld [vmem:[%s17 + $0x18] sm:$0xf]
    %v2325 = vld [vmem:[%s17 + $0x1c] sm:$0xf]
    %v2326 = vld [vmem:[%s17 + $0x20] sm:$0xf]
    %v2327 = vld [vmem:[%s17 + $0x24] sm:$0xf]
    %v2328 = vld [vmem:[%s17 + $0x28] sm:$0xf]
    %v2329 = vld [vmem:[%s17 + $0x2c] sm:$0xf]
    %v2330 = vld [vmem:[%s17 + $0x30] sm:$0xf]
    %v2331 = vld [vmem:[%s17 + $0x34] sm:$0xf]
    %v2332 = vld [vmem:[%s17 + $0x38] sm:$0xf]
    %v2333 = vld [vmem:[%s17 + $0x3c] sm:$0xf]
    %v2334 = vld [vmem:[%s18] sm:$0x1]
    %v2336 = vperm.slane %v2334, 0
    %v2354 = vunpack.c.l.b16 %v2318
    %v2355 = vunpack.c.l.b16 %v2319
    %v2356 = vunpack.c.l.b16 %v2320
    %v2357 = vunpack.c.l.b16 %v2321
    %v2358 = vunpack.c.l.b16 %v2322
    %v2359 = vunpack.c.l.b16 %v2323
    %v2360 = vunpack.c.l.b16 %v2324
    %v2361 = vunpack.c.l.b16 %v2325
    %v2362 = vunpack.c.l.b16 %v2326
    %v2363 = vunpack.c.l.b16 %v2327
    %v2364 = vunpack.c.l.b16 %v2328
    %v2365 = vunpack.c.l.b16 %v2329
    %v2366 = vunpack.c.l.b16 %v2330
    %v2367 = vunpack.c.l.b16 %v2331
    %v2368 = vunpack.c.l.b16 %v2332
    %v2369 = vunpack.c.l.b16 %v2333
    %v2370 = vpack.c.b16 %v2355, %v2354
    %v2371 = vpack.c.b16 %v2357, %v2356
    %v2372 = vpack.c.b16 %v2359, %v2358
    %v2373 = vpack.c.b16 %v2361, %v2360
    %v2374 = vpack.c.b16 %v2363, %v2362
    %v2375 = vpack.c.b16 %v2365, %v2364
    %v2376 = vpack.c.b16 %v2367, %v2366
    %v2377 = vpack.c.b16 %v2369, %v2368
    %2386 = vmatpush.bf16.msra.mxu0 %v2377
    %2387 = vmatpush.bf16.msra.mxu0 %v2376
    %2388 = vmatpush.bf16.msra.mxu0 %v2375
    %2389 = vmatpush.bf16.msra.mxu0 %v2374
    %2390 = vmatpush.bf16.msra.mxu0 %v2373
    %2391 = vmatpush.bf16.msra.mxu0 %v2372
    %2392 = vmatpush.bf16.msra.mxu0 %v2371
    %2393 = vmatpush.bf16.msra.mxu0 %v2370
    %2394 = vmatmul.bf16.gmra.mxu0 %v2317
    %v2395 = vpop.f32.mrf.mxu0
    %v2396 = vadd.f32 %v2336, %v2395
    %v2397 = vpop.f32.mrf.mxu0
    %2398 = vdwg.mxu0
    %v2399 = vxor.u32 %v2396, 2147483648
    %v2400 = vmul.f32 %v2399, 1.442695
    %v2401 = vpow.pop %v2400
    %v2402 = vadd.f32 %v2401, 1.0
    %v2403 = vrcp.pop %v2402
    %v2404 = vmul.f32 %v2402, %v2403
    %v2405 = vsub.f32 1.0, %v2404
    %v2406 = vmul.f32 %v2403, %v2405
    %v2407 = vadd.f32 %v2403, %v2406
    %vm2408 = vweird.f32 %v2402
    %vm2409 = vweird.f32 %v2403
    %vm2410 = vmor %vm2408, %vm2409
    %v2411 = vsel %vm2410, %v2403, %v2407
    %v2412 = vand.u32 2147483647, %v2402
    %vm2413 = vcmp.eq.f32.partialorder %v2412, 8.507059e+37
    %v2414 = vand.u32 %v2402, 2147483648
    %v2415 = vor.u32 1.1754944e-38, %v2414
    %v2416 = vsel %vm2413, %v2415, %v2411
    %v2417 = vmul.f32 1.0, %v2416
    %2418 = vst [vmem:[#allocation11] sm:$0xff] %v2417
    // Predicated region
    $region98: #{tpu_custom_call.1} parent=1 // pred_check
      _
    $region99: #{tpu_custom_call.1} parent=1 // pred_check_branch
      %2420 = sbr.rel (0) target = $region101
    $region100: #{tpu_custom_call.1} parent=1 // pred_region
      %2422 = vsyncadd [#allocation4], 0
      %s2424 = sshll.u32 [#allocation11], 4
      %s2425 = int_to_ptr.vmem [resolvable:$true] %s2424
      %s2426 = sshll.u32 %s19, 4
      %s2427 = int_to_ptr.hbm [resolvable:$true] %s2426
      %2429 = dma.vmem_to_hbm [thread:$0]  %s2425, 128, %s2427, [#allocation4]
    $region101: #{tpu_custom_call.1} parent=1 // pred_fallthru
      _
    // Predicated region
    $region102: #{tpu_custom_call.1} parent=1 // pred_check
      _
    $region103: #{tpu_custom_call.1} parent=1 // pred_check_branch
      %2431 = sbr.rel (0) target = $region105
    $region104: #{tpu_custom_call.1} parent=1 // pred_region
      %2433 = dma.done [#allocation4], 128
    $region105: #{tpu_custom_call.1} parent=1 // pred_fallthru
      _
    %2434 = vsyncpa [#allocation3], 1
    %2435 = vsyncpa [#allocation6], 1
    %2436 = vsyncpa [#allocation9], 1
    %2437 = vsyncpa [#allocation4], 1

</llo_original>
